<compile_context>
chip_gen: v5e
topology: v5e:2x2
jax: 0.10.0
libtpu: 0.0.40
codegen_flags: <defaults>
</compile_context>

<pallas_src>
import functools
import math

import jax
import jax.numpy as jnp
from jax import lax
from jax.experimental import pallas as pl
from jax.experimental.pallas import tpu as pltpu


def _conv3x3(src_ref, w_ref, b_ref, *, H, W, margin, n_out):
    """3x3 same-padded conv on a flattened (H*W, C_in) image staged in src_ref.

    src_ref: VMEM ref of shape (margin + H*W + margin, C_in); rows
             [margin, margin+H*W) hold the image (row-major), margins are zero.
    w_ref:   (9, C_in, n_out) ref, index k = (dy+1)*3 + (dx+1).
    b_ref:   (1, n_out) ref.
    Returns an (H*W, n_out) float32 value.
    """
    N = H * W
    # Column index of every flattened pixel (used to mask row-wrap of shifts).
    col = lax.broadcasted_iota(jnp.int32, (N, 1), 0) % W
    left_ok = col >= 1          # valid positions for dx == -1
    right_ok = col <= (W - 2)   # valid positions for dx == +1

    acc = jnp.broadcast_to(b_ref[...].astype(jnp.float32), (N, n_out))
    k = 0
    for dy in (-1, 0, 1):
        for dx in (-1, 0, 1):
            s = margin + dy * W + dx          # static row offset into src_ref
            xs = src_ref[s:s + N, :]           # flattened spatial shift
            if dx == -1:
                xs = jnp.where(left_ok, xs, 0.0)
            elif dx == 1:
                xs = jnp.where(right_ok, xs, 0.0)
            acc = acc + jnp.dot(xs, w_ref[k], preferred_element_type=jnp.float32)
            k += 1
    return acc


def _ca_kernel(x_ref, w1_ref, b1_ref, w2_ref, b2_ref,
               wd1_ref, bd1_ref, wd2_ref, bd2_ref,
               out_ref, xbuf, hbuf, *, H, W, margin):
    N = H * W
    C = x_ref.shape[-1]

    # ---- body: conv3x3 -> ReLU -> conv3x3 ----
    xbuf[...] = jnp.zeros_like(xbuf)                       # zero margins
    xbuf[margin:margin + N, :] = x_ref[0].astype(jnp.float32)
    h = _conv3x3(xbuf, w1_ref, b1_ref, H=H, W=W, margin=margin, n_out=C)
    h = jnp.maximum(h, 0.0)                                # ReLU

    hbuf[...] = jnp.zeros_like(hbuf)
    hbuf[margin:margin + N, :] = h
    y = _conv3x3(hbuf, w2_ref, b2_ref, H=H, W=W, margin=margin, n_out=C)

    # ---- conv_du: global avg pool -> 1x1 conv -> ReLU -> 1x1 conv -> sigmoid ----
    pooled = jnp.mean(y, axis=0, keepdims=True)            # (1, C)
    z = jnp.dot(pooled, wd1_ref[...].astype(jnp.float32),
                preferred_element_type=jnp.float32) + bd1_ref[...].astype(jnp.float32)
    z = jnp.maximum(z, 0.0)                                # (1, Cr)
    t = jnp.dot(z, wd2_ref[...].astype(jnp.float32),
                preferred_element_type=jnp.float32) + bd2_ref[...].astype(jnp.float32)
    scale = 1.0 / (1.0 + jnp.exp(-t))                      # sigmoid, (1, C)

    # ---- y * CA + x (residual) ----
    out_ref[0] = (y * scale + x_ref[0].astype(jnp.float32)).astype(out_ref.dtype)


def ca_forward(x, params):
    """x: (B, C, H, W) float32 (NCHW, PyTorch layout). params in PyTorch layouts."""
    w1, b1, w2, b2, wd1, bd1, wd2, bd2 = params
    B, C, H, W = x.shape
    N = H * W
    Cr = wd1.shape[0]
    margin = ((W + 1 + 7) // 8) * 8          # >= W+1, sublane aligned

    # Layout glue (cheap, XLA-side): NCHW -> (B, H*W, C) so channels are lane-dense.
    x_nc = jnp.transpose(x, (0, 2, 3, 1)).reshape(B, N, C).astype(jnp.float32)
    # Conv weights (C_out, C_in, 3, 3) -> (9, C_in, C_out), k = a*3 + b.
    w1k = jnp.transpose(w1, (2, 3, 1, 0)).reshape(9, C, C)
    w2k = jnp.transpose(w2, (2, 3, 1, 0)).reshape(9, C, C)
    wd1m = jnp.transpose(wd1[:, :, 0, 0], (1, 0))          # (C, Cr)
    wd2m = jnp.transpose(wd2[:, :, 0, 0], (1, 0))          # (Cr, C)
    b1m = b1.reshape(1, C)
    b2m = b2.reshape(1, C)
    bd1m = bd1.reshape(1, Cr)
    bd2m = bd2.reshape(1, C)

    const3 = lambda b: (0, 0, 0)
    const2 = lambda b: (0, 0)

    cost = pl.CostEstimate(
        flops=int(B * (4 * 9 * N * C * C + 4 * C * Cr + 8 * N * C)),
        transcendentals=int(B * C),
        bytes_accessed=int(4 * (2 * B * N * C + 2 * 9 * C * C + 2 * C * Cr + 3 * C + Cr)),
    )

    kernel = functools.partial(_ca_kernel, H=H, W=W, margin=margin)

    out = pl.pallas_call(
        kernel,
        out_shape=jax.ShapeDtypeStruct((B, N, C), jnp.float32),
        grid_spec=pltpu.PrefetchScalarGridSpec(
            num_scalar_prefetch=0,
            grid=(B,),
            in_specs=[
                pl.BlockSpec((1, N, C), lambda b: (b, 0, 0)),   # x (per-image block)
                pl.BlockSpec((9, C, C), const3),                # conv1 weights
                pl.BlockSpec((1, C), const2),                   # conv1 bias
                pl.BlockSpec((9, C, C), const3),                # conv2 weights
                pl.BlockSpec((1, C), const2),                   # conv2 bias
                pl.BlockSpec((C, Cr), const2),                  # SE reduce weight
                pl.BlockSpec((1, Cr), const2),                  # SE reduce bias
                pl.BlockSpec((Cr, C), const2),                  # SE expand weight
                pl.BlockSpec((1, C), const2),                   # SE expand bias
            ],
            out_specs=pl.BlockSpec((1, N, C), lambda b: (b, 0, 0)),
            scratch_shapes=[
                pltpu.VMEM((N + 2 * margin, C), jnp.float32),   # staged conv1 input
                pltpu.VMEM((N + 2 * margin, C), jnp.float32),   # staged conv2 input
            ],
        ),
        compiler_params=pltpu.CompilerParams(
            dimension_semantics=("parallel",),
            vmem_limit_bytes=32 * 1024 * 1024,
        ),
        cost_estimate=cost,
    )(x_nc, w1k, b1m, w2k, b2m, wd1m, bd1m, wd2m, bd2m)

    return jnp.transpose(out.reshape(B, H, W, C), (0, 3, 1, 2))


def _ca_ref(x, params):
    """Pure-JAX reference mirroring the PyTorch CA module (for self-check)."""
    w1, b1, w2, b2, wd1, bd1, wd2, bd2 = params
    dn = lax.conv_dimension_numbers(x.shape, w1.shape, ("NCHW", "OIHW", "NCHW"))
    h = lax.conv_general_dilated(x, w1, (1, 1), "SAME", dimension_numbers=dn)
    h = jnp.maximum(h + b1[None, :, None, None], 0.0)
    y = lax.conv_general_dilated(h, w2, (1, 1), "SAME", dimension_numbers=dn)
    y = y + b2[None, :, None, None]
    p = jnp.mean(y, axis=(2, 3))                              # (B, C)
    z = jnp.maximum(p @ wd1[:, :, 0, 0].T + bd1, 0.0)         # (B, Cr)
    s = jax.nn.sigmoid(z @ wd2[:, :, 0, 0].T + bd2)           # (B, C)
    return y * s[:, :, None, None] + x


if __name__ == "__main__":
    B, C, H, W = 2, 128, 16, 16          # n_feats must be >= reduction (=16)
    reduction = 16
    Cr = C // reduction                   # 8

    key = jax.random.PRNGKey(0)
    ks = jax.random.split(key, 9)
    s_conv = 1.0 / math.sqrt(9 * C)
    x = jax.random.normal(ks[0], (B, C, H, W), dtype=jnp.float32)
    w1 = jax.random.normal(ks[1], (C, C, 3, 3), dtype=jnp.float32) * s_conv
    b1 = jax.random.normal(ks[2], (C,), dtype=jnp.float32) * 0.1
    w2 = jax.random.normal(ks[3], (C, C, 3, 3), dtype=jnp.float32) * s_conv
    b2 = jax.random.normal(ks[4], (C,), dtype=jnp.float32) * 0.1
    wd1 = jax.random.normal(ks[5], (Cr, C, 1, 1), dtype=jnp.float32) / math.sqrt(C)
    bd1 = jax.random.normal(ks[6], (Cr,), dtype=jnp.float32) * 0.1
    wd2 = jax.random.normal(ks[7], (C, Cr, 1, 1), dtype=jnp.float32) / math.sqrt(Cr)
    bd2 = jax.random.normal(ks[8], (C,), dtype=jnp.float32) * 0.1
    params = (w1, b1, w2, b2, wd1, bd1, wd2, bd2)

    out = jax.block_until_ready(ca_forward(x, params))
    ref = jax.block_until_ready(_ca_ref(x, params))
    assert out.shape == x.shape, (out.shape, x.shape)
    err = float(jnp.max(jnp.abs(out - ref)))
    assert jnp.allclose(out, ref, rtol=2e-4, atol=2e-4), err
    print("KERNEL_OK")
</pallas_src>

<mosaic_0001>
module attributes {stable_mosaic.version = 11 : i64} {
  func.func @_ca_kernel(%arg0: i32, %arg1: memref<1x256x128xf32, #tpu.memory_space<vmem>>, %arg2: memref<9x128x128xf32, #tpu.memory_space<vmem>>, %arg3: memref<1x128xf32, #tpu.memory_space<vmem>>, %arg4: memref<9x128x128xf32, #tpu.memory_space<vmem>>, %arg5: memref<1x128xf32, #tpu.memory_space<vmem>>, %arg6: memref<128x8xf32, #tpu.memory_space<vmem>>, %arg7: memref<1x8xf32, #tpu.memory_space<vmem>>, %arg8: memref<8x128xf32, #tpu.memory_space<vmem>>, %arg9: memref<1x128xf32, #tpu.memory_space<vmem>>, %arg10: memref<1x256x128xf32, #tpu.memory_space<vmem>>, %arg11: memref<304x128xf32, #tpu.memory_space<vmem>>, %arg12: memref<304x128xf32, #tpu.memory_space<vmem>>) attributes {dimension_semantics = [#tpu.dimension_semantics<parallel>], iteration_bounds = array<i64: 2>, scalar_prefetch = 0 : i64, scratch_operands = 2 : i64, tpu.core_type = #tpu.core_type<tc>, window_params = [{transform_indices = @transform_0, window_bounds = array<i64: 1, 256, 128>}, {pipeline_mode = #tpu.pipeline_mode<synchronous>, transform_indices = @transform_1, window_bounds = array<i64: 9, 128, 128>}, {pipeline_mode = #tpu.pipeline_mode<synchronous>, transform_indices = @transform_2, window_bounds = array<i64: 1, 128>}, {pipeline_mode = #tpu.pipeline_mode<synchronous>, transform_indices = @transform_3, window_bounds = array<i64: 9, 128, 128>}, {pipeline_mode = #tpu.pipeline_mode<synchronous>, transform_indices = @transform_4, window_bounds = array<i64: 1, 128>}, {pipeline_mode = #tpu.pipeline_mode<synchronous>, transform_indices = @transform_5, window_bounds = array<i64: 128, 8>}, {pipeline_mode = #tpu.pipeline_mode<synchronous>, transform_indices = @transform_6, window_bounds = array<i64: 1, 8>}, {pipeline_mode = #tpu.pipeline_mode<synchronous>, transform_indices = @transform_7, window_bounds = array<i64: 8, 128>}, {pipeline_mode = #tpu.pipeline_mode<synchronous>, transform_indices = @transform_8, window_bounds = array<i64: 1, 128>}, {transform_indices = @transform_9, window_bounds = array<i64: 1, 256, 128>}]} {
    %cst = arith.constant 0.000000e+00 : f32
    %0 = vector.broadcast %cst : f32 to vector<304x128xf32>
    %c0 = arith.constant 0 : index
    %c0_0 = arith.constant 0 : index
    %1 = vector.load %arg11[%c0, %c0_0] : memref<304x128xf32, #tpu.memory_space<vmem>>, vector<304x128xf32>
    tpu.vector_store %arg11[%c0, %c0_0], %0 {strides = array<i32>} : memref<304x128xf32, #tpu.memory_space<vmem>>, vector<304x128xf32>,
    %c0_1 = arith.constant 0 : index
    %c0_2 = arith.constant 0 : index
    %c0_3 = arith.constant 0 : index
    %2 = vector.load %arg1[%c0_1, %c0_2, %c0_3] : memref<1x256x128xf32, #tpu.memory_space<vmem>>, vector<1x256x128xf32>
    %3 = vector.shape_cast %2 : vector<1x256x128xf32> to vector<256x128xf32>
    %c24 = arith.constant 24 : index
    %c0_4 = arith.constant 0 : index
    %4 = vector.load %arg11[%c24, %c0_4] : memref<304x128xf32, #tpu.memory_space<vmem>>, vector<256x128xf32>
    tpu.vector_store %arg11[%c24, %c0_4], %3 {strides = array<i32>} : memref<304x128xf32, #tpu.memory_space<vmem>>, vector<256x128xf32>,
    %5 = tpu.iota {dimensions = array<i32: 0>} : vector<256x1xi32>
    %c16_i32 = arith.constant 16 : i32
    %c0_i32 = arith.constant 0 : i32
    %6 = arith.cmpi eq, %c16_i32, %c0_i32 : i32
    %c1_i32 = arith.constant 1 : i32
    %7 = arith.select %6, %c1_i32, %c16_i32 : i32
    %8 = vector.broadcast %7 : i32 to vector<256x1xi32>
    %9 = arith.remsi %5, %8 : vector<256x1xi32>
    %c0_i32_5 = arith.constant 0 : i32
    %10 = vector.broadcast %c0_i32_5 : i32 to vector<256x1xi32>
    %11 = arith.cmpi ne, %9, %10 : vector<256x1xi32>
    %c0_i32_6 = arith.constant 0 : i32
    %12 = vector.broadcast %c0_i32_6 : i32 to vector<256x1xi32>
    %13 = arith.cmpi slt, %9, %12 : vector<256x1xi32>
    %c0_i32_7 = arith.constant 0 : i32
    %14 = arith.cmpi slt, %7, %c0_i32_7 : i32
    %15 = vector.broadcast %14 : i1 to vector<256x1xi1>
    %16 = vector.broadcast %15 : vector<256x1xi1> to vector<256x1xi1>
    %17 = arith.xori %13, %16 : vector<256x1xi1>
    %18 = arith.andi %17, %11 : vector<256x1xi1>
    %19 = vector.broadcast %7 : i32 to vector<256x1xi32>
    %20 = arith.addi %9, %19 : vector<256x1xi32>
    %21 = arith.select %18, %20, %9 : vector<256x1xi1>, vector<256x1xi32>
    %c1_i32_8 = arith.constant 1 : i32
    %22 = vector.broadcast %c1_i32_8 : i32 to vector<256x1xi32>
    %23 = arith.cmpi sge, %21, %22 : vector<256x1xi32>
    %c14_i32 = arith.constant 14 : i32
    %24 = vector.broadcast %c14_i32 : i32 to vector<256x1xi32>
    %25 = arith.cmpi sle, %21, %24 : vector<256x1xi32>
    %c0_9 = arith.constant 0 : index
    %c0_10 = arith.constant 0 : index
    %26 = vector.load %arg3[%c0_9, %c0_10] : memref<1x128xf32, #tpu.memory_space<vmem>>, vector<1x128xf32>
    %27 = vector.shape_cast %26 : vector<1x128xf32> to vector<1x128xf32>
    %28 = vector.broadcast %27 : vector<1x128xf32> to vector<256x128xf32>
    %c7 = arith.constant 7 : index
    %c0_11 = arith.constant 0 : index
    %29 = vector.load %arg11[%c7, %c0_11] : memref<304x128xf32, #tpu.memory_space<vmem>>, vector<256x128xf32>
    %cst_12 = arith.constant 0.000000e+00 : f32
    %30 = vector.shape_cast %23 : vector<256x1xi1> to vector<256x1xi1>
    %31 = vector.broadcast %30 : vector<256x1xi1> to vector<256x128xi1>
    %32 = vector.broadcast %cst_12 : f32 to vector<256x128xf32>
    %33 = arith.select %31, %29, %32 : vector<256x128xi1>, vector<256x128xf32>
    %c0_13 = arith.constant 0 : index
    %c0_14 = arith.constant 0 : index
    %c0_15 = arith.constant 0 : index
    %34 = vector.load %arg2[%c0_13, %c0_14, %c0_15] : memref<9x128x128xf32, #tpu.memory_space<vmem>>, vector<1x128x128xf32>
    %35 = vector.shape_cast %34 : vector<1x128x128xf32> to vector<128x128xf32>
    %cst_16 = arith.constant dense<0.000000e+00> : vector<256x128xf32>
    %36 = tpu.matmul %33, %35, %cst_16 {dimension_numbers = #tpu.dot_dimension_numbers<[1], [0], [0], [1], [0, 0, 1, 1], [], []>} : vector<256x128xf32>, vector<128x128xf32>, vector<256x128xf32> -> vector<256x128xf32>
    %37 = arith.addf %28, %36 : vector<256x128xf32>
    %c8 = arith.constant 8 : index
    %c0_17 = arith.constant 0 : index
    %38 = vector.load %arg11[%c8, %c0_17] : memref<304x128xf32, #tpu.memory_space<vmem>>, vector<256x128xf32>
    %c1 = arith.constant 1 : index
    %c0_18 = arith.constant 0 : index
    %c0_19 = arith.constant 0 : index
    %39 = vector.load %arg2[%c1, %c0_18, %c0_19] : memref<9x128x128xf32, #tpu.memory_space<vmem>>, vector<1x128x128xf32>
    %40 = vector.shape_cast %39 : vector<1x128x128xf32> to vector<128x128xf32>
    %cst_20 = arith.constant dense<0.000000e+00> : vector<256x128xf32>
    %41 = tpu.matmul %38, %40, %cst_20 {dimension_numbers = #tpu.dot_dimension_numbers<[1], [0], [0], [1], [0, 0, 1, 1], [], []>} : vector<256x128xf32>, vector<128x128xf32>, vector<256x128xf32> -> vector<256x128xf32>
    %42 = arith.addf %37, %41 : vector<256x128xf32>
    %c9 = arith.constant 9 : index
    %c0_21 = arith.constant 0 : index
    %43 = vector.load %arg11[%c9, %c0_21] : memref<304x128xf32, #tpu.memory_space<vmem>>, vector<256x128xf32>
    %cst_22 = arith.constant 0.000000e+00 : f32
    %44 = vector.shape_cast %25 : vector<256x1xi1> to vector<256x1xi1>
    %45 = vector.broadcast %44 : vector<256x1xi1> to vector<256x128xi1>
    %46 = vector.broadcast %cst_22 : f32 to vector<256x128xf32>
    %47 = arith.select %45, %43, %46 : vector<256x128xi1>, vector<256x128xf32>
    %c2 = arith.constant 2 : index
    %c0_23 = arith.constant 0 : index
    %c0_24 = arith.constant 0 : index
    %48 = vector.load %arg2[%c2, %c0_23, %c0_24] : memref<9x128x128xf32, #tpu.memory_space<vmem>>, vector<1x128x128xf32>
    %49 = vector.shape_cast %48 : vector<1x128x128xf32> to vector<128x128xf32>
    %cst_25 = arith.constant dense<0.000000e+00> : vector<256x128xf32>
    %50 = tpu.matmul %47, %49, %cst_25 {dimension_numbers = #tpu.dot_dimension_numbers<[1], [0], [0], [1], [0, 0, 1, 1], [], []>} : vector<256x128xf32>, vector<128x128xf32>, vector<256x128xf32> -> vector<256x128xf32>
    %51 = arith.addf %42, %50 : vector<256x128xf32>
    %c23 = arith.constant 23 : index
    %c0_26 = arith.constant 0 : index
    %52 = vector.load %arg11[%c23, %c0_26] : memref<304x128xf32, #tpu.memory_space<vmem>>, vector<256x128xf32>
    %cst_27 = arith.constant 0.000000e+00 : f32
    %53 = vector.shape_cast %23 : vector<256x1xi1> to vector<256x1xi1>
    %54 = vector.broadcast %53 : vector<256x1xi1> to vector<256x128xi1>
    %55 = vector.broadcast %cst_27 : f32 to vector<256x128xf32>
    %56 = arith.select %54, %52, %55 : vector<256x128xi1>, vector<256x128xf32>
    %c3 = arith.constant 3 : index
    %c0_28 = arith.constant 0 : index
    %c0_29 = arith.constant 0 : index
    %57 = vector.load %arg2[%c3, %c0_28, %c0_29] : memref<9x128x128xf32, #tpu.memory_space<vmem>>, vector<1x128x128xf32>
    %58 = vector.shape_cast %57 : vector<1x128x128xf32> to vector<128x128xf32>
    %cst_30 = arith.constant dense<0.000000e+00> : vector<256x128xf32>
    %59 = tpu.matmul %56, %58, %cst_30 {dimension_numbers = #tpu.dot_dimension_numbers<[1], [0], [0], [1], [0, 0, 1, 1], [], []>} : vector<256x128xf32>, vector<128x128xf32>, vector<256x128xf32> -> vector<256x128xf32>
    %60 = arith.addf %51, %59 : vector<256x128xf32>
    %c24_31 = arith.constant 24 : index
    %c0_32 = arith.constant 0 : index
    %61 = vector.load %arg11[%c24_31, %c0_32] : memref<304x128xf32, #tpu.memory_space<vmem>>, vector<256x128xf32>
    %c4 = arith.constant 4 : index
    %c0_33 = arith.constant 0 : index
    %c0_34 = arith.constant 0 : index
    %62 = vector.load %arg2[%c4, %c0_33, %c0_34] : memref<9x128x128xf32, #tpu.memory_space<vmem>>, vector<1x128x128xf32>
    %63 = vector.shape_cast %62 : vector<1x128x128xf32> to vector<128x128xf32>
    %cst_35 = arith.constant dense<0.000000e+00> : vector<256x128xf32>
    %64 = tpu.matmul %61, %63, %cst_35 {dimension_numbers = #tpu.dot_dimension_numbers<[1], [0], [0], [1], [0, 0, 1, 1], [], []>} : vector<256x128xf32>, vector<128x128xf32>, vector<256x128xf32> -> vector<256x128xf32>
    %65 = arith.addf %60, %64 : vector<256x128xf32>
    %c25 = arith.constant 25 : index
    %c0_36 = arith.constant 0 : index
    %66 = vector.load %arg11[%c25, %c0_36] : memref<304x128xf32, #tpu.memory_space<vmem>>, vector<256x128xf32>
    %cst_37 = arith.constant 0.000000e+00 : f32
    %67 = vector.shape_cast %25 : vector<256x1xi1> to vector<256x1xi1>
    %68 = vector.broadcast %67 : vector<256x1xi1> to vector<256x128xi1>
    %69 = vector.broadcast %cst_37 : f32 to vector<256x128xf32>
    %70 = arith.select %68, %66, %69 : vector<256x128xi1>, vector<256x128xf32>
    %c5 = arith.constant 5 : index
    %c0_38 = arith.constant 0 : index
    %c0_39 = arith.constant 0 : index
    %71 = vector.load %arg2[%c5, %c0_38, %c0_39] : memref<9x128x128xf32, #tpu.memory_space<vmem>>, vector<1x128x128xf32>
    %72 = vector.shape_cast %71 : vector<1x128x128xf32> to vector<128x128xf32>
    %cst_40 = arith.constant dense<0.000000e+00> : vector<256x128xf32>
    %73 = tpu.matmul %70, %72, %cst_40 {dimension_numbers = #tpu.dot_dimension_numbers<[1], [0], [0], [1], [0, 0, 1, 1], [], []>} : vector<256x128xf32>, vector<128x128xf32>, vector<256x128xf32> -> vector<256x128xf32>
    %74 = arith.addf %65, %73 : vector<256x128xf32>
    %c39 = arith.constant 39 : index
    %c0_41 = arith.constant 0 : index
    %75 = vector.load %arg11[%c39, %c0_41] : memref<304x128xf32, #tpu.memory_space<vmem>>, vector<256x128xf32>
    %cst_42 = arith.constant 0.000000e+00 : f32
    %76 = vector.shape_cast %23 : vector<256x1xi1> to vector<256x1xi1>
    %77 = vector.broadcast %76 : vector<256x1xi1> to vector<256x128xi1>
    %78 = vector.broadcast %cst_42 : f32 to vector<256x128xf32>
    %79 = arith.select %77, %75, %78 : vector<256x128xi1>, vector<256x128xf32>
    %c6 = arith.constant 6 : index
    %c0_43 = arith.constant 0 : index
    %c0_44 = arith.constant 0 : index
    %80 = vector.load %arg2[%c6, %c0_43, %c0_44] : memref<9x128x128xf32, #tpu.memory_space<vmem>>, vector<1x128x128xf32>
    %81 = vector.shape_cast %80 : vector<1x128x128xf32> to vector<128x128xf32>
    %cst_45 = arith.constant dense<0.000000e+00> : vector<256x128xf32>
    %82 = tpu.matmul %79, %81, %cst_45 {dimension_numbers = #tpu.dot_dimension_numbers<[1], [0], [0], [1], [0, 0, 1, 1], [], []>} : vector<256x128xf32>, vector<128x128xf32>, vector<256x128xf32> -> vector<256x128xf32>
    %83 = arith.addf %74, %82 : vector<256x128xf32>
    %c40 = arith.constant 40 : index
    %c0_46 = arith.constant 0 : index
    %84 = vector.load %arg11[%c40, %c0_46] : memref<304x128xf32, #tpu.memory_space<vmem>>, vector<256x128xf32>
    %c7_47 = arith.constant 7 : index
    %c0_48 = arith.constant 0 : index
    %c0_49 = arith.constant 0 : index
    %85 = vector.load %arg2[%c7_47, %c0_48, %c0_49] : memref<9x128x128xf32, #tpu.memory_space<vmem>>, vector<1x128x128xf32>
    %86 = vector.shape_cast %85 : vector<1x128x128xf32> to vector<128x128xf32>
    %cst_50 = arith.constant dense<0.000000e+00> : vector<256x128xf32>
    %87 = tpu.matmul %84, %86, %cst_50 {dimension_numbers = #tpu.dot_dimension_numbers<[1], [0], [0], [1], [0, 0, 1, 1], [], []>} : vector<256x128xf32>, vector<128x128xf32>, vector<256x128xf32> -> vector<256x128xf32>
    %88 = arith.addf %83, %87 : vector<256x128xf32>
    %c41 = arith.constant 41 : index
    %c0_51 = arith.constant 0 : index
    %89 = vector.load %arg11[%c41, %c0_51] : memref<304x128xf32, #tpu.memory_space<vmem>>, vector<256x128xf32>
    %cst_52 = arith.constant 0.000000e+00 : f32
    %90 = vector.shape_cast %25 : vector<256x1xi1> to vector<256x1xi1>
    %91 = vector.broadcast %90 : vector<256x1xi1> to vector<256x128xi1>
    %92 = vector.broadcast %cst_52 : f32 to vector<256x128xf32>
    %93 = arith.select %91, %89, %92 : vector<256x128xi1>, vector<256x128xf32>
    %c8_53 = arith.constant 8 : index
    %c0_54 = arith.constant 0 : index
    %c0_55 = arith.constant 0 : index
    %94 = vector.load %arg2[%c8_53, %c0_54, %c0_55] : memref<9x128x128xf32, #tpu.memory_space<vmem>>, vector<1x128x128xf32>
    %95 = vector.shape_cast %94 : vector<1x128x128xf32> to vector<128x128xf32>
    %cst_56 = arith.constant dense<0.000000e+00> : vector<256x128xf32>
    %96 = tpu.matmul %93, %95, %cst_56 {dimension_numbers = #tpu.dot_dimension_numbers<[1], [0], [0], [1], [0, 0, 1, 1], [], []>} : vector<256x128xf32>, vector<128x128xf32>, vector<256x128xf32> -> vector<256x128xf32>
    %97 = arith.addf %88, %96 : vector<256x128xf32>
    %cst_57 = arith.constant 0.000000e+00 : f32
    %98 = vector.broadcast %cst_57 : f32 to vector<256x128xf32>
    %99 = arith.maximumf %97, %98 : vector<256x128xf32>
    %cst_58 = arith.constant 0.000000e+00 : f32
    %100 = vector.broadcast %cst_58 : f32 to vector<304x128xf32>
    %c0_59 = arith.constant 0 : index
    %c0_60 = arith.constant 0 : index
    %101 = vector.load %arg12[%c0_59, %c0_60] : memref<304x128xf32, #tpu.memory_space<vmem>>, vector<304x128xf32>
    tpu.vector_store %arg12[%c0_59, %c0_60], %100 {strides = array<i32>} : memref<304x128xf32, #tpu.memory_space<vmem>>, vector<304x128xf32>,
    %c24_61 = arith.constant 24 : index
    %c0_62 = arith.constant 0 : index
    %102 = vector.load %arg12[%c24_61, %c0_62] : memref<304x128xf32, #tpu.memory_space<vmem>>, vector<256x128xf32>
    tpu.vector_store %arg12[%c24_61, %c0_62], %99 {strides = array<i32>} : memref<304x128xf32, #tpu.memory_space<vmem>>, vector<256x128xf32>,
    %103 = tpu.iota {dimensions = array<i32: 0>} : vector<256x1xi32>
    %c16_i32_63 = arith.constant 16 : i32
    %c0_i32_64 = arith.constant 0 : i32
    %104 = arith.cmpi eq, %c16_i32_63, %c0_i32_64 : i32
    %c1_i32_65 = arith.constant 1 : i32
    %105 = arith.select %104, %c1_i32_65, %c16_i32_63 : i32
    %106 = vector.broadcast %105 : i32 to vector<256x1xi32>
    %107 = arith.remsi %103, %106 : vector<256x1xi32>
    %c0_i32_66 = arith.constant 0 : i32
    %108 = vector.broadcast %c0_i32_66 : i32 to vector<256x1xi32>
    %109 = arith.cmpi ne, %107, %108 : vector<256x1xi32>
    %c0_i32_67 = arith.constant 0 : i32
    %110 = vector.broadcast %c0_i32_67 : i32 to vector<256x1xi32>
    %111 = arith.cmpi slt, %107, %110 : vector<256x1xi32>
    %c0_i32_68 = arith.constant 0 : i32
    %112 = arith.cmpi slt, %105, %c0_i32_68 : i32
    %113 = vector.broadcast %112 : i1 to vector<256x1xi1>
    %114 = vector.broadcast %113 : vector<256x1xi1> to vector<256x1xi1>
    %115 = arith.xori %111, %114 : vector<256x1xi1>
    %116 = arith.andi %115, %109 : vector<256x1xi1>
    %117 = vector.broadcast %105 : i32 to vector<256x1xi32>
    %118 = arith.addi %107, %117 : vector<256x1xi32>
    %119 = arith.select %116, %118, %107 : vector<256x1xi1>, vector<256x1xi32>
    %c1_i32_69 = arith.constant 1 : i32
    %120 = vector.broadcast %c1_i32_69 : i32 to vector<256x1xi32>
    %121 = arith.cmpi sge, %119, %120 : vector<256x1xi32>
    %c14_i32_70 = arith.constant 14 : i32
    %122 = vector.broadcast %c14_i32_70 : i32 to vector<256x1xi32>
    %123 = arith.cmpi sle, %119, %122 : vector<256x1xi32>
    %c0_71 = arith.constant 0 : index
    %c0_72 = arith.constant 0 : index
    %124 = vector.load %arg5[%c0_71, %c0_72] : memref<1x128xf32, #tpu.memory_space<vmem>>, vector<1x128xf32>
    %125 = vector.shape_cast %124 : vector<1x128xf32> to vector<1x128xf32>
    %126 = vector.broadcast %125 : vector<1x128xf32> to vector<256x128xf32>
    %c7_73 = arith.constant 7 : index
    %c0_74 = arith.constant 0 : index
    %127 = vector.load %arg12[%c7_73, %c0_74] : memref<304x128xf32, #tpu.memory_space<vmem>>, vector<256x128xf32>
    %cst_75 = arith.constant 0.000000e+00 : f32
    %128 = vector.shape_cast %121 : vector<256x1xi1> to vector<256x1xi1>
    %129 = vector.broadcast %128 : vector<256x1xi1> to vector<256x128xi1>
    %130 = vector.broadcast %cst_75 : f32 to vector<256x128xf32>
    %131 = arith.select %129, %127, %130 : vector<256x128xi1>, vector<256x128xf32>
    %c0_76 = arith.constant 0 : index
    %c0_77 = arith.constant 0 : index
    %c0_78 = arith.constant 0 : index
    %132 = vector.load %arg4[%c0_76, %c0_77, %c0_78] : memref<9x128x128xf32, #tpu.memory_space<vmem>>, vector<1x128x128xf32>
    %133 = vector.shape_cast %132 : vector<1x128x128xf32> to vector<128x128xf32>
    %cst_79 = arith.constant dense<0.000000e+00> : vector<256x128xf32>
    %134 = tpu.matmul %131, %133, %cst_79 {dimension_numbers = #tpu.dot_dimension_numbers<[1], [0], [0], [1], [0, 0, 1, 1], [], []>} : vector<256x128xf32>, vector<128x128xf32>, vector<256x128xf32> -> vector<256x128xf32>
    %135 = arith.addf %126, %134 : vector<256x128xf32>
    %c8_80 = arith.constant 8 : index
    %c0_81 = arith.constant 0 : index
    %136 = vector.load %arg12[%c8_80, %c0_81] : memref<304x128xf32, #tpu.memory_space<vmem>>, vector<256x128xf32>
    %c1_82 = arith.constant 1 : index
    %c0_83 = arith.constant 0 : index
    %c0_84 = arith.constant 0 : index
    %137 = vector.load %arg4[%c1_82, %c0_83, %c0_84] : memref<9x128x128xf32, #tpu.memory_space<vmem>>, vector<1x128x128xf32>
    %138 = vector.shape_cast %137 : vector<1x128x128xf32> to vector<128x128xf32>
    %cst_85 = arith.constant dense<0.000000e+00> : vector<256x128xf32>
    %139 = tpu.matmul %136, %138, %cst_85 {dimension_numbers = #tpu.dot_dimension_numbers<[1], [0], [0], [1], [0, 0, 1, 1], [], []>} : vector<256x128xf32>, vector<128x128xf32>, vector<256x128xf32> -> vector<256x128xf32>
    %140 = arith.addf %135, %139 : vector<256x128xf32>
    %c9_86 = arith.constant 9 : index
    %c0_87 = arith.constant 0 : index
    %141 = vector.load %arg12[%c9_86, %c0_87] : memref<304x128xf32, #tpu.memory_space<vmem>>, vector<256x128xf32>
    %cst_88 = arith.constant 0.000000e+00 : f32
    %142 = vector.shape_cast %123 : vector<256x1xi1> to vector<256x1xi1>
    %143 = vector.broadcast %142 : vector<256x1xi1> to vector<256x128xi1>
    %144 = vector.broadcast %cst_88 : f32 to vector<256x128xf32>
    %145 = arith.select %143, %141, %144 : vector<256x128xi1>, vector<256x128xf32>
    %c2_89 = arith.constant 2 : index
    %c0_90 = arith.constant 0 : index
    %c0_91 = arith.constant 0 : index
    %146 = vector.load %arg4[%c2_89, %c0_90, %c0_91] : memref<9x128x128xf32, #tpu.memory_space<vmem>>, vector<1x128x128xf32>
    %147 = vector.shape_cast %146 : vector<1x128x128xf32> to vector<128x128xf32>
    %cst_92 = arith.constant dense<0.000000e+00> : vector<256x128xf32>
    %148 = tpu.matmul %145, %147, %cst_92 {dimension_numbers = #tpu.dot_dimension_numbers<[1], [0], [0], [1], [0, 0, 1, 1], [], []>} : vector<256x128xf32>, vector<128x128xf32>, vector<256x128xf32> -> vector<256x128xf32>
    %149 = arith.addf %140, %148 : vector<256x128xf32>
    %c23_93 = arith.constant 23 : index
    %c0_94 = arith.constant 0 : index
    %150 = vector.load %arg12[%c23_93, %c0_94] : memref<304x128xf32, #tpu.memory_space<vmem>>, vector<256x128xf32>
    %cst_95 = arith.constant 0.000000e+00 : f32
    %151 = vector.shape_cast %121 : vector<256x1xi1> to vector<256x1xi1>
    %152 = vector.broadcast %151 : vector<256x1xi1> to vector<256x128xi1>
    %153 = vector.broadcast %cst_95 : f32 to vector<256x128xf32>
    %154 = arith.select %152, %150, %153 : vector<256x128xi1>, vector<256x128xf32>
    %c3_96 = arith.constant 3 : index
    %c0_97 = arith.constant 0 : index
    %c0_98 = arith.constant 0 : index
    %155 = vector.load %arg4[%c3_96, %c0_97, %c0_98] : memref<9x128x128xf32, #tpu.memory_space<vmem>>, vector<1x128x128xf32>
    %156 = vector.shape_cast %155 : vector<1x128x128xf32> to vector<128x128xf32>
    %cst_99 = arith.constant dense<0.000000e+00> : vector<256x128xf32>
    %157 = tpu.matmul %154, %156, %cst_99 {dimension_numbers = #tpu.dot_dimension_numbers<[1], [0], [0], [1], [0, 0, 1, 1], [], []>} : vector<256x128xf32>, vector<128x128xf32>, vector<256x128xf32> -> vector<256x128xf32>
    %158 = arith.addf %149, %157 : vector<256x128xf32>
    %c24_100 = arith.constant 24 : index
    %c0_101 = arith.constant 0 : index
    %159 = vector.load %arg12[%c24_100, %c0_101] : memref<304x128xf32, #tpu.memory_space<vmem>>, vector<256x128xf32>
    %c4_102 = arith.constant 4 : index
    %c0_103 = arith.constant 0 : index
    %c0_104 = arith.constant 0 : index
    %160 = vector.load %arg4[%c4_102, %c0_103, %c0_104] : memref<9x128x128xf32, #tpu.memory_space<vmem>>, vector<1x128x128xf32>
    %161 = vector.shape_cast %160 : vector<1x128x128xf32> to vector<128x128xf32>
    %cst_105 = arith.constant dense<0.000000e+00> : vector<256x128xf32>
    %162 = tpu.matmul %159, %161, %cst_105 {dimension_numbers = #tpu.dot_dimension_numbers<[1], [0], [0], [1], [0, 0, 1, 1], [], []>} : vector<256x128xf32>, vector<128x128xf32>, vector<256x128xf32> -> vector<256x128xf32>
    %163 = arith.addf %158, %162 : vector<256x128xf32>
    %c25_106 = arith.constant 25 : index
    %c0_107 = arith.constant 0 : index
    %164 = vector.load %arg12[%c25_106, %c0_107] : memref<304x128xf32, #tpu.memory_space<vmem>>, vector<256x128xf32>
    %cst_108 = arith.constant 0.000000e+00 : f32
    %165 = vector.shape_cast %123 : vector<256x1xi1> to vector<256x1xi1>
    %166 = vector.broadcast %165 : vector<256x1xi1> to vector<256x128xi1>
    %167 = vector.broadcast %cst_108 : f32 to vector<256x128xf32>
    %168 = arith.select %166, %164, %167 : vector<256x128xi1>, vector<256x128xf32>
    %c5_109 = arith.constant 5 : index
    %c0_110 = arith.constant 0 : index
    %c0_111 = arith.constant 0 : index
    %169 = vector.load %arg4[%c5_109, %c0_110, %c0_111] : memref<9x128x128xf32, #tpu.memory_space<vmem>>, vector<1x128x128xf32>
    %170 = vector.shape_cast %169 : vector<1x128x128xf32> to vector<128x128xf32>
    %cst_112 = arith.constant dense<0.000000e+00> : vector<256x128xf32>
    %171 = tpu.matmul %168, %170, %cst_112 {dimension_numbers = #tpu.dot_dimension_numbers<[1], [0], [0], [1], [0, 0, 1, 1], [], []>} : vector<256x128xf32>, vector<128x128xf32>, vector<256x128xf32> -> vector<256x128xf32>
    %172 = arith.addf %163, %171 : vector<256x128xf32>
    %c39_113 = arith.constant 39 : index
    %c0_114 = arith.constant 0 : index
    %173 = vector.load %arg12[%c39_113, %c0_114] : memref<304x128xf32, #tpu.memory_space<vmem>>, vector<256x128xf32>
    %cst_115 = arith.constant 0.000000e+00 : f32
    %174 = vector.shape_cast %121 : vector<256x1xi1> to vector<256x1xi1>
    %175 = vector.broadcast %174 : vector<256x1xi1> to vector<256x128xi1>
    %176 = vector.broadcast %cst_115 : f32 to vector<256x128xf32>
    %177 = arith.select %175, %173, %176 : vector<256x128xi1>, vector<256x128xf32>
    %c6_116 = arith.constant 6 : index
    %c0_117 = arith.constant 0 : index
    %c0_118 = arith.constant 0 : index
    %178 = vector.load %arg4[%c6_116, %c0_117, %c0_118] : memref<9x128x128xf32, #tpu.memory_space<vmem>>, vector<1x128x128xf32>
    %179 = vector.shape_cast %178 : vector<1x128x128xf32> to vector<128x128xf32>
    %cst_119 = arith.constant dense<0.000000e+00> : vector<256x128xf32>
    %180 = tpu.matmul %177, %179, %cst_119 {dimension_numbers = #tpu.dot_dimension_numbers<[1], [0], [0], [1], [0, 0, 1, 1], [], []>} : vector<256x128xf32>, vector<128x128xf32>, vector<256x128xf32> -> vector<256x128xf32>
    %181 = arith.addf %172, %180 : vector<256x128xf32>
    %c40_120 = arith.constant 40 : index
    %c0_121 = arith.constant 0 : index
    %182 = vector.load %arg12[%c40_120, %c0_121] : memref<304x128xf32, #tpu.memory_space<vmem>>, vector<256x128xf32>
    %c7_122 = arith.constant 7 : index
    %c0_123 = arith.constant 0 : index
    %c0_124 = arith.constant 0 : index
    %183 = vector.load %arg4[%c7_122, %c0_123, %c0_124] : memref<9x128x128xf32, #tpu.memory_space<vmem>>, vector<1x128x128xf32>
    %184 = vector.shape_cast %183 : vector<1x128x128xf32> to vector<128x128xf32>
    %cst_125 = arith.constant dense<0.000000e+00> : vector<256x128xf32>
    %185 = tpu.matmul %182, %184, %cst_125 {dimension_numbers = #tpu.dot_dimension_numbers<[1], [0], [0], [1], [0, 0, 1, 1], [], []>} : vector<256x128xf32>, vector<128x128xf32>, vector<256x128xf32> -> vector<256x128xf32>
    %186 = arith.addf %181, %185 : vector<256x128xf32>
    %c41_126 = arith.constant 41 : index
    %c0_127 = arith.constant 0 : index
    %187 = vector.load %arg12[%c41_126, %c0_127] : memref<304x128xf32, #tpu.memory_space<vmem>>, vector<256x128xf32>
    %cst_128 = arith.constant 0.000000e+00 : f32
    %188 = vector.shape_cast %123 : vector<256x1xi1> to vector<256x1xi1>
    %189 = vector.broadcast %188 : vector<256x1xi1> to vector<256x128xi1>
    %190 = vector.broadcast %cst_128 : f32 to vector<256x128xf32>
    %191 = arith.select %189, %187, %190 : vector<256x128xi1>, vector<256x128xf32>
    %c8_129 = arith.constant 8 : index
    %c0_130 = arith.constant 0 : index
    %c0_131 = arith.constant 0 : index
    %192 = vector.load %arg4[%c8_129, %c0_130, %c0_131] : memref<9x128x128xf32, #tpu.memory_space<vmem>>, vector<1x128x128xf32>
    %193 = vector.shape_cast %192 : vector<1x128x128xf32> to vector<128x128xf32>
    %cst_132 = arith.constant dense<0.000000e+00> : vector<256x128xf32>
    %194 = tpu.matmul %191, %193, %cst_132 {dimension_numbers = #tpu.dot_dimension_numbers<[1], [0], [0], [1], [0, 0, 1, 1], [], []>} : vector<256x128xf32>, vector<128x128xf32>, vector<256x128xf32> -> vector<256x128xf32>
    %195 = arith.addf %186, %194 : vector<256x128xf32>
    %cst_133 = arith.constant dense<0.000000e+00> : vector<128xf32>
    %196 = vector.multi_reduction <add>, %195, %cst_133 [0] : vector<256x128xf32> to vector<128xf32>
    %197 = vector.shape_cast %196 : vector<128xf32> to vector<1x128xf32>
    %cst_134 = arith.constant 2.560000e+02 : f32
    %198 = vector.broadcast %cst_134 : f32 to vector<1x128xf32>
    %199 = arith.divf %197, %198 : vector<1x128xf32>
    %c0_135 = arith.constant 0 : index
    %c0_136 = arith.constant 0 : index
    %200 = vector.load %arg6[%c0_135, %c0_136] : memref<128x8xf32, #tpu.memory_space<vmem>>, vector<128x8xf32>
    %cst_137 = arith.constant dense<0.000000e+00> : vector<1x8xf32>
    %201 = tpu.matmul %199, %200, %cst_137 {dimension_numbers = #tpu.dot_dimension_numbers<[1], [0], [0], [1], [0, 0, 1, 1], [], []>} : vector<1x128xf32>, vector<128x8xf32>, vector<1x8xf32> -> vector<1x8xf32>
    %c0_138 = arith.constant 0 : index
    %c0_139 = arith.constant 0 : index
    %202 = vector.load %arg7[%c0_138, %c0_139] : memref<1x8xf32, #tpu.memory_space<vmem>>, vector<1x8xf32>
    %203 = arith.addf %201, %202 : vector<1x8xf32>
    %cst_140 = arith.constant 0.000000e+00 : f32
    %204 = vector.broadcast %cst_140 : f32 to vector<1x8xf32>
    %205 = arith.maximumf %203, %204 : vector<1x8xf32>
    %c0_141 = arith.constant 0 : index
    %c0_142 = arith.constant 0 : index
    %206 = vector.load %arg8[%c0_141, %c0_142] : memref<8x128xf32, #tpu.memory_space<vmem>>, vector<8x128xf32>
    %cst_143 = arith.constant dense<0.000000e+00> : vector<1x128xf32>
    %207 = tpu.matmul %205, %206, %cst_143 {dimension_numbers = #tpu.dot_dimension_numbers<[1], [0], [0], [1], [0, 0, 1, 1], [], []>} : vector<1x8xf32>, vector<8x128xf32>, vector<1x128xf32> -> vector<1x128xf32>
    %c0_144 = arith.constant 0 : index
    %c0_145 = arith.constant 0 : index
    %208 = vector.load %arg9[%c0_144, %c0_145] : memref<1x128xf32, #tpu.memory_space<vmem>>, vector<1x128xf32>
    %209 = arith.addf %207, %208 : vector<1x128xf32>
    %cst_146 = arith.constant 0.000000e+00 : f32
    %210 = vector.broadcast %cst_146 : f32 to vector<1x128xf32>
    %211 = arith.subf %210, %209 : vector<1x128xf32>
    %212 = math.exp %211 : vector<1x128xf32>
    %cst_147 = arith.constant 1.000000e+00 : f32
    %213 = vector.broadcast %cst_147 : f32 to vector<1x128xf32>
    %214 = arith.addf %213, %212 : vector<1x128xf32>
    %cst_148 = arith.constant 1.000000e+00 : f32
    %215 = vector.broadcast %cst_148 : f32 to vector<1x128xf32>
    %216 = arith.divf %215, %214 : vector<1x128xf32>
    %217 = vector.broadcast %216 : vector<1x128xf32> to vector<256x128xf32>
    %218 = arith.mulf %195, %217 : vector<256x128xf32>
    %c0_149 = arith.constant 0 : index
    %c0_150 = arith.constant 0 : index
    %c0_151 = arith.constant 0 : index
    %219 = vector.load %arg1[%c0_149, %c0_150, %c0_151] : memref<1x256x128xf32, #tpu.memory_space<vmem>>, vector<1x256x128xf32>
    %220 = vector.shape_cast %219 : vector<1x256x128xf32> to vector<256x128xf32>
    %221 = arith.addf %218, %220 : vector<256x128xf32>
    %c0_152 = arith.constant 0 : index
    %c0_153 = arith.constant 0 : index
    %c0_154 = arith.constant 0 : index
    %222 = vector.load %arg10[%c0_152, %c0_153, %c0_154] : memref<1x256x128xf32, #tpu.memory_space<vmem>>, vector<1x256x128xf32>
    %223 = vector.shape_cast %222 : vector<1x256x128xf32> to vector<256x128xf32>
    %224 = vector.shape_cast %221 : vector<256x128xf32> to vector<1x256x128xf32>
    tpu.vector_store %arg10[%c0_152, %c0_153, %c0_154], %224 {strides = array<i32>} : memref<1x256x128xf32, #tpu.memory_space<vmem>>, vector<1x256x128xf32>,
    return
  }
  func.func @transform_0(%arg0: i32) -> (i32, i32, i32) {
    %c0_i32 = arith.constant 0 : i32
    %c0_i32_0 = arith.constant 0 : i32
    %c0_i32_1 = arith.constant 0 : i32
    return %arg0, %c0_i32, %c0_i32_0 : i32, i32, i32
  }
  func.func @transform_1(%arg0: i32) -> (i32, i32, i32) {
    %c0_i32 = arith.constant 0 : i32
    %c0_i32_0 = arith.constant 0 : i32
    %c0_i32_1 = arith.constant 0 : i32
    %c0_i32_2 = arith.constant 0 : i32
    return %c0_i32, %c0_i32_0, %c0_i32_1 : i32, i32, i32
  }
  func.func @transform_2(%arg0: i32) -> (i32, i32) {
    %c0_i32 = arith.constant 0 : i32
    %c0_i32_0 = arith.constant 0 : i32
    %c0_i32_1 = arith.constant 0 : i32
    return %c0_i32, %c0_i32_0 : i32, i32
  }
  func.func @transform_3(%arg0: i32) -> (i32, i32, i32) {
    %c0_i32 = arith.constant 0 : i32
    %c0_i32_0 = arith.constant 0 : i32
    %c0_i32_1 = arith.constant 0 : i32
    %c0_i32_2 = arith.constant 0 : i32
    return %c0_i32, %c0_i32_0, %c0_i32_1 : i32, i32, i32
  }
  func.func @transform_4(%arg0: i32) -> (i32, i32) {
    %c0_i32 = arith.constant 0 : i32
    %c0_i32_0 = arith.constant 0 : i32
    %c0_i32_1 = arith.constant 0 : i32
    return %c0_i32, %c0_i32_0 : i32, i32
  }
  func.func @transform_5(%arg0: i32) -> (i32, i32) {
    %c0_i32 = arith.constant 0 : i32
    %c0_i32_0 = arith.constant 0 : i32
    %c0_i32_1 = arith.constant 0 : i32
    return %c0_i32, %c0_i32_0 : i32, i32
  }
  func.func @transform_6(%arg0: i32) -> (i32, i32) {
    %c0_i32 = arith.constant 0 : i32
    %c0_i32_0 = arith.constant 0 : i32
    %c0_i32_1 = arith.constant 0 : i32
    return %c0_i32, %c0_i32_0 : i32, i32
  }
  func.func @transform_7(%arg0: i32) -> (i32, i32) {
    %c0_i32 = arith.constant 0 : i32
    %c0_i32_0 = arith.constant 0 : i32
    %c0_i32_1 = arith.constant 0 : i32
    return %c0_i32, %c0_i32_0 : i32, i32
  }
  func.func @transform_8(%arg0: i32) -> (i32, i32) {
    %c0_i32 = arith.constant 0 : i32
    %c0_i32_0 = arith.constant 0 : i32
    %c0_i32_1 = arith.constant 0 : i32
    return %c0_i32, %c0_i32_0 : i32, i32
  }
  func.func @transform_9(%arg0: i32) -> (i32, i32, i32) {
    %c0_i32 = arith.constant 0 : i32
    %c0_i32_0 = arith.constant 0 : i32
    %c0_i32_1 = arith.constant 0 : i32
    return %arg0, %c0_i32, %c0_i32_0 : i32, i32, i32
  }
}

</mosaic_0001>

<llo_original>
// kernel: tpu_custom_call.1
$region0: #{tpu_custom_call.1}
  #allocation0 [shape = 'u32[]', space=smem, size = 0x4, offset = 0x4, fixed_abs, tag = 'smem constant byte address 0x4 - core index']
  #allocation1 [shape = 'u32[72,128]{1,0:T(1,128)}', space=vmem, size = 0x9000, scoped, tag = 'internal scratch']
  #allocation2 [shape = 'f32[304,128]{1,0:T(8,128)}', space=vmem, size = 0x26000, scoped, tag = 'scratch operand']
  #allocation3 [shape = 'f32[304,128]{1,0:T(8,128)}', space=vmem, size = 0x26000, scoped, tag = 'scratch operand']
  %s0 = inlined_call_operand.hbm [shape: f32[2,256,128], index: 0, kind: input, shape index: {}]
  %s1 = inlined_call_operand.hbm [shape: f32[9,128,128], index: 1, kind: input, shape index: {}]
  %s2 = inlined_call_operand.vmem [shape: f32[1,128], index: 2, kind: input, shape index: {}]
  %s3 = inlined_call_operand.hbm [shape: f32[9,128,128], index: 3, kind: input, shape index: {}]
  %s4 = inlined_call_operand.vmem [shape: f32[1,128], index: 4, kind: input, shape index: {}]
  %s5 = inlined_call_operand.vmem [shape: f32[128,8], index: 5, kind: input, shape index: {}]
  %s6 = inlined_call_operand.vmem [shape: f32[1,8], index: 6, kind: input, shape index: {}]
  %s7 = inlined_call_operand.vmem [shape: f32[8,128], index: 7, kind: input, shape index: {}]
  %s8 = inlined_call_operand.vmem [shape: f32[1,128], index: 8, kind: input, shape index: {}]
  %s9 = inlined_call_operand.hbm [shape: f32[2,256,128], index: 9, kind: output, shape index: {}]
  %s10 = sld [smem:[#allocation0]]
  $region81: #{tpu_custom_call.1} parent=0
    _
  %s12 = ssub.s32 1, %s10
  %s13 = scalar_select 0, %s12, %s10
  $region1: #{tpu_custom_call.1} parent=0
    #allocation4 [shape = 'u8[262144]{0}', space=vmem, size = 0x40000, scoped, tag = 'input window, operand 0']
    #allocation5 [shape = 's32[2]{0}', space=sflag, size = 0x8, scoped, tag = 'scoped memory for tpu_custom_call.1']
    #allocation6 [shape = 's32[2]{0}', space=sflag, size = 0x8, scoped, tag = 'scoped memory for tpu_custom_call.1']
    #allocation7 [shape = 'u8[589824]{0}', space=vmem, size = 0x90000, scoped, tag = 'input window, operand 1, single buffered']
    #allocation8 [shape = 's32[1]{0}', space=sflag, size = 0x4, scoped, tag = 'scoped memory for tpu_custom_call.1']
    #allocation9 [shape = 'u8[589824]{0}', space=vmem, size = 0x90000, scoped, tag = 'input window, operand 3, single buffered']
    #allocation10 [shape = 'u8[262144]{0}', space=vmem, size = 0x40000, scoped, tag = 'output window, operand 0']
    %14 = vsyncpa [#allocation5], 0
    %s15 = scalar_lea.sflag [#allocation5], 1
    %16 = vsyncpa %s15, 0
    %17 = vsyncpa [#allocation8], 0
    %18 = vsyncpa [#allocation6], 0
    %s19 = scalar_lea.sflag [#allocation6], 1
    %20 = vsyncpa %s19, 0
    loop: start=0, step=1, limit=4
    $region2: #{tpu_custom_call.1} parent=1 // loop_pre_header
      _
    $region3: #{tpu_custom_call.1} parent=1 // loop_header
      %s22 = sphi 0, %s26
      %p23 = scmp.ge.s32.totalorder %s22, 4
      %s32 = sphi 0, %s34
      %s35 = sphi 0, %s32
      %s36 = sphi 0, %s35
      %s52 = sphi 0, %s36
      %s56 = sphi 0, %s56
      %s58 = sphi 0, %s56
      %s59 = sphi 0, %s58
      %s73 = sphi 0, %s59
      %s77 = sphi 0, %s77
      %s79 = sphi 0, %s77
      %s80 = sphi 0, %s79
      %s94 = sphi 0, %s80
      %s98 = sphi 0, %s98
      %s100 = sphi 0, %s98
      %s101 = sphi 0, %s100
      %s115 = sphi 0, %s101
      %s119 = sphi 0, %s119
      %s121 = sphi 0, %s119
      %s122 = sphi 0, %s121
      %s136 = sphi 0, %s122
      %s140 = sphi 0, %s140
      %s142 = sphi 0, %s140
      %s143 = sphi 0, %s142
      %s157 = sphi 0, %s143
      %s161 = sphi 0, %s161
      %s163 = sphi 0, %s161
      %s164 = sphi 0, %s163
      %s178 = sphi 0, %s164
      %s182 = sphi 0, %s182
      %s184 = sphi 0, %s182
      %s185 = sphi 0, %s184
      %s199 = sphi 0, %s185
      %s203 = sphi 0, %s203
      %s205 = sphi 0, %s203
      %s206 = sphi 0, %s205
      %s220 = sphi 0, %s206
      %s226 = sphi 0, %s228
      %s229 = sphi 0, %s226
      %s230 = sphi 0, %s229
      %s246 = sphi 0, %s230
    $region4: #{tpu_custom_call.1} parent=1 // loop_header_branch
      %25 = sbr.rel (%p23) target = $region8
    $region5: #{tpu_custom_call.1} parent=1 // loop_body
      %s27 = ssub.s32 %s22, 1
      %s28 = ssub.s32 %s22, 2
      %s29 = sadd.s32 %s22, 1
      %s30 = ssub.s32 %s22, %s29
      %p31 = scmp.eq.s32.totalorder %s30, 0
      %s33 = sadd.s32 %s32, 1
      %s34 = scalar_select %p31, %s32, %s33
      %p37 = pneg %p31
      %p38 = scmp.eq.s32.totalorder %s22, 1
      %p39 = por %p37, %p38
      %p40 = scmp.ne.s32.totalorder %s32, %s35
      %p41 = scmp.eq.s32.totalorder %s22, 0
      %p42 = por %p40, %p41
      %p43 = scmp.ne.s32.totalorder %s32, %s35
      %p44 = scmp.eq.s32.totalorder %s27, 1
      %p45 = por %p43, %p44
      %p46 = scmp.ne.s32.totalorder %s35, %s36
      %p47 = scmp.eq.s32.totalorder %s27, 0
      %p48 = por %p46, %p47
      %p49 = scmp.ne.s32.totalorder %s35, %s36
      %p50 = scmp.eq.s32.totalorder %s28, 1
      %p51 = por %p49, %p50
      %p53 = scmp.ne.s32.totalorder %s36, %s52
      %p54 = scmp.eq.s32.totalorder %s28, 0
      %p55 = por %p53, %p54
      %s57 = sadd.s32 %s56, 1
      %p60 = scmp.eq.s32.totalorder %s22, 1
      %p61 = scmp.ne.s32.totalorder %s56, %s58
      %p62 = scmp.eq.s32.totalorder %s22, 0
      %p63 = por %p61, %p62
      %p64 = scmp.ne.s32.totalorder %s56, %s58
      %p65 = scmp.eq.s32.totalorder %s27, 1
      %p66 = por %p64, %p65
      %p67 = scmp.ne.s32.totalorder %s58, %s59
      %p68 = scmp.eq.s32.totalorder %s27, 0
      %p69 = por %p67, %p68
      %p70 = scmp.ne.s32.totalorder %s58, %s59
      %p71 = scmp.eq.s32.totalorder %s28, 1
      %p72 = por %p70, %p71
      %p74 = scmp.ne.s32.totalorder %s59, %s73
      %p75 = scmp.eq.s32.totalorder %s28, 0
      %p76 = por %p74, %p75
      %s78 = sadd.s32 %s77, 1
      %p81 = scmp.eq.s32.totalorder %s22, 1
      %p82 = scmp.ne.s32.totalorder %s77, %s79
      %p83 = scmp.eq.s32.totalorder %s22, 0
      %p84 = por %p82, %p83
      %p85 = scmp.ne.s32.totalorder %s77, %s79
      %p86 = scmp.eq.s32.totalorder %s27, 1
      %p87 = por %p85, %p86
      %p88 = scmp.ne.s32.totalorder %s79, %s80
      %p89 = scmp.eq.s32.totalorder %s27, 0
      %p90 = por %p88, %p89
      %p91 = scmp.ne.s32.totalorder %s79, %s80
      %p92 = scmp.eq.s32.totalorder %s28, 1
      %p93 = por %p91, %p92
      %p95 = scmp.ne.s32.totalorder %s80, %s94
      %p96 = scmp.eq.s32.totalorder %s28, 0
      %p97 = por %p95, %p96
      %s99 = sadd.s32 %s98, 1
      %p102 = scmp.eq.s32.totalorder %s22, 1
      %p103 = scmp.ne.s32.totalorder %s98, %s100
      %p104 = scmp.eq.s32.totalorder %s22, 0
      %p105 = por %p103, %p104
      %p106 = scmp.ne.s32.totalorder %s98, %s100
      %p107 = scmp.eq.s32.totalorder %s27, 1
      %p108 = por %p106, %p107
      %p109 = scmp.ne.s32.totalorder %s100, %s101
      %p110 = scmp.eq.s32.totalorder %s27, 0
      %p111 = por %p109, %p110
      %p112 = scmp.ne.s32.totalorder %s100, %s101
      %p113 = scmp.eq.s32.totalorder %s28, 1
      %p114 = por %p112, %p113
      %p116 = scmp.ne.s32.totalorder %s101, %s115
      %p117 = scmp.eq.s32.totalorder %s28, 0
      %p118 = por %p116, %p117
      %s120 = sadd.s32 %s119, 1
      %p123 = scmp.eq.s32.totalorder %s22, 1
      %p124 = scmp.ne.s32.totalorder %s119, %s121
      %p125 = scmp.eq.s32.totalorder %s22, 0
      %p126 = por %p124, %p125
      %p127 = scmp.ne.s32.totalorder %s119, %s121
      %p128 = scmp.eq.s32.totalorder %s27, 1
      %p129 = por %p127, %p128
      %p130 = scmp.ne.s32.totalorder %s121, %s122
      %p131 = scmp.eq.s32.totalorder %s27, 0
      %p132 = por %p130, %p131
      %p133 = scmp.ne.s32.totalorder %s121, %s122
      %p134 = scmp.eq.s32.totalorder %s28, 1
      %p135 = por %p133, %p134
      %p137 = scmp.ne.s32.totalorder %s122, %s136
      %p138 = scmp.eq.s32.totalorder %s28, 0
      %p139 = por %p137, %p138
      %s141 = sadd.s32 %s140, 1
      %p144 = scmp.eq.s32.totalorder %s22, 1
      %p145 = scmp.ne.s32.totalorder %s140, %s142
      %p146 = scmp.eq.s32.totalorder %s22, 0
      %p147 = por %p145, %p146
      %p148 = scmp.ne.s32.totalorder %s140, %s142
      %p149 = scmp.eq.s32.totalorder %s27, 1
      %p150 = por %p148, %p149
      %p151 = scmp.ne.s32.totalorder %s142, %s143
      %p152 = scmp.eq.s32.totalorder %s27, 0
      %p153 = por %p151, %p152
      %p154 = scmp.ne.s32.totalorder %s142, %s143
      %p155 = scmp.eq.s32.totalorder %s28, 1
      %p156 = por %p154, %p155
      %p158 = scmp.ne.s32.totalorder %s143, %s157
      %p159 = scmp.eq.s32.totalorder %s28, 0
      %p160 = por %p158, %p159
      %s162 = sadd.s32 %s161, 1
      %p165 = scmp.eq.s32.totalorder %s22, 1
      %p166 = scmp.ne.s32.totalorder %s161, %s163
      %p167 = scmp.eq.s32.totalorder %s22, 0
      %p168 = por %p166, %p167
      %p169 = scmp.ne.s32.totalorder %s161, %s163
      %p170 = scmp.eq.s32.totalorder %s27, 1
      %p171 = por %p169, %p170
      %p172 = scmp.ne.s32.totalorder %s163, %s164
      %p173 = scmp.eq.s32.totalorder %s27, 0
      %p174 = por %p172, %p173
      %p175 = scmp.ne.s32.totalorder %s163, %s164
      %p176 = scmp.eq.s32.totalorder %s28, 1
      %p177 = por %p175, %p176
      %p179 = scmp.ne.s32.totalorder %s164, %s178
      %p180 = scmp.eq.s32.totalorder %s28, 0
      %p181 = por %p179, %p180
      %s183 = sadd.s32 %s182, 1
      %p186 = scmp.eq.s32.totalorder %s22, 1
      %p187 = scmp.ne.s32.totalorder %s182, %s184
      %p188 = scmp.eq.s32.totalorder %s22, 0
      %p189 = por %p187, %p188
      %p190 = scmp.ne.s32.totalorder %s182, %s184
      %p191 = scmp.eq.s32.totalorder %s27, 1
      %p192 = por %p190, %p191
      %p193 = scmp.ne.s32.totalorder %s184, %s185
      %p194 = scmp.eq.s32.totalorder %s27, 0
      %p195 = por %p193, %p194
      %p196 = scmp.ne.s32.totalorder %s184, %s185
      %p197 = scmp.eq.s32.totalorder %s28, 1
      %p198 = por %p196, %p197
      %p200 = scmp.ne.s32.totalorder %s185, %s199
      %p201 = scmp.eq.s32.totalorder %s28, 0
      %p202 = por %p200, %p201
      %s204 = sadd.s32 %s203, 1
      %p207 = scmp.eq.s32.totalorder %s22, 1
      %p208 = scmp.ne.s32.totalorder %s203, %s205
      %p209 = scmp.eq.s32.totalorder %s22, 0
      %p210 = por %p208, %p209
      %p211 = scmp.ne.s32.totalorder %s203, %s205
      %p212 = scmp.eq.s32.totalorder %s27, 1
      %p213 = por %p211, %p212
      %p214 = scmp.ne.s32.totalorder %s205, %s206
      %p215 = scmp.eq.s32.totalorder %s27, 0
      %p216 = por %p214, %p215
      %p217 = scmp.ne.s32.totalorder %s205, %s206
      %p218 = scmp.eq.s32.totalorder %s28, 1
      %p219 = por %p217, %p218
      %p221 = scmp.ne.s32.totalorder %s206, %s220
      %p222 = scmp.eq.s32.totalorder %s28, 0
      %p223 = por %p221, %p222
      %s224 = ssub.s32 %s22, %s29
      %p225 = scmp.eq.s32.totalorder %s224, 0
      %s227 = sadd.s32 %s226, 1
      %s228 = scalar_select %p225, %s226, %s227
      %p231 = pneg %p225
      %p232 = scmp.eq.s32.totalorder %s22, 1
      %p233 = por %p231, %p232
      %p234 = scmp.ne.s32.totalorder %s226, %s229
      %p235 = scmp.eq.s32.totalorder %s22, 0
      %p236 = por %p234, %p235
      %p237 = scmp.ne.s32.totalorder %s226, %s229
      %p238 = scmp.eq.s32.totalorder %s27, 1
      %p239 = por %p237, %p238
      %p240 = scmp.ne.s32.totalorder %s229, %s230
      %p241 = scmp.eq.s32.totalorder %s27, 0
      %p242 = por %p240, %p241
      %p243 = scmp.ne.s32.totalorder %s229, %s230
      %p244 = scmp.eq.s32.totalorder %s28, 1
      %p245 = por %p243, %p244
      %p247 = scmp.ne.s32.totalorder %s230, %s246
      %p248 = scmp.eq.s32.totalorder %s28, 0
      %p249 = por %p247, %p248
      %p250 = scmp.le.s32.totalorder 1, %s22
      %p251 = scmp.lt.s32.totalorder %s22, 3
      %p252 = pnand %p250, %p251
      %p253 = pneg %p252
      // Predicated region
      $region9: #{tpu_custom_call.1} parent=5 // pred_check
        _
      $region10: #{tpu_custom_call.1} parent=5 // pred_check_branch
        %255 = sbr.rel (%p252) target = $region12
      $region11: #{tpu_custom_call.1} parent=5 // pred_region
        %s256 = ssub.s32 %s22, 1
        // Predicated region
        $region13: #{tpu_custom_call.1} parent=11 // pred_check
          %p257 = pneg %p69
        $region14: #{tpu_custom_call.1} parent=11 // pred_check_branch
          %259 = sbr.rel (%p257) target = $region16
        $region15: #{tpu_custom_call.1} parent=11 // pred_region
          %261 = vsyncadd [#allocation8], 0
          %s262 = sshll.u32 %s1, 4
          %s263 = int_to_ptr.hbm [resolvable:$true] %s262
          %s264 = sshll.u32 [#allocation7], 4
          %s265 = int_to_ptr.vmem [resolvable:$true] %s264
          %270 = dma.hbm_to_vmem [thread:$0]  %s263, 18432, %s265, [#allocation8], 128, 128, 8
        $region16: #{tpu_custom_call.1} parent=11 // pred_fallthru
          _
        // Predicated region
        $region17: #{tpu_custom_call.1} parent=11 // pred_check
          %p271 = pneg %p90
        $region18: #{tpu_custom_call.1} parent=11 // pred_check_branch
          %273 = sbr.rel (%p271) target = $region20
        $region19: #{tpu_custom_call.1} parent=11 // pred_region
          _
        $region20: #{tpu_custom_call.1} parent=11 // pred_fallthru
          _
        // Predicated region
        $region21: #{tpu_custom_call.1} parent=11 // pred_check
          %p274 = pneg %p111
        $region22: #{tpu_custom_call.1} parent=11 // pred_check_branch
          %276 = sbr.rel (%p274) target = $region24
        $region23: #{tpu_custom_call.1} parent=11 // pred_region
          %278 = vsyncadd [#allocation8], 0
          %s279 = sshll.u32 %s3, 4
          %s280 = int_to_ptr.hbm [resolvable:$true] %s279
          %s281 = sshll.u32 [#allocation9], 4
          %s282 = int_to_ptr.vmem [resolvable:$true] %s281
          %287 = dma.hbm_to_vmem [thread:$0]  %s280, 18432, %s282, [#allocation8], 128, 128, 8
        $region24: #{tpu_custom_call.1} parent=11 // pred_fallthru
          _
        // Predicated region
        $region25: #{tpu_custom_call.1} parent=11 // pred_check
          %p288 = pneg %p132
        $region26: #{tpu_custom_call.1} parent=11 // pred_check_branch
          %290 = sbr.rel (%p288) target = $region28
        $region27: #{tpu_custom_call.1} parent=11 // pred_region
          _
        $region28: #{tpu_custom_call.1} parent=11 // pred_fallthru
          _
        // Predicated region
        $region29: #{tpu_custom_call.1} parent=11 // pred_check
          %p291 = pneg %p153
        $region30: #{tpu_custom_call.1} parent=11 // pred_check_branch
          %293 = sbr.rel (%p291) target = $region32
        $region31: #{tpu_custom_call.1} parent=11 // pred_region
          _
        $region32: #{tpu_custom_call.1} parent=11 // pred_fallthru
          _
        // Predicated region
        $region33: #{tpu_custom_call.1} parent=11 // pred_check
          %p294 = pneg %p174
        $region34: #{tpu_custom_call.1} parent=11 // pred_check_branch
          %296 = sbr.rel (%p294) target = $region36
        $region35: #{tpu_custom_call.1} parent=11 // pred_region
          _
        $region36: #{tpu_custom_call.1} parent=11 // pred_fallthru
          _
        // Predicated region
        $region37: #{tpu_custom_call.1} parent=11 // pred_check
          %p297 = pneg %p195
        $region38: #{tpu_custom_call.1} parent=11 // pred_check_branch
          %299 = sbr.rel (%p297) target = $region40
        $region39: #{tpu_custom_call.1} parent=11 // pred_region
          _
        $region40: #{tpu_custom_call.1} parent=11 // pred_fallthru
          _
        // Predicated region
        $region41: #{tpu_custom_call.1} parent=11 // pred_check
          %p300 = pneg %p216
        $region42: #{tpu_custom_call.1} parent=11 // pred_check_branch
          %302 = sbr.rel (%p300) target = $region44
        $region43: #{tpu_custom_call.1} parent=11 // pred_region
          _
        $region44: #{tpu_custom_call.1} parent=11 // pred_fallthru
          _
      $region12: #{tpu_custom_call.1} parent=5 // pred_fallthru
        _
      %p303 = scmp.lt.s32.totalorder %s22, 2
      // Predicated region
      $region45: #{tpu_custom_call.1} parent=5 // pred_check
        %p304 = pneg %p303
      $region46: #{tpu_custom_call.1} parent=5 // pred_check_branch
        %306 = sbr.rel (%p304) target = $region48
      $region47: #{tpu_custom_call.1} parent=5 // pred_region
        // Predicated region
        $region49: #{tpu_custom_call.1} parent=47 // pred_check
          %p307 = pneg %p42
        $region50: #{tpu_custom_call.1} parent=47 // pred_check_branch
          %309 = sbr.rel (%p307) target = $region52
        $region51: #{tpu_custom_call.1} parent=47 // pred_region
          %s310 = sand.u32 %s32, 1
          %s311 = scalar_lea.sflag [#allocation5], %s310
          %s312 = sand.u32 %s32, 1
          %s313 = smul.addr %s312, 256
          %s314 = scalar_lea.vmem [#allocation4], %s313
          %316 = vsyncadd %s311, 0
          %s317 = smul.addr %s22, 32
          %s318 = smul.addr %s317, 8
          %s319 = scalar_lea.hbm %s0, %s318
          %s320 = sshll.u32 %s319, 4
          %s321 = int_to_ptr.hbm [resolvable:$true] %s320
          %s322 = sshll.u32 %s314, 4
          %s323 = int_to_ptr.vmem [resolvable:$true] %s322
          %328 = dma.hbm_to_vmem [thread:$0]  %s321, 4096, %s323, %s311, 128, 128, 8
        $region52: #{tpu_custom_call.1} parent=47 // pred_fallthru
          _
      $region48: #{tpu_custom_call.1} parent=5 // pred_fallthru
        _
      %p329 = scmp.le.s32.totalorder 1, %s22
      %p330 = scmp.lt.s32.totalorder %s22, 3
      %p331 = pnand %p329, %p330
      %p332 = pneg %p331
      // Predicated region
      $region53: #{tpu_custom_call.1} parent=5 // pred_check
        _
      $region54: #{tpu_custom_call.1} parent=5 // pred_check_branch
        %334 = sbr.rel (%p331) target = $region56
      $region55: #{tpu_custom_call.1} parent=5 // pred_region
        %s335 = ssub.s32 %s22, 1
        %s336 = sand.u32 %s35, 1
        %s337 = scalar_lea.sflag [#allocation5], %s336
        %s338 = sand.u32 %s35, 1
        %s339 = smul.addr %s338, 256
        %s340 = scalar_lea.vmem [#allocation4], %s339
        // Predicated region
        $region57: #{tpu_custom_call.1} parent=55 // pred_check
          %p341 = pneg %p48
        $region58: #{tpu_custom_call.1} parent=55 // pred_check_branch
          %343 = sbr.rel (%p341) target = $region60
        $region59: #{tpu_custom_call.1} parent=55 // pred_region
          %345 = dma.done %s337, 4096
        $region60: #{tpu_custom_call.1} parent=55 // pred_fallthru
          _
        // Predicated region
        $region61: #{tpu_custom_call.1} parent=55 // pred_check
          %p346 = pneg %p69
        $region62: #{tpu_custom_call.1} parent=55 // pred_check_branch
          %348 = sbr.rel (%p346) target = $region64
        $region63: #{tpu_custom_call.1} parent=55 // pred_region
          %350 = dma.done [#allocation8], 18432
        $region64: #{tpu_custom_call.1} parent=55 // pred_fallthru
          _
        // Predicated region
        $region65: #{tpu_custom_call.1} parent=55 // pred_check
          %p351 = pneg %p111
        $region66: #{tpu_custom_call.1} parent=55 // pred_check_branch
          %353 = sbr.rel (%p351) target = $region68
        $region67: #{tpu_custom_call.1} parent=55 // pred_region
          %355 = dma.done [#allocation8], 18432
        $region68: #{tpu_custom_call.1} parent=55 // pred_fallthru
          _
        %s356 = sand.u32 %s35, 1
        %s357 = scalar_lea.sflag [#allocation5], %s356
        %s358 = sand.u32 %s35, 1
        %s359 = smul.addr %s358, 256
        %s360 = scalar_lea.vmem [#allocation4], %s359
        %p361 = pneg %p48
        %p362 = pneg %p45
        %p363 = pneg %p69
        %p364 = pneg %p66
        %p365 = pneg %p90
        %p366 = pneg %p87
        %p367 = pneg %p111
        %p368 = pneg %p108
        %p369 = pneg %p132
        %p370 = pneg %p129
        %p371 = pneg %p153
        %p372 = pneg %p150
        %p373 = pneg %p174
        %p374 = pneg %p171
        %p375 = pneg %p195
        %p376 = pneg %p192
        %p377 = pneg %p216
        %p378 = pneg %p213
        %p379 = pneg %p242
        %p380 = pneg %p239
        %s381 = sand.u32 %s229, 1
        %s382 = scalar_lea.sflag [#allocation6], %s381
        %s383 = sand.u32 %s229, 1
        %s384 = smul.addr %s383, 256
        %s385 = scalar_lea.vmem [#allocation10], %s384
        %386 = vst [vmem:[#allocation2] sm:$0xff] 0.0
        %387 = vst [vmem:[#allocation2 + $0x8] sm:$0xff] 0.0
        %388 = vst [vmem:[#allocation2 + $0x10] sm:$0xff] 0.0
        %389 = vst [vmem:[#allocation2 + $0x18] sm:$0xff] 0.0
        %390 = vst [vmem:[#allocation2 + $0x20] sm:$0xff] 0.0
        %391 = vst [vmem:[#allocation2 + $0x28] sm:$0xff] 0.0
        %392 = vst [vmem:[#allocation2 + $0x30] sm:$0xff] 0.0
        %393 = vst [vmem:[#allocation2 + $0x38] sm:$0xff] 0.0
        %394 = vst [vmem:[#allocation2 + $0x40] sm:$0xff] 0.0
        %395 = vst [vmem:[#allocation2 + $0x48] sm:$0xff] 0.0
        %396 = vst [vmem:[#allocation2 + $0x50] sm:$0xff] 0.0
        %397 = vst [vmem:[#allocation2 + $0x58] sm:$0xff] 0.0
        %398 = vst [vmem:[#allocation2 + $0x60] sm:$0xff] 0.0
        %399 = vst [vmem:[#allocation2 + $0x68] sm:$0xff] 0.0
        %400 = vst [vmem:[#allocation2 + $0x70] sm:$0xff] 0.0
        %401 = vst [vmem:[#allocation2 + $0x78] sm:$0xff] 0.0
        %402 = vst [vmem:[#allocation2 + $0x80] sm:$0xff] 0.0
        %403 = vst [vmem:[#allocation2 + $0x88] sm:$0xff] 0.0
        %404 = vst [vmem:[#allocation2 + $0x90] sm:$0xff] 0.0
        %405 = vst [vmem:[#allocation2 + $0x98] sm:$0xff] 0.0
        %406 = vst [vmem:[#allocation2 + $0xa0] sm:$0xff] 0.0
        %407 = vst [vmem:[#allocation2 + $0xa8] sm:$0xff] 0.0
        %408 = vst [vmem:[#allocation2 + $0xb0] sm:$0xff] 0.0
        %409 = vst [vmem:[#allocation2 + $0xb8] sm:$0xff] 0.0
        %410 = vst [vmem:[#allocation2 + $0xc0] sm:$0xff] 0.0
        %411 = vst [vmem:[#allocation2 + $0xc8] sm:$0xff] 0.0
        %412 = vst [vmem:[#allocation2 + $0xd0] sm:$0xff] 0.0
        %413 = vst [vmem:[#allocation2 + $0xd8] sm:$0xff] 0.0
        %414 = vst [vmem:[#allocation2 + $0xe0] sm:$0xff] 0.0
        %415 = vst [vmem:[#allocation2 + $0xe8] sm:$0xff] 0.0
        %416 = vst [vmem:[#allocation2 + $0xf0] sm:$0xff] 0.0
        %417 = vst [vmem:[#allocation2 + $0xf8] sm:$0xff] 0.0
        %418 = vst [vmem:[#allocation2 + $0x100] sm:$0xff] 0.0
        %419 = vst [vmem:[#allocation2 + $0x108] sm:$0xff] 0.0
        %420 = vst [vmem:[#allocation2 + $0x110] sm:$0xff] 0.0
        %421 = vst [vmem:[#allocation2 + $0x118] sm:$0xff] 0.0
        %422 = vst [vmem:[#allocation2 + $0x120] sm:$0xff] 0.0
        %423 = vst [vmem:[#allocation2 + $0x128] sm:$0xff] 0.0
        %v424 = vld [vmem:[%s340] sm:$0xff]
        %v425 = vld [vmem:[%s340 + $0x8] sm:$0xff]
        %v426 = vld [vmem:[%s340 + $0x10] sm:$0xff]
        %v427 = vld [vmem:[%s340 + $0x18] sm:$0xff]
        %v428 = vld [vmem:[%s340 + $0x20] sm:$0xff]
        %v429 = vld [vmem:[%s340 + $0x28] sm:$0xff]
        %v430 = vld [vmem:[%s340 + $0x30] sm:$0xff]
        %v431 = vld [vmem:[%s340 + $0x38] sm:$0xff]
        %v432 = vld [vmem:[%s340 + $0x40] sm:$0xff]
        %v433 = vld [vmem:[%s340 + $0x48] sm:$0xff]
        %v434 = vld [vmem:[%s340 + $0x50] sm:$0xff]
        %v435 = vld [vmem:[%s340 + $0x58] sm:$0xff]
        %v436 = vld [vmem:[%s340 + $0x60] sm:$0xff]
        %v437 = vld [vmem:[%s340 + $0x68] sm:$0xff]
        %v438 = vld [vmem:[%s340 + $0x70] sm:$0xff]
        %v439 = vld [vmem:[%s340 + $0x78] sm:$0xff]
        %v440 = vld [vmem:[%s340 + $0x80] sm:$0xff]
        %v441 = vld [vmem:[%s340 + $0x88] sm:$0xff]
        %v442 = vld [vmem:[%s340 + $0x90] sm:$0xff]
        %v443 = vld [vmem:[%s340 + $0x98] sm:$0xff]
        %v444 = vld [vmem:[%s340 + $0xa0] sm:$0xff]
        %v445 = vld [vmem:[%s340 + $0xa8] sm:$0xff]
        %v446 = vld [vmem:[%s340 + $0xb0] sm:$0xff]
        %v447 = vld [vmem:[%s340 + $0xb8] sm:$0xff]
        %v448 = vld [vmem:[%s340 + $0xc0] sm:$0xff]
        %v449 = vld [vmem:[%s340 + $0xc8] sm:$0xff]
        %v450 = vld [vmem:[%s340 + $0xd0] sm:$0xff]
        %v451 = vld [vmem:[%s340 + $0xd8] sm:$0xff]
        %v452 = vld [vmem:[%s340 + $0xe0] sm:$0xff]
        %v453 = vld [vmem:[%s340 + $0xe8] sm:$0xff]
        %v454 = vld [vmem:[%s340 + $0xf0] sm:$0xff]
        %v455 = vld [vmem:[%s340 + $0xf8] sm:$0xff]
        %456 = vst [vmem:[#allocation2 + $0x18] sm:$0xff] %v424
        %457 = vst [vmem:[#allocation2 + $0x20] sm:$0xff] %v425
        %458 = vst [vmem:[#allocation2 + $0x28] sm:$0xff] %v426
        %459 = vst [vmem:[#allocation2 + $0x30] sm:$0xff] %v427
        %460 = vst [vmem:[#allocation2 + $0x38] sm:$0xff] %v428
        %461 = vst [vmem:[#allocation2 + $0x40] sm:$0xff] %v429
        %462 = vst [vmem:[#allocation2 + $0x48] sm:$0xff] %v430
        %463 = vst [vmem:[#allocation2 + $0x50] sm:$0xff] %v431
        %464 = vst [vmem:[#allocation2 + $0x58] sm:$0xff] %v432
        %465 = vst [vmem:[#allocation2 + $0x60] sm:$0xff] %v433
        %466 = vst [vmem:[#allocation2 + $0x68] sm:$0xff] %v434
        %467 = vst [vmem:[#allocation2 + $0x70] sm:$0xff] %v435
        %468 = vst [vmem:[#allocation2 + $0x78] sm:$0xff] %v436
        %469 = vst [vmem:[#allocation2 + $0x80] sm:$0xff] %v437
        %470 = vst [vmem:[#allocation2 + $0x88] sm:$0xff] %v438
        %471 = vst [vmem:[#allocation2 + $0x90] sm:$0xff] %v439
        %472 = vst [vmem:[#allocation2 + $0x98] sm:$0xff] %v440
        %473 = vst [vmem:[#allocation2 + $0xa0] sm:$0xff] %v441
        %474 = vst [vmem:[#allocation2 + $0xa8] sm:$0xff] %v442
        %475 = vst [vmem:[#allocation2 + $0xb0] sm:$0xff] %v443
        %476 = vst [vmem:[#allocation2 + $0xb8] sm:$0xff] %v444
        %477 = vst [vmem:[#allocation2 + $0xc0] sm:$0xff] %v445
        %478 = vst [vmem:[#allocation2 + $0xc8] sm:$0xff] %v446
        %479 = vst [vmem:[#allocation2 + $0xd0] sm:$0xff] %v447
        %480 = vst [vmem:[#allocation2 + $0xd8] sm:$0xff] %v448
        %481 = vst [vmem:[#allocation2 + $0xe0] sm:$0xff] %v449
        %482 = vst [vmem:[#allocation2 + $0xe8] sm:$0xff] %v450
        %483 = vst [vmem:[#allocation2 + $0xf0] sm:$0xff] %v451
        %484 = vst [vmem:[#allocation2 + $0xf8] sm:$0xff] %v452
        %485 = vst [vmem:[#allocation2 + $0x100] sm:$0xff] %v453
        %486 = vst [vmem:[#allocation2 + $0x108] sm:$0xff] %v454
        %487 = vst [vmem:[#allocation2 + $0x110] sm:$0xff] %v455
        %v488 = vlaneseq
        %v489 = vshrl.u32 %v488, 7
        %v490 = vadd.s32 %v489, 8
        %v491 = vadd.s32 %v489, 16
        %v492 = vadd.s32 %v489, 24
        %v493 = vadd.s32 %v489, 32
        %v494 = vadd.s32 %v489, 40
        %v495 = vadd.s32 %v489, 48
        %v496 = vadd.s32 %v489, 56
        %v497 = vadd.s32 %v489, 64
        %v498 = vadd.s32 %v489, 72
        %v499 = vadd.s32 %v489, 80
        %v500 = vadd.s32 %v489, 88
        %v501 = vadd.s32 %v489, 96
        %v502 = vadd.s32 %v489, 104
        %v503 = vadd.s32 %v489, 112
        %v504 = vadd.s32 %v489, 120
        %v505 = vadd.s32 %v489, 128
        %v506 = vadd.s32 %v489, 136
        %v507 = vadd.s32 %v489, 144
        %v508 = vadd.s32 %v489, 152
        %v509 = vadd.s32 %v489, 160
        %v510 = vadd.s32 %v489, 168
        %v511 = vadd.s32 %v489, 176
        %v512 = vadd.s32 %v489, 184
        %v513 = vadd.s32 %v489, 192
        %v514 = vadd.s32 %v489, 200
        %v515 = vadd.s32 %v489, 208
        %v516 = vadd.s32 %v489, 216
        %v517 = vadd.s32 %v489, 224
        %v518 = vadd.s32 %v489, 232
        %v519 = vadd.s32 %v489, 240
        %v520 = vadd.s32 %v489, 248
        %vm521 = vcmp.lt.s32.totalorder %v489, 0
        %v522 = vsub.s32 0, %v489
        %v523 = vsel %vm521, %v522, %v489
        %v524 = vshrl.u32 %v523, 4
        %v525 = vand.u32 %v523, 15
        %v526 = vsub.s32 0, %v525
        %v527 = vsel %vm521, %v526, %v525
        %vm528 = vcmp.lt.s32.totalorder %v490, 0
        %v529 = vsub.s32 0, %v490
        %v530 = vsel %vm528, %v529, %v490
        %v531 = vshrl.u32 %v530, 4
        %v532 = vand.u32 %v530, 15
        %v533 = vsub.s32 0, %v532
        %v534 = vsel %vm528, %v533, %v532
        %vm535 = vcmp.lt.s32.totalorder %v491, 0
        %v536 = vsub.s32 0, %v491
        %v537 = vsel %vm535, %v536, %v491
        %v538 = vshrl.u32 %v537, 4
        %v539 = vand.u32 %v537, 15
        %v540 = vsub.s32 0, %v539
        %v541 = vsel %vm535, %v540, %v539
        %vm542 = vcmp.lt.s32.totalorder %v492, 0
        %v543 = vsub.s32 0, %v492
        %v544 = vsel %vm542, %v543, %v492
        %v545 = vshrl.u32 %v544, 4
        %v546 = vand.u32 %v544, 15
        %v547 = vsub.s32 0, %v546
        %v548 = vsel %vm542, %v547, %v546
        %vm549 = vcmp.lt.s32.totalorder %v493, 0
        %v550 = vsub.s32 0, %v493
        %v551 = vsel %vm549, %v550, %v493
        %v552 = vshrl.u32 %v551, 4
        %v553 = vand.u32 %v551, 15
        %v554 = vsub.s32 0, %v553
        %v555 = vsel %vm549, %v554, %v553
        %vm556 = vcmp.lt.s32.totalorder %v494, 0
        %v557 = vsub.s32 0, %v494
        %v558 = vsel %vm556, %v557, %v494
        %v559 = vshrl.u32 %v558, 4
        %v560 = vand.u32 %v558, 15
        %v561 = vsub.s32 0, %v560
        %v562 = vsel %vm556, %v561, %v560
        %vm563 = vcmp.lt.s32.totalorder %v495, 0
        %v564 = vsub.s32 0, %v495
        %v565 = vsel %vm563, %v564, %v495
        %v566 = vshrl.u32 %v565, 4
        %v567 = vand.u32 %v565, 15
        %v568 = vsub.s32 0, %v567
        %v569 = vsel %vm563, %v568, %v567
        %vm570 = vcmp.lt.s32.totalorder %v496, 0
        %v571 = vsub.s32 0, %v496
        %v572 = vsel %vm570, %v571, %v496
        %v573 = vshrl.u32 %v572, 4
        %v574 = vand.u32 %v572, 15
        %v575 = vsub.s32 0, %v574
        %v576 = vsel %vm570, %v575, %v574
        %vm577 = vcmp.lt.s32.totalorder %v497, 0
        %v578 = vsub.s32 0, %v497
        %v579 = vsel %vm577, %v578, %v497
        %v580 = vshrl.u32 %v579, 4
        %v581 = vand.u32 %v579, 15
        %v582 = vsub.s32 0, %v581
        %v583 = vsel %vm577, %v582, %v581
        %vm584 = vcmp.lt.s32.totalorder %v498, 0
        %v585 = vsub.s32 0, %v498
        %v586 = vsel %vm584, %v585, %v498
        %v587 = vshrl.u32 %v586, 4
        %v588 = vand.u32 %v586, 15
        %v589 = vsub.s32 0, %v588
        %v590 = vsel %vm584, %v589, %v588
        %vm591 = vcmp.lt.s32.totalorder %v499, 0
        %v592 = vsub.s32 0, %v499
        %v593 = vsel %vm591, %v592, %v499
        %v594 = vshrl.u32 %v593, 4
        %v595 = vand.u32 %v593, 15
        %v596 = vsub.s32 0, %v595
        %v597 = vsel %vm591, %v596, %v595
        %vm598 = vcmp.lt.s32.totalorder %v500, 0
        %v599 = vsub.s32 0, %v500
        %v600 = vsel %vm598, %v599, %v500
        %v601 = vshrl.u32 %v600, 4
        %v602 = vand.u32 %v600, 15
        %v603 = vsub.s32 0, %v602
        %v604 = vsel %vm598, %v603, %v602
        %vm605 = vcmp.lt.s32.totalorder %v501, 0
        %v606 = vsub.s32 0, %v501
        %v607 = vsel %vm605, %v606, %v501
        %v608 = vshrl.u32 %v607, 4
        %v609 = vand.u32 %v607, 15
        %v610 = vsub.s32 0, %v609
        %v611 = vsel %vm605, %v610, %v609
        %vm612 = vcmp.lt.s32.totalorder %v502, 0
        %v613 = vsub.s32 0, %v502
        %v614 = vsel %vm612, %v613, %v502
        %v615 = vshrl.u32 %v614, 4
        %v616 = vand.u32 %v614, 15
        %v617 = vsub.s32 0, %v616
        %v618 = vsel %vm612, %v617, %v616
        %vm619 = vcmp.lt.s32.totalorder %v503, 0
        %v620 = vsub.s32 0, %v503
        %v621 = vsel %vm619, %v620, %v503
        %v622 = vshrl.u32 %v621, 4
        %v623 = vand.u32 %v621, 15
        %v624 = vsub.s32 0, %v623
        %v625 = vsel %vm619, %v624, %v623
        %vm626 = vcmp.lt.s32.totalorder %v504, 0
        %v627 = vsub.s32 0, %v504
        %v628 = vsel %vm626, %v627, %v504
        %v629 = vshrl.u32 %v628, 4
        %v630 = vand.u32 %v628, 15
        %v631 = vsub.s32 0, %v630
        %v632 = vsel %vm626, %v631, %v630
        %vm633 = vcmp.lt.s32.totalorder %v505, 0
        %v634 = vsub.s32 0, %v505
        %v635 = vsel %vm633, %v634, %v505
        %v636 = vshrl.u32 %v635, 4
        %v637 = vand.u32 %v635, 15
        %v638 = vsub.s32 0, %v637
        %v639 = vsel %vm633, %v638, %v637
        %vm640 = vcmp.lt.s32.totalorder %v506, 0
        %v641 = vsub.s32 0, %v506
        %v642 = vsel %vm640, %v641, %v506
        %v643 = vshrl.u32 %v642, 4
        %v644 = vand.u32 %v642, 15
        %v645 = vsub.s32 0, %v644
        %v646 = vsel %vm640, %v645, %v644
        %vm647 = vcmp.lt.s32.totalorder %v507, 0
        %v648 = vsub.s32 0, %v507
        %v649 = vsel %vm647, %v648, %v507
        %v650 = vshrl.u32 %v649, 4
        %v651 = vand.u32 %v649, 15
        %v652 = vsub.s32 0, %v651
        %v653 = vsel %vm647, %v652, %v651
        %vm654 = vcmp.lt.s32.totalorder %v508, 0
        %v655 = vsub.s32 0, %v508
        %v656 = vsel %vm654, %v655, %v508
        %v657 = vshrl.u32 %v656, 4
        %v658 = vand.u32 %v656, 15
        %v659 = vsub.s32 0, %v658
        %v660 = vsel %vm654, %v659, %v658
        %vm661 = vcmp.lt.s32.totalorder %v509, 0
        %v662 = vsub.s32 0, %v509
        %v663 = vsel %vm661, %v662, %v509
        %v664 = vshrl.u32 %v663, 4
        %v665 = vand.u32 %v663, 15
        %v666 = vsub.s32 0, %v665
        %v667 = vsel %vm661, %v666, %v665
        %vm668 = vcmp.lt.s32.totalorder %v510, 0
        %v669 = vsub.s32 0, %v510
        %v670 = vsel %vm668, %v669, %v510
        %v671 = vshrl.u32 %v670, 4
        %v672 = vand.u32 %v670, 15
        %v673 = vsub.s32 0, %v672
        %v674 = vsel %vm668, %v673, %v672
        %vm675 = vcmp.lt.s32.totalorder %v511, 0
        %v676 = vsub.s32 0, %v511
        %v677 = vsel %vm675, %v676, %v511
        %v678 = vshrl.u32 %v677, 4
        %v679 = vand.u32 %v677, 15
        %v680 = vsub.s32 0, %v679
        %v681 = vsel %vm675, %v680, %v679
        %vm682 = vcmp.lt.s32.totalorder %v512, 0
        %v683 = vsub.s32 0, %v512
        %v684 = vsel %vm682, %v683, %v512
        %v685 = vshrl.u32 %v684, 4
        %v686 = vand.u32 %v684, 15
        %v687 = vsub.s32 0, %v686
        %v688 = vsel %vm682, %v687, %v686
        %vm689 = vcmp.lt.s32.totalorder %v513, 0
        %v690 = vsub.s32 0, %v513
        %v691 = vsel %vm689, %v690, %v513
        %v692 = vshrl.u32 %v691, 4
        %v693 = vand.u32 %v691, 15
        %v694 = vsub.s32 0, %v693
        %v695 = vsel %vm689, %v694, %v693
        %vm696 = vcmp.lt.s32.totalorder %v514, 0
        %v697 = vsub.s32 0, %v514
        %v698 = vsel %vm696, %v697, %v514
        %v699 = vshrl.u32 %v698, 4
        %v700 = vand.u32 %v698, 15
        %v701 = vsub.s32 0, %v700
        %v702 = vsel %vm696, %v701, %v700
        %vm703 = vcmp.lt.s32.totalorder %v515, 0
        %v704 = vsub.s32 0, %v515
        %v705 = vsel %vm703, %v704, %v515
        %v706 = vshrl.u32 %v705, 4
        %v707 = vand.u32 %v705, 15
        %v708 = vsub.s32 0, %v707
        %v709 = vsel %vm703, %v708, %v707
        %vm710 = vcmp.lt.s32.totalorder %v516, 0
        %v711 = vsub.s32 0, %v516
        %v712 = vsel %vm710, %v711, %v516
        %v713 = vshrl.u32 %v712, 4
        %v714 = vand.u32 %v712, 15
        %v715 = vsub.s32 0, %v714
        %v716 = vsel %vm710, %v715, %v714
        %vm717 = vcmp.lt.s32.totalorder %v517, 0
        %v718 = vsub.s32 0, %v517
        %v719 = vsel %vm717, %v718, %v517
        %v720 = vshrl.u32 %v719, 4
        %v721 = vand.u32 %v719, 15
        %v722 = vsub.s32 0, %v721
        %v723 = vsel %vm717, %v722, %v721
        %vm724 = vcmp.lt.s32.totalorder %v518, 0
        %v725 = vsub.s32 0, %v518
        %v726 = vsel %vm724, %v725, %v518
        %v727 = vshrl.u32 %v726, 4
        %v728 = vand.u32 %v726, 15
        %v729 = vsub.s32 0, %v728
        %v730 = vsel %vm724, %v729, %v728
        %vm731 = vcmp.lt.s32.totalorder %v519, 0
        %v732 = vsub.s32 0, %v519
        %v733 = vsel %vm731, %v732, %v519
        %v734 = vshrl.u32 %v733, 4
        %v735 = vand.u32 %v733, 15
        %v736 = vsub.s32 0, %v735
        %v737 = vsel %vm731, %v736, %v735
        %vm738 = vcmp.lt.s32.totalorder %v520, 0
        %v739 = vsub.s32 0, %v520
        %v740 = vsel %vm738, %v739, %v520
        %v741 = vshrl.u32 %v740, 4
        %v742 = vand.u32 %v740, 15
        %v743 = vsub.s32 0, %v742
        %v744 = vsel %vm738, %v743, %v742
        %vm745 = vcmp.ne.s32.totalorder %v527, 0
        %vm746 = vcmp.ne.s32.totalorder %v534, 0
        %vm747 = vcmp.ne.s32.totalorder %v541, 0
        %vm748 = vcmp.ne.s32.totalorder %v548, 0
        %vm749 = vcmp.ne.s32.totalorder %v555, 0
        %vm750 = vcmp.ne.s32.totalorder %v562, 0
        %vm751 = vcmp.ne.s32.totalorder %v569, 0
        %vm752 = vcmp.ne.s32.totalorder %v576, 0
        %vm753 = vcmp.ne.s32.totalorder %v583, 0
        %vm754 = vcmp.ne.s32.totalorder %v590, 0
        %vm755 = vcmp.ne.s32.totalorder %v597, 0
        %vm756 = vcmp.ne.s32.totalorder %v604, 0
        %vm757 = vcmp.ne.s32.totalorder %v611, 0
        %vm758 = vcmp.ne.s32.totalorder %v618, 0
        %vm759 = vcmp.ne.s32.totalorder %v625, 0
        %vm760 = vcmp.ne.s32.totalorder %v632, 0
        %vm761 = vcmp.ne.s32.totalorder %v639, 0
        %vm762 = vcmp.ne.s32.totalorder %v646, 0
        %vm763 = vcmp.ne.s32.totalorder %v653, 0
        %vm764 = vcmp.ne.s32.totalorder %v660, 0
        %vm765 = vcmp.ne.s32.totalorder %v667, 0
        %vm766 = vcmp.ne.s32.totalorder %v674, 0
        %vm767 = vcmp.ne.s32.totalorder %v681, 0
        %vm768 = vcmp.ne.s32.totalorder %v688, 0
        %vm769 = vcmp.ne.s32.totalorder %v695, 0
        %vm770 = vcmp.ne.s32.totalorder %v702, 0
        %vm771 = vcmp.ne.s32.totalorder %v709, 0
        %vm772 = vcmp.ne.s32.totalorder %v716, 0
        %vm773 = vcmp.ne.s32.totalorder %v723, 0
        %vm774 = vcmp.ne.s32.totalorder %v730, 0
        %vm775 = vcmp.ne.s32.totalorder %v737, 0
        %vm776 = vcmp.ne.s32.totalorder %v744, 0
        %vm777 = vcmp.lt.s32.totalorder %v527, 0
        %vm778 = vcmp.lt.s32.totalorder %v534, 0
        %vm779 = vcmp.lt.s32.totalorder %v541, 0
        %vm780 = vcmp.lt.s32.totalorder %v548, 0
        %vm781 = vcmp.lt.s32.totalorder %v555, 0
        %vm782 = vcmp.lt.s32.totalorder %v562, 0
        %vm783 = vcmp.lt.s32.totalorder %v569, 0
        %vm784 = vcmp.lt.s32.totalorder %v576, 0
        %vm785 = vcmp.lt.s32.totalorder %v583, 0
        %vm786 = vcmp.lt.s32.totalorder %v590, 0
        %vm787 = vcmp.lt.s32.totalorder %v597, 0
        %vm788 = vcmp.lt.s32.totalorder %v604, 0
        %vm789 = vcmp.lt.s32.totalorder %v611, 0
        %vm790 = vcmp.lt.s32.totalorder %v618, 0
        %vm791 = vcmp.lt.s32.totalorder %v625, 0
        %vm792 = vcmp.lt.s32.totalorder %v632, 0
        %vm793 = vcmp.lt.s32.totalorder %v639, 0
        %vm794 = vcmp.lt.s32.totalorder %v646, 0
        %vm795 = vcmp.lt.s32.totalorder %v653, 0
        %vm796 = vcmp.lt.s32.totalorder %v660, 0
        %vm797 = vcmp.lt.s32.totalorder %v667, 0
        %vm798 = vcmp.lt.s32.totalorder %v674, 0
        %vm799 = vcmp.lt.s32.totalorder %v681, 0
        %vm800 = vcmp.lt.s32.totalorder %v688, 0
        %vm801 = vcmp.lt.s32.totalorder %v695, 0
        %vm802 = vcmp.lt.s32.totalorder %v702, 0
        %vm803 = vcmp.lt.s32.totalorder %v709, 0
        %vm804 = vcmp.lt.s32.totalorder %v716, 0
        %vm805 = vcmp.lt.s32.totalorder %v723, 0
        %vm806 = vcmp.lt.s32.totalorder %v730, 0
        %vm807 = vcmp.lt.s32.totalorder %v737, 0
        %vm808 = vcmp.lt.s32.totalorder %v744, 0
        %vm809 = vmand %vm777, %vm745
        %vm810 = vmand %vm778, %vm746
        %vm811 = vmand %vm779, %vm747
        %vm812 = vmand %vm780, %vm748
        %vm813 = vmand %vm781, %vm749
        %vm814 = vmand %vm782, %vm750
        %vm815 = vmand %vm783, %vm751
        %vm816 = vmand %vm784, %vm752
        %vm817 = vmand %vm785, %vm753
        %vm818 = vmand %vm786, %vm754
        %vm819 = vmand %vm787, %vm755
        %vm820 = vmand %vm788, %vm756
        %vm821 = vmand %vm789, %vm757
        %vm822 = vmand %vm790, %vm758
        %vm823 = vmand %vm791, %vm759
        %vm824 = vmand %vm792, %vm760
        %vm825 = vmand %vm793, %vm761
        %vm826 = vmand %vm794, %vm762
        %vm827 = vmand %vm795, %vm763
        %vm828 = vmand %vm796, %vm764
        %vm829 = vmand %vm797, %vm765
        %vm830 = vmand %vm798, %vm766
        %vm831 = vmand %vm799, %vm767
        %vm832 = vmand %vm800, %vm768
        %vm833 = vmand %vm801, %vm769
        %vm834 = vmand %vm802, %vm770
        %vm835 = vmand %vm803, %vm771
        %vm836 = vmand %vm804, %vm772
        %vm837 = vmand %vm805, %vm773
        %vm838 = vmand %vm806, %vm774
        %vm839 = vmand %vm807, %vm775
        %vm840 = vmand %vm808, %vm776
        %v841 = vadd.s32 %v527, 16
        %v842 = vadd.s32 %v534, 16
        %v843 = vadd.s32 %v541, 16
        %v844 = vadd.s32 %v548, 16
        %v845 = vadd.s32 %v555, 16
        %v846 = vadd.s32 %v562, 16
        %v847 = vadd.s32 %v569, 16
        %v848 = vadd.s32 %v576, 16
        %v849 = vadd.s32 %v583, 16
        %v850 = vadd.s32 %v590, 16
        %v851 = vadd.s32 %v597, 16
        %v852 = vadd.s32 %v604, 16
        %v853 = vadd.s32 %v611, 16
        %v854 = vadd.s32 %v618, 16
        %v855 = vadd.s32 %v625, 16
        %v856 = vadd.s32 %v632, 16
        %v857 = vadd.s32 %v639, 16
        %v858 = vadd.s32 %v646, 16
        %v859 = vadd.s32 %v653, 16
        %v860 = vadd.s32 %v660, 16
        %v861 = vadd.s32 %v667, 16
        %v862 = vadd.s32 %v674, 16
        %v863 = vadd.s32 %v681, 16
        %v864 = vadd.s32 %v688, 16
        %v865 = vadd.s32 %v695, 16
        %v866 = vadd.s32 %v702, 16
        %v867 = vadd.s32 %v709, 16
        %v868 = vadd.s32 %v716, 16
        %v869 = vadd.s32 %v723, 16
        %v870 = vadd.s32 %v730, 16
        %v871 = vadd.s32 %v737, 16
        %v872 = vadd.s32 %v744, 16
        %v873 = vsel %vm809, %v841, %v527
        %v874 = vsel %vm810, %v842, %v534
        %v875 = vsel %vm811, %v843, %v541
        %v876 = vsel %vm812, %v844, %v548
        %v877 = vsel %vm813, %v845, %v555
        %v878 = vsel %vm814, %v846, %v562
        %v879 = vsel %vm815, %v847, %v569
        %v880 = vsel %vm816, %v848, %v576
        %v881 = vsel %vm817, %v849, %v583
        %v882 = vsel %vm818, %v850, %v590
        %v883 = vsel %vm819, %v851, %v597
        %v884 = vsel %vm820, %v852, %v604
        %v885 = vsel %vm821, %v853, %v611
        %v886 = vsel %vm822, %v854, %v618
        %v887 = vsel %vm823, %v855, %v625
        %v888 = vsel %vm824, %v856, %v632
        %v889 = vsel %vm825, %v857, %v639
        %v890 = vsel %vm826, %v858, %v646
        %v891 = vsel %vm827, %v859, %v653
        %v892 = vsel %vm828, %v860, %v660
        %v893 = vsel %vm829, %v861, %v667
        %v894 = vsel %vm830, %v862, %v674
        %v895 = vsel %vm831, %v863, %v681
        %v896 = vsel %vm832, %v864, %v688
        %v897 = vsel %vm833, %v865, %v695
        %v898 = vsel %vm834, %v866, %v702
        %v899 = vsel %vm835, %v867, %v709
        %v900 = vsel %vm836, %v868, %v716
        %v901 = vsel %vm837, %v869, %v723
        %v902 = vsel %vm838, %v870, %v730
        %v903 = vsel %vm839, %v871, %v737
        %v904 = vsel %vm840, %v872, %v744
        %vm905 = vcmp.ge.s32.totalorder %v873, 1
        %vm906 = vcmp.ge.s32.totalorder %v874, 1
        %vm907 = vcmp.ge.s32.totalorder %v875, 1
        %vm908 = vcmp.ge.s32.totalorder %v876, 1
        %vm909 = vcmp.ge.s32.totalorder %v877, 1
        %vm910 = vcmp.ge.s32.totalorder %v878, 1
        %vm911 = vcmp.ge.s32.totalorder %v879, 1
        %vm912 = vcmp.ge.s32.totalorder %v880, 1
        %vm913 = vcmp.ge.s32.totalorder %v881, 1
        %vm914 = vcmp.ge.s32.totalorder %v882, 1
        %vm915 = vcmp.ge.s32.totalorder %v883, 1
        %vm916 = vcmp.ge.s32.totalorder %v884, 1
        %vm917 = vcmp.ge.s32.totalorder %v885, 1
        %vm918 = vcmp.ge.s32.totalorder %v886, 1
        %vm919 = vcmp.ge.s32.totalorder %v887, 1
        %vm920 = vcmp.ge.s32.totalorder %v888, 1
        %vm921 = vcmp.ge.s32.totalorder %v889, 1
        %vm922 = vcmp.ge.s32.totalorder %v890, 1
        %vm923 = vcmp.ge.s32.totalorder %v891, 1
        %vm924 = vcmp.ge.s32.totalorder %v892, 1
        %vm925 = vcmp.ge.s32.totalorder %v893, 1
        %vm926 = vcmp.ge.s32.totalorder %v894, 1
        %vm927 = vcmp.ge.s32.totalorder %v895, 1
        %vm928 = vcmp.ge.s32.totalorder %v896, 1
        %vm929 = vcmp.ge.s32.totalorder %v897, 1
        %vm930 = vcmp.ge.s32.totalorder %v898, 1
        %vm931 = vcmp.ge.s32.totalorder %v899, 1
        %vm932 = vcmp.ge.s32.totalorder %v900, 1
        %vm933 = vcmp.ge.s32.totalorder %v901, 1
        %vm934 = vcmp.ge.s32.totalorder %v902, 1
        %vm935 = vcmp.ge.s32.totalorder %v903, 1
        %vm936 = vcmp.ge.s32.totalorder %v904, 1
        %vm937 = vcmp.le.s32.totalorder %v873, 14
        %vm938 = vcmp.le.s32.totalorder %v874, 14
        %vm939 = vcmp.le.s32.totalorder %v875, 14
        %vm940 = vcmp.le.s32.totalorder %v876, 14
        %vm941 = vcmp.le.s32.totalorder %v877, 14
        %vm942 = vcmp.le.s32.totalorder %v878, 14
        %vm943 = vcmp.le.s32.totalorder %v879, 14
        %vm944 = vcmp.le.s32.totalorder %v880, 14
        %vm945 = vcmp.le.s32.totalorder %v881, 14
        %vm946 = vcmp.le.s32.totalorder %v882, 14
        %vm947 = vcmp.le.s32.totalorder %v883, 14
        %vm948 = vcmp.le.s32.totalorder %v884, 14
        %vm949 = vcmp.le.s32.totalorder %v885, 14
        %vm950 = vcmp.le.s32.totalorder %v886, 14
        %vm951 = vcmp.le.s32.totalorder %v887, 14
        %vm952 = vcmp.le.s32.totalorder %v888, 14
        %vm953 = vcmp.le.s32.totalorder %v889, 14
        %vm954 = vcmp.le.s32.totalorder %v890, 14
        %vm955 = vcmp.le.s32.totalorder %v891, 14
        %vm956 = vcmp.le.s32.totalorder %v892, 14
        %vm957 = vcmp.le.s32.totalorder %v893, 14
        %vm958 = vcmp.le.s32.totalorder %v894, 14
        %vm959 = vcmp.le.s32.totalorder %v895, 14
        %vm960 = vcmp.le.s32.totalorder %v896, 14
        %vm961 = vcmp.le.s32.totalorder %v897, 14
        %vm962 = vcmp.le.s32.totalorder %v898, 14
        %vm963 = vcmp.le.s32.totalorder %v899, 14
        %vm964 = vcmp.le.s32.totalorder %v900, 14
        %vm965 = vcmp.le.s32.totalorder %v901, 14
        %vm966 = vcmp.le.s32.totalorder %v902, 14
        %vm967 = vcmp.le.s32.totalorder %v903, 14
        %vm968 = vcmp.le.s32.totalorder %v904, 14
        %v969 = vld [vmem:[%s2] sm:$0x1]
        %v971 = vperm.slane %v969, 0
        %v973 = vld [vmem:[#allocation2 + $0x7] sm:$0xff]
        %v974 = vld [vmem:[#allocation2 + $0xf] sm:$0xff]
        %v975 = vld [vmem:[#allocation2 + $0x17] sm:$0xff]
        %v976 = vld [vmem:[#allocation2 + $0x1f] sm:$0xff]
        %v977 = vld [vmem:[#allocation2 + $0x27] sm:$0xff]
        %v978 = vld [vmem:[#allocation2 + $0x2f] sm:$0xff]
        %v979 = vld [vmem:[#allocation2 + $0x37] sm:$0xff]
        %v980 = vld [vmem:[#allocation2 + $0x3f] sm:$0xff]
        %v981 = vld [vmem:[#allocation2 + $0x47] sm:$0xff]
        %v982 = vld [vmem:[#allocation2 + $0x4f] sm:$0xff]
        %v983 = vld [vmem:[#allocation2 + $0x57] sm:$0xff]
        %v984 = vld [vmem:[#allocation2 + $0x5f] sm:$0xff]
        %v985 = vld [vmem:[#allocation2 + $0x67] sm:$0xff]
        %v986 = vld [vmem:[#allocation2 + $0x6f] sm:$0xff]
        %v987 = vld [vmem:[#allocation2 + $0x77] sm:$0xff]
        %v988 = vld [vmem:[#allocation2 + $0x7f] sm:$0xff]
        %v989 = vld [vmem:[#allocation2 + $0x87] sm:$0xff]
        %v990 = vld [vmem:[#allocation2 + $0x8f] sm:$0xff]
        %v991 = vld [vmem:[#allocation2 + $0x97] sm:$0xff]
        %v992 = vld [vmem:[#allocation2 + $0x9f] sm:$0xff]
        %v993 = vld [vmem:[#allocation2 + $0xa7] sm:$0xff]
        %v994 = vld [vmem:[#allocation2 + $0xaf] sm:$0xff]
        %v995 = vld [vmem:[#allocation2 + $0xb7] sm:$0xff]
        %v996 = vld [vmem:[#allocation2 + $0xbf] sm:$0xff]
        %v997 = vld [vmem:[#allocation2 + $0xc7] sm:$0xff]
        %v998 = vld [vmem:[#allocation2 + $0xcf] sm:$0xff]
        %v999 = vld [vmem:[#allocation2 + $0xd7] sm:$0xff]
        %v1000 = vld [vmem:[#allocation2 + $0xdf] sm:$0xff]
        %v1001 = vld [vmem:[#allocation2 + $0xe7] sm:$0xff]
        %v1002 = vld [vmem:[#allocation2 + $0xef] sm:$0xff]
        %v1003 = vld [vmem:[#allocation2 + $0xf7] sm:$0xff]
        %v1004 = vld [vmem:[#allocation2 + $0xff] sm:$0xff]
        %v1005 = vsel %vm905, 1, 0
        %v1006 = vsel %vm906, 1, 0
        %v1007 = vsel %vm907, 1, 0
        %v1008 = vsel %vm908, 1, 0
        %v1009 = vsel %vm909, 1, 0
        %v1010 = vsel %vm910, 1, 0
        %v1011 = vsel %vm911, 1, 0
        %v1012 = vsel %vm912, 1, 0
        %v1013 = vsel %vm913, 1, 0
        %v1014 = vsel %vm914, 1, 0
        %v1015 = vsel %vm915, 1, 0
        %v1016 = vsel %vm916, 1, 0
        %v1017 = vsel %vm917, 1, 0
        %v1018 = vsel %vm918, 1, 0
        %v1019 = vsel %vm919, 1, 0
        %v1020 = vsel %vm920, 1, 0
        %v1021 = vsel %vm921, 1, 0
        %v1022 = vsel %vm922, 1, 0
        %v1023 = vsel %vm923, 1, 0
        %v1024 = vsel %vm924, 1, 0
        %v1025 = vsel %vm925, 1, 0
        %v1026 = vsel %vm926, 1, 0
        %v1027 = vsel %vm927, 1, 0
        %v1028 = vsel %vm928, 1, 0
        %v1029 = vsel %vm929, 1, 0
        %v1030 = vsel %vm930, 1, 0
        %v1031 = vsel %vm931, 1, 0
        %v1032 = vsel %vm932, 1, 0
        %v1033 = vsel %vm933, 1, 0
        %v1034 = vsel %vm934, 1, 0
        %v1035 = vsel %vm935, 1, 0
        %v1036 = vsel %vm936, 1, 0
        %vm1037 = vcmp.eq.s32.totalorder %v1005, 1
        %vm1038 = vcmp.eq.s32.totalorder %v1006, 1
        %vm1039 = vcmp.eq.s32.totalorder %v1007, 1
        %vm1040 = vcmp.eq.s32.totalorder %v1008, 1
        %vm1041 = vcmp.eq.s32.totalorder %v1009, 1
        %vm1042 = vcmp.eq.s32.totalorder %v1010, 1
        %vm1043 = vcmp.eq.s32.totalorder %v1011, 1
        %vm1044 = vcmp.eq.s32.totalorder %v1012, 1
        %vm1045 = vcmp.eq.s32.totalorder %v1013, 1
        %vm1046 = vcmp.eq.s32.totalorder %v1014, 1
        %vm1047 = vcmp.eq.s32.totalorder %v1015, 1
        %vm1048 = vcmp.eq.s32.totalorder %v1016, 1
        %vm1049 = vcmp.eq.s32.totalorder %v1017, 1
        %vm1050 = vcmp.eq.s32.totalorder %v1018, 1
        %vm1051 = vcmp.eq.s32.totalorder %v1019, 1
        %vm1052 = vcmp.eq.s32.totalorder %v1020, 1
        %vm1053 = vcmp.eq.s32.totalorder %v1021, 1
        %vm1054 = vcmp.eq.s32.totalorder %v1022, 1
        %vm1055 = vcmp.eq.s32.totalorder %v1023, 1
        %vm1056 = vcmp.eq.s32.totalorder %v1024, 1
        %vm1057 = vcmp.eq.s32.totalorder %v1025, 1
        %vm1058 = vcmp.eq.s32.totalorder %v1026, 1
        %vm1059 = vcmp.eq.s32.totalorder %v1027, 1
        %vm1060 = vcmp.eq.s32.totalorder %v1028, 1
        %vm1061 = vcmp.eq.s32.totalorder %v1029, 1
        %vm1062 = vcmp.eq.s32.totalorder %v1030, 1
        %vm1063 = vcmp.eq.s32.totalorder %v1031, 1
        %vm1064 = vcmp.eq.s32.totalorder %v1032, 1
        %vm1065 = vcmp.eq.s32.totalorder %v1033, 1
        %vm1066 = vcmp.eq.s32.totalorder %v1034, 1
        %vm1067 = vcmp.eq.s32.totalorder %v1035, 1
        %vm1068 = vcmp.eq.s32.totalorder %v1036, 1
        %v1069 = vsel %vm1037, %v973, 0.0
        %v1070 = vsel %vm1038, %v974, 0.0
        %v1071 = vsel %vm1039, %v975, 0.0
        %v1072 = vsel %vm1040, %v976, 0.0
        %v1073 = vsel %vm1041, %v977, 0.0
        %v1074 = vsel %vm1042, %v978, 0.0
        %v1075 = vsel %vm1043, %v979, 0.0
        %v1076 = vsel %vm1044, %v980, 0.0
        %v1077 = vsel %vm1045, %v981, 0.0
        %v1078 = vsel %vm1046, %v982, 0.0
        %v1079 = vsel %vm1047, %v983, 0.0
        %v1080 = vsel %vm1048, %v984, 0.0
        %v1081 = vsel %vm1049, %v985, 0.0
        %v1082 = vsel %vm1050, %v986, 0.0
        %v1083 = vsel %vm1051, %v987, 0.0
        %v1084 = vsel %vm1052, %v988, 0.0
        %v1085 = vsel %vm1053, %v989, 0.0
        %v1086 = vsel %vm1054, %v990, 0.0
        %v1087 = vsel %vm1055, %v991, 0.0
        %v1088 = vsel %vm1056, %v992, 0.0
        %v1089 = vsel %vm1057, %v993, 0.0
        %v1090 = vsel %vm1058, %v994, 0.0
        %v1091 = vsel %vm1059, %v995, 0.0
        %v1092 = vsel %vm1060, %v996, 0.0
        %v1093 = vsel %vm1061, %v997, 0.0
        %v1094 = vsel %vm1062, %v998, 0.0
        %v1095 = vsel %vm1063, %v999, 0.0
        %v1096 = vsel %vm1064, %v1000, 0.0
        %v1097 = vsel %vm1065, %v1001, 0.0
        %v1098 = vsel %vm1066, %v1002, 0.0
        %v1099 = vsel %vm1067, %v1003, 0.0
        %v1100 = vsel %vm1068, %v1004, 0.0
        %v1101 = vld [vmem:[#allocation7] sm:$0xff]
        %v1102 = vld [vmem:[#allocation7 + $0x8] sm:$0xff]
        %v1103 = vld [vmem:[#allocation7 + $0x10] sm:$0xff]
        %v1104 = vld [vmem:[#allocation7 + $0x18] sm:$0xff]
        %v1105 = vld [vmem:[#allocation7 + $0x20] sm:$0xff]
        %v1106 = vld [vmem:[#allocation7 + $0x28] sm:$0xff]
        %v1107 = vld [vmem:[#allocation7 + $0x30] sm:$0xff]
        %v1108 = vld [vmem:[#allocation7 + $0x38] sm:$0xff]
        %v1109 = vld [vmem:[#allocation7 + $0x40] sm:$0xff]
        %v1110 = vld [vmem:[#allocation7 + $0x48] sm:$0xff]
        %v1111 = vld [vmem:[#allocation7 + $0x50] sm:$0xff]
        %v1112 = vld [vmem:[#allocation7 + $0x58] sm:$0xff]
        %v1113 = vld [vmem:[#allocation7 + $0x60] sm:$0xff]
        %v1114 = vld [vmem:[#allocation7 + $0x68] sm:$0xff]
        %v1115 = vld [vmem:[#allocation7 + $0x70] sm:$0xff]
        %v1116 = vld [vmem:[#allocation7 + $0x78] sm:$0xff]
        %1117 = vmatpush.msra.mxu0 %v1116
        %1118 = vmatpush.msra.mxu0 %v1115
        %1119 = vmatpush.msra.mxu0 %v1114
        %1120 = vmatpush.msra.mxu0 %v1113
        %1121 = vmatpush.msra.mxu0 %v1112
        %1122 = vmatpush.msra.mxu0 %v1111
        %1123 = vmatpush.msra.mxu0 %v1110
        %1124 = vmatpush.msra.mxu0 %v1109
        %1125 = vmatpush.msra.mxu0 %v1108
        %1126 = vmatpush.msra.mxu0 %v1107
        %1127 = vmatpush.msra.mxu0 %v1106
        %1128 = vmatpush.msra.mxu0 %v1105
        %1129 = vmatpush.msra.mxu0 %v1104
        %1130 = vmatpush.msra.mxu0 %v1103
        %1131 = vmatpush.msra.mxu0 %v1102
        %1132 = vmatpush.msra.mxu0 %v1101
        %1133 = vmatmul.f32.gmra.mxu0 %v1069
        %v1134 = vpop.f32.mrf.mxu0
        %v1135 = vadd.f32 0.0, %v1134
        %1136 = vmatmul.f32.gmra.mxu0 %v1070
        %v1137 = vpop.f32.mrf.mxu0
        %v1138 = vadd.f32 0.0, %v1137
        %1139 = vmatmul.f32.gmra.mxu0 %v1071
        %v1140 = vpop.f32.mrf.mxu0
        %v1141 = vadd.f32 0.0, %v1140
        %1142 = vmatmul.f32.gmra.mxu0 %v1072
        %v1143 = vpop.f32.mrf.mxu0
        %v1144 = vadd.f32 0.0, %v1143
        %1145 = vmatmul.f32.gmra.mxu0 %v1073
        %v1146 = vpop.f32.mrf.mxu0
        %v1147 = vadd.f32 0.0, %v1146
        %1148 = vmatmul.f32.gmra.mxu0 %v1074
        %v1149 = vpop.f32.mrf.mxu0
        %v1150 = vadd.f32 0.0, %v1149
        %1151 = vmatmul.f32.gmra.mxu0 %v1075
        %v1152 = vpop.f32.mrf.mxu0
        %v1153 = vadd.f32 0.0, %v1152
        %1154 = vmatmul.f32.gmra.mxu0 %v1076
        %v1155 = vpop.f32.mrf.mxu0
        %v1156 = vadd.f32 0.0, %v1155
        %1157 = vmatmul.f32.gmra.mxu0 %v1077
        %v1158 = vpop.f32.mrf.mxu0
        %v1159 = vadd.f32 0.0, %v1158
        %1160 = vmatmul.f32.gmra.mxu0 %v1078
        %v1161 = vpop.f32.mrf.mxu0
        %v1162 = vadd.f32 0.0, %v1161
        %1163 = vmatmul.f32.gmra.mxu0 %v1079
        %v1164 = vpop.f32.mrf.mxu0
        %v1165 = vadd.f32 0.0, %v1164
        %1166 = vmatmul.f32.gmra.mxu0 %v1080
        %v1167 = vpop.f32.mrf.mxu0
        %v1168 = vadd.f32 0.0, %v1167
        %1169 = vmatmul.f32.gmra.mxu0 %v1081
        %v1170 = vpop.f32.mrf.mxu0
        %v1171 = vadd.f32 0.0, %v1170
        %1172 = vmatmul.f32.gmra.mxu0 %v1082
        %v1173 = vpop.f32.mrf.mxu0
        %v1174 = vadd.f32 0.0, %v1173
        %1175 = vmatmul.f32.gmra.mxu0 %v1083
        %v1176 = vpop.f32.mrf.mxu0
        %v1177 = vadd.f32 0.0, %v1176
        %1178 = vmatmul.f32.gmra.mxu0 %v1084
        %v1179 = vpop.f32.mrf.mxu0
        %v1180 = vadd.f32 0.0, %v1179
        %1181 = vmatmul.f32.gmra.mxu0 %v1085
        %v1182 = vpop.f32.mrf.mxu0
        %v1183 = vadd.f32 0.0, %v1182
        %1184 = vmatmul.f32.gmra.mxu0 %v1086
        %v1185 = vpop.f32.mrf.mxu0
        %v1186 = vadd.f32 0.0, %v1185
        %1187 = vmatmul.f32.gmra.mxu0 %v1087
        %v1188 = vpop.f32.mrf.mxu0
        %v1189 = vadd.f32 0.0, %v1188
        %1190 = vmatmul.f32.gmra.mxu0 %v1088
        %v1191 = vpop.f32.mrf.mxu0
        %v1192 = vadd.f32 0.0, %v1191
        %1193 = vmatmul.f32.gmra.mxu0 %v1089
        %v1194 = vpop.f32.mrf.mxu0
        %v1195 = vadd.f32 0.0, %v1194
        %1196 = vmatmul.f32.gmra.mxu0 %v1090
        %v1197 = vpop.f32.mrf.mxu0
        %v1198 = vadd.f32 0.0, %v1197
        %1199 = vmatmul.f32.gmra.mxu0 %v1091
        %v1200 = vpop.f32.mrf.mxu0
        %v1201 = vadd.f32 0.0, %v1200
        %1202 = vmatmul.f32.gmra.mxu0 %v1092
        %v1203 = vpop.f32.mrf.mxu0
        %v1204 = vadd.f32 0.0, %v1203
        %1205 = vmatmul.f32.gmra.mxu0 %v1093
        %v1206 = vpop.f32.mrf.mxu0
        %v1207 = vadd.f32 0.0, %v1206
        %1208 = vmatmul.f32.gmra.mxu0 %v1094
        %v1209 = vpop.f32.mrf.mxu0
        %v1210 = vadd.f32 0.0, %v1209
        %1211 = vmatmul.f32.gmra.mxu0 %v1095
        %v1212 = vpop.f32.mrf.mxu0
        %v1213 = vadd.f32 0.0, %v1212
        %1214 = vmatmul.f32.gmra.mxu0 %v1096
        %v1215 = vpop.f32.mrf.mxu0
        %v1216 = vadd.f32 0.0, %v1215
        %1217 = vmatmul.f32.gmra.mxu0 %v1097
        %v1218 = vpop.f32.mrf.mxu0
        %v1219 = vadd.f32 0.0, %v1218
        %1220 = vmatmul.f32.gmra.mxu0 %v1098
        %v1221 = vpop.f32.mrf.mxu0
        %v1222 = vadd.f32 0.0, %v1221
        %1223 = vmatmul.f32.gmra.mxu0 %v1099
        %v1224 = vpop.f32.mrf.mxu0
        %v1225 = vadd.f32 0.0, %v1224
        %1226 = vmatmul.f32.gmra.mxu0 %v1100
        %v1227 = vpop.f32.mrf.mxu0
        %v1228 = vadd.f32 0.0, %v1227
        %1229 = vdwg.mxu0
        %v1230 = vadd.f32 %v971, %v1135
        %v1231 = vadd.f32 %v971, %v1138
        %v1232 = vadd.f32 %v971, %v1141
        %v1233 = vadd.f32 %v971, %v1144
        %v1234 = vadd.f32 %v971, %v1147
        %v1235 = vadd.f32 %v971, %v1150
        %v1236 = vadd.f32 %v971, %v1153
        %v1237 = vadd.f32 %v971, %v1156
        %v1238 = vadd.f32 %v971, %v1159
        %v1239 = vadd.f32 %v971, %v1162
        %v1240 = vadd.f32 %v971, %v1165
        %v1241 = vadd.f32 %v971, %v1168
        %v1242 = vadd.f32 %v971, %v1171
        %v1243 = vadd.f32 %v971, %v1174
        %v1244 = vadd.f32 %v971, %v1177
        %v1245 = vadd.f32 %v971, %v1180
        %v1246 = vadd.f32 %v971, %v1183
        %v1247 = vadd.f32 %v971, %v1186
        %v1248 = vadd.f32 %v971, %v1189
        %v1249 = vadd.f32 %v971, %v1192
        %v1250 = vadd.f32 %v971, %v1195
        %v1251 = vadd.f32 %v971, %v1198
        %v1252 = vadd.f32 %v971, %v1201
        %v1253 = vadd.f32 %v971, %v1204
        %v1254 = vadd.f32 %v971, %v1207
        %v1255 = vadd.f32 %v971, %v1210
        %v1256 = vadd.f32 %v971, %v1213
        %v1257 = vadd.f32 %v971, %v1216
        %v1258 = vadd.f32 %v971, %v1219
        %v1259 = vadd.f32 %v971, %v1222
        %v1260 = vadd.f32 %v971, %v1225
        %v1261 = vadd.f32 %v971, %v1228
        %v1262 = vld [vmem:[#allocation2 + $0x8] sm:$0xff]
        %v1263 = vld [vmem:[#allocation2 + $0x10] sm:$0xff]
        %v1264 = vld [vmem:[#allocation2 + $0x18] sm:$0xff]
        %v1265 = vld [vmem:[#allocation2 + $0x20] sm:$0xff]
        %v1266 = vld [vmem:[#allocation2 + $0x28] sm:$0xff]
        %v1267 = vld [vmem:[#allocation2 + $0x30] sm:$0xff]
        %v1268 = vld [vmem:[#allocation2 + $0x38] sm:$0xff]
        %v1269 = vld [vmem:[#allocation2 + $0x40] sm:$0xff]
        %v1270 = vld [vmem:[#allocation2 + $0x48] sm:$0xff]
        %v1271 = vld [vmem:[#allocation2 + $0x50] sm:$0xff]
        %v1272 = vld [vmem:[#allocation2 + $0x58] sm:$0xff]
        %v1273 = vld [vmem:[#allocation2 + $0x60] sm:$0xff]
        %v1274 = vld [vmem:[#allocation2 + $0x68] sm:$0xff]
        %v1275 = vld [vmem:[#allocation2 + $0x70] sm:$0xff]
        %v1276 = vld [vmem:[#allocation2 + $0x78] sm:$0xff]
        %v1277 = vld [vmem:[#allocation2 + $0x80] sm:$0xff]
        %v1278 = vld [vmem:[#allocation2 + $0x88] sm:$0xff]
        %v1279 = vld [vmem:[#allocation2 + $0x90] sm:$0xff]
        %v1280 = vld [vmem:[#allocation2 + $0x98] sm:$0xff]
        %v1281 = vld [vmem:[#allocation2 + $0xa0] sm:$0xff]
        %v1282 = vld [vmem:[#allocation2 + $0xa8] sm:$0xff]
        %v1283 = vld [vmem:[#allocation2 + $0xb0] sm:$0xff]
        %v1284 = vld [vmem:[#allocation2 + $0xb8] sm:$0xff]
        %v1285 = vld [vmem:[#allocation2 + $0xc0] sm:$0xff]
        %v1286 = vld [vmem:[#allocation2 + $0xc8] sm:$0xff]
        %v1287 = vld [vmem:[#allocation2 + $0xd0] sm:$0xff]
        %v1288 = vld [vmem:[#allocation2 + $0xd8] sm:$0xff]
        %v1289 = vld [vmem:[#allocation2 + $0xe0] sm:$0xff]
        %v1290 = vld [vmem:[#allocation2 + $0xe8] sm:$0xff]
        %v1291 = vld [vmem:[#allocation2 + $0xf0] sm:$0xff]
        %v1292 = vld [vmem:[#allocation2 + $0xf8] sm:$0xff]
        %v1293 = vld [vmem:[#allocation2 + $0x100] sm:$0xff]
        %s1294 = scalar_lea.vmem [#allocation7], 128
        %v1295 = vld [vmem:[%s1294] sm:$0xff]
        %v1296 = vld [vmem:[%s1294 + $0x8] sm:$0xff]
        %v1297 = vld [vmem:[%s1294 + $0x10] sm:$0xff]
        %v1298 = vld [vmem:[%s1294 + $0x18] sm:$0xff]
        %v1299 = vld [vmem:[%s1294 + $0x20] sm:$0xff]
        %v1300 = vld [vmem:[%s1294 + $0x28] sm:$0xff]
        %v1301 = vld [vmem:[%s1294 + $0x30] sm:$0xff]
        %v1302 = vld [vmem:[%s1294 + $0x38] sm:$0xff]
        %v1303 = vld [vmem:[%s1294 + $0x40] sm:$0xff]
        %v1304 = vld [vmem:[%s1294 + $0x48] sm:$0xff]
        %v1305 = vld [vmem:[%s1294 + $0x50] sm:$0xff]
        %v1306 = vld [vmem:[%s1294 + $0x58] sm:$0xff]
        %v1307 = vld [vmem:[%s1294 + $0x60] sm:$0xff]
        %v1308 = vld [vmem:[%s1294 + $0x68] sm:$0xff]
        %v1309 = vld [vmem:[%s1294 + $0x70] sm:$0xff]
        %v1310 = vld [vmem:[%s1294 + $0x78] sm:$0xff]
        %1311 = vmatpush.msra.mxu0 %v1310
        %1312 = vmatpush.msra.mxu0 %v1309
        %1313 = vmatpush.msra.mxu0 %v1308
        %1314 = vmatpush.msra.mxu0 %v1307
        %1315 = vmatpush.msra.mxu0 %v1306
        %1316 = vmatpush.msra.mxu0 %v1305
        %1317 = vmatpush.msra.mxu0 %v1304
        %1318 = vmatpush.msra.mxu0 %v1303
        %1319 = vmatpush.msra.mxu0 %v1302
        %1320 = vmatpush.msra.mxu0 %v1301
        %1321 = vmatpush.msra.mxu0 %v1300
        %1322 = vmatpush.msra.mxu0 %v1299
        %1323 = vmatpush.msra.mxu0 %v1298
        %1324 = vmatpush.msra.mxu0 %v1297
        %1325 = vmatpush.msra.mxu0 %v1296
        %1326 = vmatpush.msra.mxu0 %v1295
        %1327 = vmatmul.f32.gmra.mxu0 %v1262
        %v1328 = vpop.f32.mrf.mxu0
        %v1329 = vadd.f32 0.0, %v1328
        %1330 = vmatmul.f32.gmra.mxu0 %v1263
        %v1331 = vpop.f32.mrf.mxu0
        %v1332 = vadd.f32 0.0, %v1331
        %1333 = vmatmul.f32.gmra.mxu0 %v1264
        %v1334 = vpop.f32.mrf.mxu0
        %v1335 = vadd.f32 0.0, %v1334
        %1336 = vmatmul.f32.gmra.mxu0 %v1265
        %v1337 = vpop.f32.mrf.mxu0
        %v1338 = vadd.f32 0.0, %v1337
        %1339 = vmatmul.f32.gmra.mxu0 %v1266
        %v1340 = vpop.f32.mrf.mxu0
        %v1341 = vadd.f32 0.0, %v1340
        %1342 = vmatmul.f32.gmra.mxu0 %v1267
        %v1343 = vpop.f32.mrf.mxu0
        %v1344 = vadd.f32 0.0, %v1343
        %1345 = vmatmul.f32.gmra.mxu0 %v1268
        %v1346 = vpop.f32.mrf.mxu0
        %v1347 = vadd.f32 0.0, %v1346
        %1348 = vmatmul.f32.gmra.mxu0 %v1269
        %v1349 = vpop.f32.mrf.mxu0
        %v1350 = vadd.f32 0.0, %v1349
        %1351 = vmatmul.f32.gmra.mxu0 %v1270
        %v1352 = vpop.f32.mrf.mxu0
        %v1353 = vadd.f32 0.0, %v1352
        %1354 = vmatmul.f32.gmra.mxu0 %v1271
        %v1355 = vpop.f32.mrf.mxu0
        %v1356 = vadd.f32 0.0, %v1355
        %1357 = vmatmul.f32.gmra.mxu0 %v1272
        %v1358 = vpop.f32.mrf.mxu0
        %v1359 = vadd.f32 0.0, %v1358
        %1360 = vmatmul.f32.gmra.mxu0 %v1273
        %v1361 = vpop.f32.mrf.mxu0
        %v1362 = vadd.f32 0.0, %v1361
        %1363 = vmatmul.f32.gmra.mxu0 %v1274
        %v1364 = vpop.f32.mrf.mxu0
        %v1365 = vadd.f32 0.0, %v1364
        %1366 = vmatmul.f32.gmra.mxu0 %v1275
        %v1367 = vpop.f32.mrf.mxu0
        %v1368 = vadd.f32 0.0, %v1367
        %1369 = vmatmul.f32.gmra.mxu0 %v1276
        %v1370 = vpop.f32.mrf.mxu0
        %v1371 = vadd.f32 0.0, %v1370
        %1372 = vmatmul.f32.gmra.mxu0 %v1277
        %v1373 = vpop.f32.mrf.mxu0
        %v1374 = vadd.f32 0.0, %v1373
        %1375 = vmatmul.f32.gmra.mxu0 %v1278
        %v1376 = vpop.f32.mrf.mxu0
        %v1377 = vadd.f32 0.0, %v1376
        %1378 = vmatmul.f32.gmra.mxu0 %v1279
        %v1379 = vpop.f32.mrf.mxu0
        %v1380 = vadd.f32 0.0, %v1379
        %1381 = vmatmul.f32.gmra.mxu0 %v1280
        %v1382 = vpop.f32.mrf.mxu0
        %v1383 = vadd.f32 0.0, %v1382
        %1384 = vmatmul.f32.gmra.mxu0 %v1281
        %v1385 = vpop.f32.mrf.mxu0
        %v1386 = vadd.f32 0.0, %v1385
        %1387 = vmatmul.f32.gmra.mxu0 %v1282
        %v1388 = vpop.f32.mrf.mxu0
        %v1389 = vadd.f32 0.0, %v1388
        %1390 = vmatmul.f32.gmra.mxu0 %v1283
        %v1391 = vpop.f32.mrf.mxu0
        %v1392 = vadd.f32 0.0, %v1391
        %1393 = vmatmul.f32.gmra.mxu0 %v1284
        %v1394 = vpop.f32.mrf.mxu0
        %v1395 = vadd.f32 0.0, %v1394
        %1396 = vmatmul.f32.gmra.mxu0 %v1285
        %v1397 = vpop.f32.mrf.mxu0
        %v1398 = vadd.f32 0.0, %v1397
        %1399 = vmatmul.f32.gmra.mxu0 %v1286
        %v1400 = vpop.f32.mrf.mxu0
        %v1401 = vadd.f32 0.0, %v1400
        %1402 = vmatmul.f32.gmra.mxu0 %v1287
        %v1403 = vpop.f32.mrf.mxu0
        %v1404 = vadd.f32 0.0, %v1403
        %1405 = vmatmul.f32.gmra.mxu0 %v1288
        %v1406 = vpop.f32.mrf.mxu0
        %v1407 = vadd.f32 0.0, %v1406
        %1408 = vmatmul.f32.gmra.mxu0 %v1289
        %v1409 = vpop.f32.mrf.mxu0
        %v1410 = vadd.f32 0.0, %v1409
        %1411 = vmatmul.f32.gmra.mxu0 %v1290
        %v1412 = vpop.f32.mrf.mxu0
        %v1413 = vadd.f32 0.0, %v1412
        %1414 = vmatmul.f32.gmra.mxu0 %v1291
        %v1415 = vpop.f32.mrf.mxu0
        %v1416 = vadd.f32 0.0, %v1415
        %1417 = vmatmul.f32.gmra.mxu0 %v1292
        %v1418 = vpop.f32.mrf.mxu0
        %v1419 = vadd.f32 0.0, %v1418
        %1420 = vmatmul.f32.gmra.mxu0 %v1293
        %v1421 = vpop.f32.mrf.mxu0
        %v1422 = vadd.f32 0.0, %v1421
        %1423 = vdwg.mxu0
        %v1424 = vadd.f32 %v1230, %v1329
        %v1425 = vadd.f32 %v1231, %v1332
        %v1426 = vadd.f32 %v1232, %v1335
        %v1427 = vadd.f32 %v1233, %v1338
        %v1428 = vadd.f32 %v1234, %v1341
        %v1429 = vadd.f32 %v1235, %v1344
        %v1430 = vadd.f32 %v1236, %v1347
        %v1431 = vadd.f32 %v1237, %v1350
        %v1432 = vadd.f32 %v1238, %v1353
        %v1433 = vadd.f32 %v1239, %v1356
        %v1434 = vadd.f32 %v1240, %v1359
        %v1435 = vadd.f32 %v1241, %v1362
        %v1436 = vadd.f32 %v1242, %v1365
        %v1437 = vadd.f32 %v1243, %v1368
        %v1438 = vadd.f32 %v1244, %v1371
        %v1439 = vadd.f32 %v1245, %v1374
        %v1440 = vadd.f32 %v1246, %v1377
        %v1441 = vadd.f32 %v1247, %v1380
        %v1442 = vadd.f32 %v1248, %v1383
        %v1443 = vadd.f32 %v1249, %v1386
        %v1444 = vadd.f32 %v1250, %v1389
        %v1445 = vadd.f32 %v1251, %v1392
        %v1446 = vadd.f32 %v1252, %v1395
        %v1447 = vadd.f32 %v1253, %v1398
        %v1448 = vadd.f32 %v1254, %v1401
        %v1449 = vadd.f32 %v1255, %v1404
        %v1450 = vadd.f32 %v1256, %v1407
        %v1451 = vadd.f32 %v1257, %v1410
        %v1452 = vadd.f32 %v1258, %v1413
        %v1453 = vadd.f32 %v1259, %v1416
        %v1454 = vadd.f32 %v1260, %v1419
        %v1455 = vadd.f32 %v1261, %v1422
        %v1456 = vld [vmem:[#allocation2 + $0x9] sm:$0xff]
        %v1457 = vld [vmem:[#allocation2 + $0x11] sm:$0xff]
        %v1458 = vld [vmem:[#allocation2 + $0x19] sm:$0xff]
        %v1459 = vld [vmem:[#allocation2 + $0x21] sm:$0xff]
        %v1460 = vld [vmem:[#allocation2 + $0x29] sm:$0xff]
        %v1461 = vld [vmem:[#allocation2 + $0x31] sm:$0xff]
        %v1462 = vld [vmem:[#allocation2 + $0x39] sm:$0xff]
        %v1463 = vld [vmem:[#allocation2 + $0x41] sm:$0xff]
        %v1464 = vld [vmem:[#allocation2 + $0x49] sm:$0xff]
        %v1465 = vld [vmem:[#allocation2 + $0x51] sm:$0xff]
        %v1466 = vld [vmem:[#allocation2 + $0x59] sm:$0xff]
        %v1467 = vld [vmem:[#allocation2 + $0x61] sm:$0xff]
        %v1468 = vld [vmem:[#allocation2 + $0x69] sm:$0xff]
        %v1469 = vld [vmem:[#allocation2 + $0x71] sm:$0xff]
        %v1470 = vld [vmem:[#allocation2 + $0x79] sm:$0xff]
        %v1471 = vld [vmem:[#allocation2 + $0x81] sm:$0xff]
        %v1472 = vld [vmem:[#allocation2 + $0x89] sm:$0xff]
        %v1473 = vld [vmem:[#allocation2 + $0x91] sm:$0xff]
        %v1474 = vld [vmem:[#allocation2 + $0x99] sm:$0xff]
        %v1475 = vld [vmem:[#allocation2 + $0xa1] sm:$0xff]
        %v1476 = vld [vmem:[#allocation2 + $0xa9] sm:$0xff]
        %v1477 = vld [vmem:[#allocation2 + $0xb1] sm:$0xff]
        %v1478 = vld [vmem:[#allocation2 + $0xb9] sm:$0xff]
        %v1479 = vld [vmem:[#allocation2 + $0xc1] sm:$0xff]
        %v1480 = vld [vmem:[#allocation2 + $0xc9] sm:$0xff]
        %v1481 = vld [vmem:[#allocation2 + $0xd1] sm:$0xff]
        %v1482 = vld [vmem:[#allocation2 + $0xd9] sm:$0xff]
        %v1483 = vld [vmem:[#allocation2 + $0xe1] sm:$0xff]
        %v1484 = vld [vmem:[#allocation2 + $0xe9] sm:$0xff]
        %v1485 = vld [vmem:[#allocation2 + $0xf1] sm:$0xff]
        %v1486 = vld [vmem:[#allocation2 + $0xf9] sm:$0xff]
        %v1487 = vld [vmem:[#allocation2 + $0x101] sm:$0xff]
        %v1488 = vsel %vm937, 1, 0
        %v1489 = vsel %vm938, 1, 0
        %v1490 = vsel %vm939, 1, 0
        %v1491 = vsel %vm940, 1, 0
        %v1492 = vsel %vm941, 1, 0
        %v1493 = vsel %vm942, 1, 0
        %v1494 = vsel %vm943, 1, 0
        %v1495 = vsel %vm944, 1, 0
        %v1496 = vsel %vm945, 1, 0
        %v1497 = vsel %vm946, 1, 0
        %v1498 = vsel %vm947, 1, 0
        %v1499 = vsel %vm948, 1, 0
        %v1500 = vsel %vm949, 1, 0
        %v1501 = vsel %vm950, 1, 0
        %v1502 = vsel %vm951, 1, 0
        %v1503 = vsel %vm952, 1, 0
        %v1504 = vsel %vm953, 1, 0
        %v1505 = vsel %vm954, 1, 0
        %v1506 = vsel %vm955, 1, 0
        %v1507 = vsel %vm956, 1, 0
        %v1508 = vsel %vm957, 1, 0
        %v1509 = vsel %vm958, 1, 0
        %v1510 = vsel %vm959, 1, 0
        %v1511 = vsel %vm960, 1, 0
        %v1512 = vsel %vm961, 1, 0
        %v1513 = vsel %vm962, 1, 0
        %v1514 = vsel %vm963, 1, 0
        %v1515 = vsel %vm964, 1, 0
        %v1516 = vsel %vm965, 1, 0
        %v1517 = vsel %vm966, 1, 0
        %v1518 = vsel %vm967, 1, 0
        %v1519 = vsel %vm968, 1, 0
        %vm1520 = vcmp.eq.s32.totalorder %v1488, 1
        %vm1521 = vcmp.eq.s32.totalorder %v1489, 1
        %vm1522 = vcmp.eq.s32.totalorder %v1490, 1
        %vm1523 = vcmp.eq.s32.totalorder %v1491, 1
        %vm1524 = vcmp.eq.s32.totalorder %v1492, 1
        %vm1525 = vcmp.eq.s32.totalorder %v1493, 1
        %vm1526 = vcmp.eq.s32.totalorder %v1494, 1
        %vm1527 = vcmp.eq.s32.totalorder %v1495, 1
        %vm1528 = vcmp.eq.s32.totalorder %v1496, 1
        %vm1529 = vcmp.eq.s32.totalorder %v1497, 1
        %vm1530 = vcmp.eq.s32.totalorder %v1498, 1
        %vm1531 = vcmp.eq.s32.totalorder %v1499, 1
        %vm1532 = vcmp.eq.s32.totalorder %v1500, 1
        %vm1533 = vcmp.eq.s32.totalorder %v1501, 1
        %vm1534 = vcmp.eq.s32.totalorder %v1502, 1
        %vm1535 = vcmp.eq.s32.totalorder %v1503, 1
        %vm1536 = vcmp.eq.s32.totalorder %v1504, 1
        %vm1537 = vcmp.eq.s32.totalorder %v1505, 1
        %vm1538 = vcmp.eq.s32.totalorder %v1506, 1
        %vm1539 = vcmp.eq.s32.totalorder %v1507, 1
        %vm1540 = vcmp.eq.s32.totalorder %v1508, 1
        %vm1541 = vcmp.eq.s32.totalorder %v1509, 1
        %vm1542 = vcmp.eq.s32.totalorder %v1510, 1
        %vm1543 = vcmp.eq.s32.totalorder %v1511, 1
        %vm1544 = vcmp.eq.s32.totalorder %v1512, 1
        %vm1545 = vcmp.eq.s32.totalorder %v1513, 1
        %vm1546 = vcmp.eq.s32.totalorder %v1514, 1
        %vm1547 = vcmp.eq.s32.totalorder %v1515, 1
        %vm1548 = vcmp.eq.s32.totalorder %v1516, 1
        %vm1549 = vcmp.eq.s32.totalorder %v1517, 1
        %vm1550 = vcmp.eq.s32.totalorder %v1518, 1
        %vm1551 = vcmp.eq.s32.totalorder %v1519, 1
        %v1552 = vsel %vm1520, %v1456, 0.0
        %v1553 = vsel %vm1521, %v1457, 0.0
        %v1554 = vsel %vm1522, %v1458, 0.0
        %v1555 = vsel %vm1523, %v1459, 0.0
        %v1556 = vsel %vm1524, %v1460, 0.0
        %v1557 = vsel %vm1525, %v1461, 0.0
        %v1558 = vsel %vm1526, %v1462, 0.0
        %v1559 = vsel %vm1527, %v1463, 0.0
        %v1560 = vsel %vm1528, %v1464, 0.0
        %v1561 = vsel %vm1529, %v1465, 0.0
        %v1562 = vsel %vm1530, %v1466, 0.0
        %v1563 = vsel %vm1531, %v1467, 0.0
        %v1564 = vsel %vm1532, %v1468, 0.0
        %v1565 = vsel %vm1533, %v1469, 0.0
        %v1566 = vsel %vm1534, %v1470, 0.0
        %v1567 = vsel %vm1535, %v1471, 0.0
        %v1568 = vsel %vm1536, %v1472, 0.0
        %v1569 = vsel %vm1537, %v1473, 0.0
        %v1570 = vsel %vm1538, %v1474, 0.0
        %v1571 = vsel %vm1539, %v1475, 0.0
        %v1572 = vsel %vm1540, %v1476, 0.0
        %v1573 = vsel %vm1541, %v1477, 0.0
        %v1574 = vsel %vm1542, %v1478, 0.0
        %v1575 = vsel %vm1543, %v1479, 0.0
        %v1576 = vsel %vm1544, %v1480, 0.0
        %v1577 = vsel %vm1545, %v1481, 0.0
        %v1578 = vsel %vm1546, %v1482, 0.0
        %v1579 = vsel %vm1547, %v1483, 0.0
        %v1580 = vsel %vm1548, %v1484, 0.0
        %v1581 = vsel %vm1549, %v1485, 0.0
        %v1582 = vsel %vm1550, %v1486, 0.0
        %v1583 = vsel %vm1551, %v1487, 0.0
        %s1584 = scalar_lea.vmem [#allocation7], 256
        %v1585 = vld [vmem:[%s1584] sm:$0xff]
        %v1586 = vld [vmem:[%s1584 + $0x8] sm:$0xff]
        %v1587 = vld [vmem:[%s1584 + $0x10] sm:$0xff]
        %v1588 = vld [vmem:[%s1584 + $0x18] sm:$0xff]
        %v1589 = vld [vmem:[%s1584 + $0x20] sm:$0xff]
        %v1590 = vld [vmem:[%s1584 + $0x28] sm:$0xff]
        %v1591 = vld [vmem:[%s1584 + $0x30] sm:$0xff]
        %v1592 = vld [vmem:[%s1584 + $0x38] sm:$0xff]
        %v1593 = vld [vmem:[%s1584 + $0x40] sm:$0xff]
        %v1594 = vld [vmem:[%s1584 + $0x48] sm:$0xff]
        %v1595 = vld [vmem:[%s1584 + $0x50] sm:$0xff]
        %v1596 = vld [vmem:[%s1584 + $0x58] sm:$0xff]
        %v1597 = vld [vmem:[%s1584 + $0x60] sm:$0xff]
        %v1598 = vld [vmem:[%s1584 + $0x68] sm:$0xff]
        %v1599 = vld [vmem:[%s1584 + $0x70] sm:$0xff]
        %v1600 = vld [vmem:[%s1584 + $0x78] sm:$0xff]
        %1601 = vmatpush.msra.mxu0 %v1600
        %1602 = vmatpush.msra.mxu0 %v1599
        %1603 = vmatpush.msra.mxu0 %v1598
        %1604 = vmatpush.msra.mxu0 %v1597
        %1605 = vmatpush.msra.mxu0 %v1596
        %1606 = vmatpush.msra.mxu0 %v1595
        %1607 = vmatpush.msra.mxu0 %v1594
        %1608 = vmatpush.msra.mxu0 %v1593
        %1609 = vmatpush.msra.mxu0 %v1592
        %1610 = vmatpush.msra.mxu0 %v1591
        %1611 = vmatpush.msra.mxu0 %v1590
        %1612 = vmatpush.msra.mxu0 %v1589
        %1613 = vmatpush.msra.mxu0 %v1588
        %1614 = vmatpush.msra.mxu0 %v1587
        %1615 = vmatpush.msra.mxu0 %v1586
        %1616 = vmatpush.msra.mxu0 %v1585
        %1617 = vmatmul.f32.gmra.mxu0 %v1552
        %v1618 = vpop.f32.mrf.mxu0
        %v1619 = vadd.f32 0.0, %v1618
        %1620 = vmatmul.f32.gmra.mxu0 %v1553
        %v1621 = vpop.f32.mrf.mxu0
        %v1622 = vadd.f32 0.0, %v1621
        %1623 = vmatmul.f32.gmra.mxu0 %v1554
        %v1624 = vpop.f32.mrf.mxu0
        %v1625 = vadd.f32 0.0, %v1624
        %1626 = vmatmul.f32.gmra.mxu0 %v1555
        %v1627 = vpop.f32.mrf.mxu0
        %v1628 = vadd.f32 0.0, %v1627
        %1629 = vmatmul.f32.gmra.mxu0 %v1556
        %v1630 = vpop.f32.mrf.mxu0
        %v1631 = vadd.f32 0.0, %v1630
        %1632 = vmatmul.f32.gmra.mxu0 %v1557
        %v1633 = vpop.f32.mrf.mxu0
        %v1634 = vadd.f32 0.0, %v1633
        %1635 = vmatmul.f32.gmra.mxu0 %v1558
        %v1636 = vpop.f32.mrf.mxu0
        %v1637 = vadd.f32 0.0, %v1636
        %1638 = vmatmul.f32.gmra.mxu0 %v1559
        %v1639 = vpop.f32.mrf.mxu0
        %v1640 = vadd.f32 0.0, %v1639
        %1641 = vmatmul.f32.gmra.mxu0 %v1560
        %v1642 = vpop.f32.mrf.mxu0
        %v1643 = vadd.f32 0.0, %v1642
        %1644 = vmatmul.f32.gmra.mxu0 %v1561
        %v1645 = vpop.f32.mrf.mxu0
        %v1646 = vadd.f32 0.0, %v1645
        %1647 = vmatmul.f32.gmra.mxu0 %v1562
        %v1648 = vpop.f32.mrf.mxu0
        %v1649 = vadd.f32 0.0, %v1648
        %1650 = vmatmul.f32.gmra.mxu0 %v1563
        %v1651 = vpop.f32.mrf.mxu0
        %v1652 = vadd.f32 0.0, %v1651
        %1653 = vmatmul.f32.gmra.mxu0 %v1564
        %v1654 = vpop.f32.mrf.mxu0
        %v1655 = vadd.f32 0.0, %v1654
        %1656 = vmatmul.f32.gmra.mxu0 %v1565
        %v1657 = vpop.f32.mrf.mxu0
        %v1658 = vadd.f32 0.0, %v1657
        %1659 = vmatmul.f32.gmra.mxu0 %v1566
        %v1660 = vpop.f32.mrf.mxu0
        %v1661 = vadd.f32 0.0, %v1660
        %1662 = vmatmul.f32.gmra.mxu0 %v1567
        %v1663 = vpop.f32.mrf.mxu0
        %v1664 = vadd.f32 0.0, %v1663
        %1665 = vmatmul.f32.gmra.mxu0 %v1568
        %v1666 = vpop.f32.mrf.mxu0
        %v1667 = vadd.f32 0.0, %v1666
        %1668 = vmatmul.f32.gmra.mxu0 %v1569
        %v1669 = vpop.f32.mrf.mxu0
        %v1670 = vadd.f32 0.0, %v1669
        %1671 = vmatmul.f32.gmra.mxu0 %v1570
        %v1672 = vpop.f32.mrf.mxu0
        %v1673 = vadd.f32 0.0, %v1672
        %1674 = vmatmul.f32.gmra.mxu0 %v1571
        %v1675 = vpop.f32.mrf.mxu0
        %v1676 = vadd.f32 0.0, %v1675
        %1677 = vmatmul.f32.gmra.mxu0 %v1572
        %v1678 = vpop.f32.mrf.mxu0
        %v1679 = vadd.f32 0.0, %v1678
        %1680 = vmatmul.f32.gmra.mxu0 %v1573
        %v1681 = vpop.f32.mrf.mxu0
        %v1682 = vadd.f32 0.0, %v1681
        %1683 = vmatmul.f32.gmra.mxu0 %v1574
        %v1684 = vpop.f32.mrf.mxu0
        %v1685 = vadd.f32 0.0, %v1684
        %1686 = vmatmul.f32.gmra.mxu0 %v1575
        %v1687 = vpop.f32.mrf.mxu0
        %v1688 = vadd.f32 0.0, %v1687
        %1689 = vmatmul.f32.gmra.mxu0 %v1576
        %v1690 = vpop.f32.mrf.mxu0
        %v1691 = vadd.f32 0.0, %v1690
        %1692 = vmatmul.f32.gmra.mxu0 %v1577
        %v1693 = vpop.f32.mrf.mxu0
        %v1694 = vadd.f32 0.0, %v1693
        %1695 = vmatmul.f32.gmra.mxu0 %v1578
        %v1696 = vpop.f32.mrf.mxu0
        %v1697 = vadd.f32 0.0, %v1696
        %1698 = vmatmul.f32.gmra.mxu0 %v1579
        %v1699 = vpop.f32.mrf.mxu0
        %v1700 = vadd.f32 0.0, %v1699
        %1701 = vmatmul.f32.gmra.mxu0 %v1580
        %v1702 = vpop.f32.mrf.mxu0
        %v1703 = vadd.f32 0.0, %v1702
        %1704 = vmatmul.f32.gmra.mxu0 %v1581
        %v1705 = vpop.f32.mrf.mxu0
        %v1706 = vadd.f32 0.0, %v1705
        %1707 = vmatmul.f32.gmra.mxu0 %v1582
        %v1708 = vpop.f32.mrf.mxu0
        %v1709 = vadd.f32 0.0, %v1708
        %1710 = vmatmul.f32.gmra.mxu0 %v1583
        %v1711 = vpop.f32.mrf.mxu0
        %v1712 = vadd.f32 0.0, %v1711
        %1713 = vdwg.mxu0
        %v1714 = vadd.f32 %v1424, %v1619
        %v1715 = vadd.f32 %v1425, %v1622
        %v1716 = vadd.f32 %v1426, %v1625
        %v1717 = vadd.f32 %v1427, %v1628
        %v1718 = vadd.f32 %v1428, %v1631
        %v1719 = vadd.f32 %v1429, %v1634
        %v1720 = vadd.f32 %v1430, %v1637
        %v1721 = vadd.f32 %v1431, %v1640
        %v1722 = vadd.f32 %v1432, %v1643
        %v1723 = vadd.f32 %v1433, %v1646
        %v1724 = vadd.f32 %v1434, %v1649
        %v1725 = vadd.f32 %v1435, %v1652
        %v1726 = vadd.f32 %v1436, %v1655
        %v1727 = vadd.f32 %v1437, %v1658
        %v1728 = vadd.f32 %v1438, %v1661
        %v1729 = vadd.f32 %v1439, %v1664
        %v1730 = vadd.f32 %v1440, %v1667
        %v1731 = vadd.f32 %v1441, %v1670
        %v1732 = vadd.f32 %v1442, %v1673
        %v1733 = vadd.f32 %v1443, %v1676
        %v1734 = vadd.f32 %v1444, %v1679
        %v1735 = vadd.f32 %v1445, %v1682
        %v1736 = vadd.f32 %v1446, %v1685
        %v1737 = vadd.f32 %v1447, %v1688
        %v1738 = vadd.f32 %v1448, %v1691
        %v1739 = vadd.f32 %v1449, %v1694
        %v1740 = vadd.f32 %v1450, %v1697
        %v1741 = vadd.f32 %v1451, %v1700
        %v1742 = vadd.f32 %v1452, %v1703
        %v1743 = vadd.f32 %v1453, %v1706
        %v1744 = vadd.f32 %v1454, %v1709
        %v1745 = vadd.f32 %v1455, %v1712
        %v1746 = vld [vmem:[#allocation2 + $0x17] sm:$0xff]
        %v1747 = vld [vmem:[#allocation2 + $0x1f] sm:$0xff]
        %v1748 = vld [vmem:[#allocation2 + $0x27] sm:$0xff]
        %v1749 = vld [vmem:[#allocation2 + $0x2f] sm:$0xff]
        %v1750 = vld [vmem:[#allocation2 + $0x37] sm:$0xff]
        %v1751 = vld [vmem:[#allocation2 + $0x3f] sm:$0xff]
        %v1752 = vld [vmem:[#allocation2 + $0x47] sm:$0xff]
        %v1753 = vld [vmem:[#allocation2 + $0x4f] sm:$0xff]
        %v1754 = vld [vmem:[#allocation2 + $0x57] sm:$0xff]
        %v1755 = vld [vmem:[#allocation2 + $0x5f] sm:$0xff]
        %v1756 = vld [vmem:[#allocation2 + $0x67] sm:$0xff]
        %v1757 = vld [vmem:[#allocation2 + $0x6f] sm:$0xff]
        %v1758 = vld [vmem:[#allocation2 + $0x77] sm:$0xff]
        %v1759 = vld [vmem:[#allocation2 + $0x7f] sm:$0xff]
        %v1760 = vld [vmem:[#allocation2 + $0x87] sm:$0xff]
        %v1761 = vld [vmem:[#allocation2 + $0x8f] sm:$0xff]
        %v1762 = vld [vmem:[#allocation2 + $0x97] sm:$0xff]
        %v1763 = vld [vmem:[#allocation2 + $0x9f] sm:$0xff]
        %v1764 = vld [vmem:[#allocation2 + $0xa7] sm:$0xff]
        %v1765 = vld [vmem:[#allocation2 + $0xaf] sm:$0xff]
        %v1766 = vld [vmem:[#allocation2 + $0xb7] sm:$0xff]
        %v1767 = vld [vmem:[#allocation2 + $0xbf] sm:$0xff]
        %v1768 = vld [vmem:[#allocation2 + $0xc7] sm:$0xff]
        %v1769 = vld [vmem:[#allocation2 + $0xcf] sm:$0xff]
        %v1770 = vld [vmem:[#allocation2 + $0xd7] sm:$0xff]
        %v1771 = vld [vmem:[#allocation2 + $0xdf] sm:$0xff]
        %v1772 = vld [vmem:[#allocation2 + $0xe7] sm:$0xff]
        %v1773 = vld [vmem:[#allocation2 + $0xef] sm:$0xff]
        %v1774 = vld [vmem:[#allocation2 + $0xf7] sm:$0xff]
        %v1775 = vld [vmem:[#allocation2 + $0xff] sm:$0xff]
        %v1776 = vld [vmem:[#allocation2 + $0x107] sm:$0xff]
        %v1777 = vld [vmem:[#allocation2 + $0x10f] sm:$0xff]
        %v1778 = vsel %vm1037, %v1746, 0.0
        %v1779 = vsel %vm1038, %v1747, 0.0
        %v1780 = vsel %vm1039, %v1748, 0.0
        %v1781 = vsel %vm1040, %v1749, 0.0
        %v1782 = vsel %vm1041, %v1750, 0.0
        %v1783 = vsel %vm1042, %v1751, 0.0
        %v1784 = vsel %vm1043, %v1752, 0.0
        %v1785 = vsel %vm1044, %v1753, 0.0
        %v1786 = vsel %vm1045, %v1754, 0.0
        %v1787 = vsel %vm1046, %v1755, 0.0
        %v1788 = vsel %vm1047, %v1756, 0.0
        %v1789 = vsel %vm1048, %v1757, 0.0
        %v1790 = vsel %vm1049, %v1758, 0.0
        %v1791 = vsel %vm1050, %v1759, 0.0
        %v1792 = vsel %vm1051, %v1760, 0.0
        %v1793 = vsel %vm1052, %v1761, 0.0
        %v1794 = vsel %vm1053, %v1762, 0.0
        %v1795 = vsel %vm1054, %v1763, 0.0
        %v1796 = vsel %vm1055, %v1764, 0.0
        %v1797 = vsel %vm1056, %v1765, 0.0
        %v1798 = vsel %vm1057, %v1766, 0.0
        %v1799 = vsel %vm1058, %v1767, 0.0
        %v1800 = vsel %vm1059, %v1768, 0.0
        %v1801 = vsel %vm1060, %v1769, 0.0
        %v1802 = vsel %vm1061, %v1770, 0.0
        %v1803 = vsel %vm1062, %v1771, 0.0
        %v1804 = vsel %vm1063, %v1772, 0.0
        %v1805 = vsel %vm1064, %v1773, 0.0
        %v1806 = vsel %vm1065, %v1774, 0.0
        %v1807 = vsel %vm1066, %v1775, 0.0
        %v1808 = vsel %vm1067, %v1776, 0.0
        %v1809 = vsel %vm1068, %v1777, 0.0
        %s1810 = scalar_lea.vmem [#allocation7], 384
        %v1811 = vld [vmem:[%s1810] sm:$0xff]
        %v1812 = vld [vmem:[%s1810 + $0x8] sm:$0xff]
        %v1813 = vld [vmem:[%s1810 + $0x10] sm:$0xff]
        %v1814 = vld [vmem:[%s1810 + $0x18] sm:$0xff]
        %v1815 = vld [vmem:[%s1810 + $0x20] sm:$0xff]
        %v1816 = vld [vmem:[%s1810 + $0x28] sm:$0xff]
        %v1817 = vld [vmem:[%s1810 + $0x30] sm:$0xff]
        %v1818 = vld [vmem:[%s1810 + $0x38] sm:$0xff]
        %v1819 = vld [vmem:[%s1810 + $0x40] sm:$0xff]
        %v1820 = vld [vmem:[%s1810 + $0x48] sm:$0xff]
        %v1821 = vld [vmem:[%s1810 + $0x50] sm:$0xff]
        %v1822 = vld [vmem:[%s1810 + $0x58] sm:$0xff]
        %v1823 = vld [vmem:[%s1810 + $0x60] sm:$0xff]
        %v1824 = vld [vmem:[%s1810 + $0x68] sm:$0xff]
        %v1825 = vld [vmem:[%s1810 + $0x70] sm:$0xff]
        %v1826 = vld [vmem:[%s1810 + $0x78] sm:$0xff]
        %1827 = vmatpush.msra.mxu0 %v1826
        %1828 = vmatpush.msra.mxu0 %v1825
        %1829 = vmatpush.msra.mxu0 %v1824
        %1830 = vmatpush.msra.mxu0 %v1823
        %1831 = vmatpush.msra.mxu0 %v1822
        %1832 = vmatpush.msra.mxu0 %v1821
        %1833 = vmatpush.msra.mxu0 %v1820
        %1834 = vmatpush.msra.mxu0 %v1819
        %1835 = vmatpush.msra.mxu0 %v1818
        %1836 = vmatpush.msra.mxu0 %v1817
        %1837 = vmatpush.msra.mxu0 %v1816
        %1838 = vmatpush.msra.mxu0 %v1815
        %1839 = vmatpush.msra.mxu0 %v1814
        %1840 = vmatpush.msra.mxu0 %v1813
        %1841 = vmatpush.msra.mxu0 %v1812
        %1842 = vmatpush.msra.mxu0 %v1811
        %1843 = vmatmul.f32.gmra.mxu0 %v1778
        %v1844 = vpop.f32.mrf.mxu0
        %v1845 = vadd.f32 0.0, %v1844
        %1846 = vmatmul.f32.gmra.mxu0 %v1779
        %v1847 = vpop.f32.mrf.mxu0
        %v1848 = vadd.f32 0.0, %v1847
        %1849 = vmatmul.f32.gmra.mxu0 %v1780
        %v1850 = vpop.f32.mrf.mxu0
        %v1851 = vadd.f32 0.0, %v1850
        %1852 = vmatmul.f32.gmra.mxu0 %v1781
        %v1853 = vpop.f32.mrf.mxu0
        %v1854 = vadd.f32 0.0, %v1853
        %1855 = vmatmul.f32.gmra.mxu0 %v1782
        %v1856 = vpop.f32.mrf.mxu0
        %v1857 = vadd.f32 0.0, %v1856
        %1858 = vmatmul.f32.gmra.mxu0 %v1783
        %v1859 = vpop.f32.mrf.mxu0
        %v1860 = vadd.f32 0.0, %v1859
        %1861 = vmatmul.f32.gmra.mxu0 %v1784
        %v1862 = vpop.f32.mrf.mxu0
        %v1863 = vadd.f32 0.0, %v1862
        %1864 = vmatmul.f32.gmra.mxu0 %v1785
        %v1865 = vpop.f32.mrf.mxu0
        %v1866 = vadd.f32 0.0, %v1865
        %1867 = vmatmul.f32.gmra.mxu0 %v1786
        %v1868 = vpop.f32.mrf.mxu0
        %v1869 = vadd.f32 0.0, %v1868
        %1870 = vmatmul.f32.gmra.mxu0 %v1787
        %v1871 = vpop.f32.mrf.mxu0
        %v1872 = vadd.f32 0.0, %v1871
        %1873 = vmatmul.f32.gmra.mxu0 %v1788
        %v1874 = vpop.f32.mrf.mxu0
        %v1875 = vadd.f32 0.0, %v1874
        %1876 = vmatmul.f32.gmra.mxu0 %v1789
        %v1877 = vpop.f32.mrf.mxu0
        %v1878 = vadd.f32 0.0, %v1877
        %1879 = vmatmul.f32.gmra.mxu0 %v1790
        %v1880 = vpop.f32.mrf.mxu0
        %v1881 = vadd.f32 0.0, %v1880
        %1882 = vmatmul.f32.gmra.mxu0 %v1791
        %v1883 = vpop.f32.mrf.mxu0
        %v1884 = vadd.f32 0.0, %v1883
        %1885 = vmatmul.f32.gmra.mxu0 %v1792
        %v1886 = vpop.f32.mrf.mxu0
        %v1887 = vadd.f32 0.0, %v1886
        %1888 = vmatmul.f32.gmra.mxu0 %v1793
        %v1889 = vpop.f32.mrf.mxu0
        %v1890 = vadd.f32 0.0, %v1889
        %1891 = vmatmul.f32.gmra.mxu0 %v1794
        %v1892 = vpop.f32.mrf.mxu0
        %v1893 = vadd.f32 0.0, %v1892
        %1894 = vmatmul.f32.gmra.mxu0 %v1795
        %v1895 = vpop.f32.mrf.mxu0
        %v1896 = vadd.f32 0.0, %v1895
        %1897 = vmatmul.f32.gmra.mxu0 %v1796
        %v1898 = vpop.f32.mrf.mxu0
        %v1899 = vadd.f32 0.0, %v1898
        %1900 = vmatmul.f32.gmra.mxu0 %v1797
        %v1901 = vpop.f32.mrf.mxu0
        %v1902 = vadd.f32 0.0, %v1901
        %1903 = vmatmul.f32.gmra.mxu0 %v1798
        %v1904 = vpop.f32.mrf.mxu0
        %v1905 = vadd.f32 0.0, %v1904
        %1906 = vmatmul.f32.gmra.mxu0 %v1799
        %v1907 = vpop.f32.mrf.mxu0
        %v1908 = vadd.f32 0.0, %v1907
        %1909 = vmatmul.f32.gmra.mxu0 %v1800
        %v1910 = vpop.f32.mrf.mxu0
        %v1911 = vadd.f32 0.0, %v1910
        %1912 = vmatmul.f32.gmra.mxu0 %v1801
        %v1913 = vpop.f32.mrf.mxu0
        %v1914 = vadd.f32 0.0, %v1913
        %1915 = vmatmul.f32.gmra.mxu0 %v1802
        %v1916 = vpop.f32.mrf.mxu0
        %v1917 = vadd.f32 0.0, %v1916
        %1918 = vmatmul.f32.gmra.mxu0 %v1803
        %v1919 = vpop.f32.mrf.mxu0
        %v1920 = vadd.f32 0.0, %v1919
        %1921 = vmatmul.f32.gmra.mxu0 %v1804
        %v1922 = vpop.f32.mrf.mxu0
        %v1923 = vadd.f32 0.0, %v1922
        %1924 = vmatmul.f32.gmra.mxu0 %v1805
        %v1925 = vpop.f32.mrf.mxu0
        %v1926 = vadd.f32 0.0, %v1925
        %1927 = vmatmul.f32.gmra.mxu0 %v1806
        %v1928 = vpop.f32.mrf.mxu0
        %v1929 = vadd.f32 0.0, %v1928
        %1930 = vmatmul.f32.gmra.mxu0 %v1807
        %v1931 = vpop.f32.mrf.mxu0
        %v1932 = vadd.f32 0.0, %v1931
        %1933 = vmatmul.f32.gmra.mxu0 %v1808
        %v1934 = vpop.f32.mrf.mxu0
        %v1935 = vadd.f32 0.0, %v1934
        %1936 = vmatmul.f32.gmra.mxu0 %v1809
        %v1937 = vpop.f32.mrf.mxu0
        %v1938 = vadd.f32 0.0, %v1937
        %1939 = vdwg.mxu0
        %v1940 = vadd.f32 %v1714, %v1845
        %v1941 = vadd.f32 %v1715, %v1848
        %v1942 = vadd.f32 %v1716, %v1851
        %v1943 = vadd.f32 %v1717, %v1854
        %v1944 = vadd.f32 %v1718, %v1857
        %v1945 = vadd.f32 %v1719, %v1860
        %v1946 = vadd.f32 %v1720, %v1863
        %v1947 = vadd.f32 %v1721, %v1866
        %v1948 = vadd.f32 %v1722, %v1869
        %v1949 = vadd.f32 %v1723, %v1872
        %v1950 = vadd.f32 %v1724, %v1875
        %v1951 = vadd.f32 %v1725, %v1878
        %v1952 = vadd.f32 %v1726, %v1881
        %v1953 = vadd.f32 %v1727, %v1884
        %v1954 = vadd.f32 %v1728, %v1887
        %v1955 = vadd.f32 %v1729, %v1890
        %v1956 = vadd.f32 %v1730, %v1893
        %v1957 = vadd.f32 %v1731, %v1896
        %v1958 = vadd.f32 %v1732, %v1899
        %v1959 = vadd.f32 %v1733, %v1902
        %v1960 = vadd.f32 %v1734, %v1905
        %v1961 = vadd.f32 %v1735, %v1908
        %v1962 = vadd.f32 %v1736, %v1911
        %v1963 = vadd.f32 %v1737, %v1914
        %v1964 = vadd.f32 %v1738, %v1917
        %v1965 = vadd.f32 %v1739, %v1920
        %v1966 = vadd.f32 %v1740, %v1923
        %v1967 = vadd.f32 %v1741, %v1926
        %v1968 = vadd.f32 %v1742, %v1929
        %v1969 = vadd.f32 %v1743, %v1932
        %v1970 = vadd.f32 %v1744, %v1935
        %v1971 = vadd.f32 %v1745, %v1938
        %v1972 = vld [vmem:[#allocation2 + $0x18] sm:$0xff]
        %v1973 = vld [vmem:[#allocation2 + $0x20] sm:$0xff]
        %v1974 = vld [vmem:[#allocation2 + $0x28] sm:$0xff]
        %v1975 = vld [vmem:[#allocation2 + $0x30] sm:$0xff]
        %v1976 = vld [vmem:[#allocation2 + $0x38] sm:$0xff]
        %v1977 = vld [vmem:[#allocation2 + $0x40] sm:$0xff]
        %v1978 = vld [vmem:[#allocation2 + $0x48] sm:$0xff]
        %v1979 = vld [vmem:[#allocation2 + $0x50] sm:$0xff]
        %v1980 = vld [vmem:[#allocation2 + $0x58] sm:$0xff]
        %v1981 = vld [vmem:[#allocation2 + $0x60] sm:$0xff]
        %v1982 = vld [vmem:[#allocation2 + $0x68] sm:$0xff]
        %v1983 = vld [vmem:[#allocation2 + $0x70] sm:$0xff]
        %v1984 = vld [vmem:[#allocation2 + $0x78] sm:$0xff]
        %v1985 = vld [vmem:[#allocation2 + $0x80] sm:$0xff]
        %v1986 = vld [vmem:[#allocation2 + $0x88] sm:$0xff]
        %v1987 = vld [vmem:[#allocation2 + $0x90] sm:$0xff]
        %v1988 = vld [vmem:[#allocation2 + $0x98] sm:$0xff]
        %v1989 = vld [vmem:[#allocation2 + $0xa0] sm:$0xff]
        %v1990 = vld [vmem:[#allocation2 + $0xa8] sm:$0xff]
        %v1991 = vld [vmem:[#allocation2 + $0xb0] sm:$0xff]
        %v1992 = vld [vmem:[#allocation2 + $0xb8] sm:$0xff]
        %v1993 = vld [vmem:[#allocation2 + $0xc0] sm:$0xff]
        %v1994 = vld [vmem:[#allocation2 + $0xc8] sm:$0xff]
        %v1995 = vld [vmem:[#allocation2 + $0xd0] sm:$0xff]
        %v1996 = vld [vmem:[#allocation2 + $0xd8] sm:$0xff]
        %v1997 = vld [vmem:[#allocation2 + $0xe0] sm:$0xff]
        %v1998 = vld [vmem:[#allocation2 + $0xe8] sm:$0xff]
        %v1999 = vld [vmem:[#allocation2 + $0xf0] sm:$0xff]
        %v2000 = vld [vmem:[#allocation2 + $0xf8] sm:$0xff]
        %v2001 = vld [vmem:[#allocation2 + $0x100] sm:$0xff]
        %v2002 = vld [vmem:[#allocation2 + $0x108] sm:$0xff]
        %v2003 = vld [vmem:[#allocation2 + $0x110] sm:$0xff]
        %s2004 = scalar_lea.vmem [#allocation7], 512
        %v2005 = vld [vmem:[%s2004] sm:$0xff]
        %v2006 = vld [vmem:[%s2004 + $0x8] sm:$0xff]
        %v2007 = vld [vmem:[%s2004 + $0x10] sm:$0xff]
        %v2008 = vld [vmem:[%s2004 + $0x18] sm:$0xff]
        %v2009 = vld [vmem:[%s2004 + $0x20] sm:$0xff]
        %v2010 = vld [vmem:[%s2004 + $0x28] sm:$0xff]
        %v2011 = vld [vmem:[%s2004 + $0x30] sm:$0xff]
        %v2012 = vld [vmem:[%s2004 + $0x38] sm:$0xff]
        %v2013 = vld [vmem:[%s2004 + $0x40] sm:$0xff]
        %v2014 = vld [vmem:[%s2004 + $0x48] sm:$0xff]
        %v2015 = vld [vmem:[%s2004 + $0x50] sm:$0xff]
        %v2016 = vld [vmem:[%s2004 + $0x58] sm:$0xff]
        %v2017 = vld [vmem:[%s2004 + $0x60] sm:$0xff]
        %v2018 = vld [vmem:[%s2004 + $0x68] sm:$0xff]
        %v2019 = vld [vmem:[%s2004 + $0x70] sm:$0xff]
        %v2020 = vld [vmem:[%s2004 + $0x78] sm:$0xff]
        %2021 = vmatpush.msra.mxu0 %v2020
        %2022 = vmatpush.msra.mxu0 %v2019
        %2023 = vmatpush.msra.mxu0 %v2018
        %2024 = vmatpush.msra.mxu0 %v2017
        %2025 = vmatpush.msra.mxu0 %v2016
        %2026 = vmatpush.msra.mxu0 %v2015
        %2027 = vmatpush.msra.mxu0 %v2014
        %2028 = vmatpush.msra.mxu0 %v2013
        %2029 = vmatpush.msra.mxu0 %v2012
        %2030 = vmatpush.msra.mxu0 %v2011
        %2031 = vmatpush.msra.mxu0 %v2010
        %2032 = vmatpush.msra.mxu0 %v2009
        %2033 = vmatpush.msra.mxu0 %v2008
        %2034 = vmatpush.msra.mxu0 %v2007
        %2035 = vmatpush.msra.mxu0 %v2006
        %2036 = vmatpush.msra.mxu0 %v2005
        %2037 = vmatmul.f32.gmra.mxu0 %v1972
        %v2038 = vpop.f32.mrf.mxu0
        %v2039 = vadd.f32 0.0, %v2038
        %2040 = vmatmul.f32.gmra.mxu0 %v1973
        %v2041 = vpop.f32.mrf.mxu0
        %v2042 = vadd.f32 0.0, %v2041
        %2043 = vmatmul.f32.gmra.mxu0 %v1974
        %v2044 = vpop.f32.mrf.mxu0
        %v2045 = vadd.f32 0.0, %v2044
        %2046 = vmatmul.f32.gmra.mxu0 %v1975
        %v2047 = vpop.f32.mrf.mxu0
        %v2048 = vadd.f32 0.0, %v2047
        %2049 = vmatmul.f32.gmra.mxu0 %v1976
        %v2050 = vpop.f32.mrf.mxu0
        %v2051 = vadd.f32 0.0, %v2050
        %2052 = vmatmul.f32.gmra.mxu0 %v1977
        %v2053 = vpop.f32.mrf.mxu0
        %v2054 = vadd.f32 0.0, %v2053
        %2055 = vmatmul.f32.gmra.mxu0 %v1978
        %v2056 = vpop.f32.mrf.mxu0
        %v2057 = vadd.f32 0.0, %v2056
        %2058 = vmatmul.f32.gmra.mxu0 %v1979
        %v2059 = vpop.f32.mrf.mxu0
        %v2060 = vadd.f32 0.0, %v2059
        %2061 = vmatmul.f32.gmra.mxu0 %v1980
        %v2062 = vpop.f32.mrf.mxu0
        %v2063 = vadd.f32 0.0, %v2062
        %2064 = vmatmul.f32.gmra.mxu0 %v1981
        %v2065 = vpop.f32.mrf.mxu0
        %v2066 = vadd.f32 0.0, %v2065
        %2067 = vmatmul.f32.gmra.mxu0 %v1982
        %v2068 = vpop.f32.mrf.mxu0
        %v2069 = vadd.f32 0.0, %v2068
        %2070 = vmatmul.f32.gmra.mxu0 %v1983
        %v2071 = vpop.f32.mrf.mxu0
        %v2072 = vadd.f32 0.0, %v2071
        %2073 = vmatmul.f32.gmra.mxu0 %v1984
        %v2074 = vpop.f32.mrf.mxu0
        %v2075 = vadd.f32 0.0, %v2074
        %2076 = vmatmul.f32.gmra.mxu0 %v1985
        %v2077 = vpop.f32.mrf.mxu0
        %v2078 = vadd.f32 0.0, %v2077
        %2079 = vmatmul.f32.gmra.mxu0 %v1986
        %v2080 = vpop.f32.mrf.mxu0
        %v2081 = vadd.f32 0.0, %v2080
        %2082 = vmatmul.f32.gmra.mxu0 %v1987
        %v2083 = vpop.f32.mrf.mxu0
        %v2084 = vadd.f32 0.0, %v2083
        %2085 = vmatmul.f32.gmra.mxu0 %v1988
        %v2086 = vpop.f32.mrf.mxu0
        %v2087 = vadd.f32 0.0, %v2086
        %2088 = vmatmul.f32.gmra.mxu0 %v1989
        %v2089 = vpop.f32.mrf.mxu0
        %v2090 = vadd.f32 0.0, %v2089
        %2091 = vmatmul.f32.gmra.mxu0 %v1990
        %v2092 = vpop.f32.mrf.mxu0
        %v2093 = vadd.f32 0.0, %v2092
        %2094 = vmatmul.f32.gmra.mxu0 %v1991
        %v2095 = vpop.f32.mrf.mxu0
        %v2096 = vadd.f32 0.0, %v2095
        %2097 = vmatmul.f32.gmra.mxu0 %v1992
        %v2098 = vpop.f32.mrf.mxu0
        %v2099 = vadd.f32 0.0, %v2098
        %2100 = vmatmul.f32.gmra.mxu0 %v1993
        %v2101 = vpop.f32.mrf.mxu0
        %v2102 = vadd.f32 0.0, %v2101
        %2103 = vmatmul.f32.gmra.mxu0 %v1994
        %v2104 = vpop.f32.mrf.mxu0
        %v2105 = vadd.f32 0.0, %v2104
        %2106 = vmatmul.f32.gmra.mxu0 %v1995
        %v2107 = vpop.f32.mrf.mxu0
        %v2108 = vadd.f32 0.0, %v2107
        %2109 = vmatmul.f32.gmra.mxu0 %v1996
        %v2110 = vpop.f32.mrf.mxu0
        %v2111 = vadd.f32 0.0, %v2110
        %2112 = vmatmul.f32.gmra.mxu0 %v1997
        %v2113 = vpop.f32.mrf.mxu0
        %v2114 = vadd.f32 0.0, %v2113
        %2115 = vmatmul.f32.gmra.mxu0 %v1998
        %v2116 = vpop.f32.mrf.mxu0
        %v2117 = vadd.f32 0.0, %v2116
        %2118 = vmatmul.f32.gmra.mxu0 %v1999
        %v2119 = vpop.f32.mrf.mxu0
        %v2120 = vadd.f32 0.0, %v2119
        %2121 = vmatmul.f32.gmra.mxu0 %v2000
        %v2122 = vpop.f32.mrf.mxu0
        %v2123 = vadd.f32 0.0, %v2122
        %2124 = vmatmul.f32.gmra.mxu0 %v2001
        %v2125 = vpop.f32.mrf.mxu0
        %v2126 = vadd.f32 0.0, %v2125
        %2127 = vmatmul.f32.gmra.mxu0 %v2002
        %v2128 = vpop.f32.mrf.mxu0
        %v2129 = vadd.f32 0.0, %v2128
        %2130 = vmatmul.f32.gmra.mxu0 %v2003
        %v2131 = vpop.f32.mrf.mxu0
        %v2132 = vadd.f32 0.0, %v2131
        %2133 = vdwg.mxu0
        %v2134 = vadd.f32 %v1940, %v2039
        %v2135 = vadd.f32 %v1941, %v2042
        %v2136 = vadd.f32 %v1942, %v2045
        %v2137 = vadd.f32 %v1943, %v2048
        %v2138 = vadd.f32 %v1944, %v2051
        %v2139 = vadd.f32 %v1945, %v2054
        %v2140 = vadd.f32 %v1946, %v2057
        %v2141 = vadd.f32 %v1947, %v2060
        %v2142 = vadd.f32 %v1948, %v2063
        %v2143 = vadd.f32 %v1949, %v2066
        %v2144 = vadd.f32 %v1950, %v2069
        %v2145 = vadd.f32 %v1951, %v2072
        %v2146 = vadd.f32 %v1952, %v2075
        %v2147 = vadd.f32 %v1953, %v2078
        %v2148 = vadd.f32 %v1954, %v2081
        %v2149 = vadd.f32 %v1955, %v2084
        %v2150 = vadd.f32 %v1956, %v2087
        %v2151 = vadd.f32 %v1957, %v2090
        %v2152 = vadd.f32 %v1958, %v2093
        %v2153 = vadd.f32 %v1959, %v2096
        %v2154 = vadd.f32 %v1960, %v2099
        %v2155 = vadd.f32 %v1961, %v2102
        %v2156 = vadd.f32 %v1962, %v2105
        %v2157 = vadd.f32 %v1963, %v2108
        %v2158 = vadd.f32 %v1964, %v2111
        %v2159 = vadd.f32 %v1965, %v2114
        %v2160 = vadd.f32 %v1966, %v2117
        %v2161 = vadd.f32 %v1967, %v2120
        %v2162 = vadd.f32 %v1968, %v2123
        %v2163 = vadd.f32 %v1969, %v2126
        %v2164 = vadd.f32 %v1970, %v2129
        %v2165 = vadd.f32 %v1971, %v2132
        %v2166 = vld [vmem:[#allocation2 + $0x19] sm:$0xff]
        %v2167 = vld [vmem:[#allocation2 + $0x21] sm:$0xff]
        %v2168 = vld [vmem:[#allocation2 + $0x29] sm:$0xff]
        %v2169 = vld [vmem:[#allocation2 + $0x31] sm:$0xff]
        %v2170 = vld [vmem:[#allocation2 + $0x39] sm:$0xff]
        %v2171 = vld [vmem:[#allocation2 + $0x41] sm:$0xff]
        %v2172 = vld [vmem:[#allocation2 + $0x49] sm:$0xff]
        %v2173 = vld [vmem:[#allocation2 + $0x51] sm:$0xff]
        %v2174 = vld [vmem:[#allocation2 + $0x59] sm:$0xff]
        %v2175 = vld [vmem:[#allocation2 + $0x61] sm:$0xff]
        %v2176 = vld [vmem:[#allocation2 + $0x69] sm:$0xff]
        %v2177 = vld [vmem:[#allocation2 + $0x71] sm:$0xff]
        %v2178 = vld [vmem:[#allocation2 + $0x79] sm:$0xff]
        %v2179 = vld [vmem:[#allocation2 + $0x81] sm:$0xff]
        %v2180 = vld [vmem:[#allocation2 + $0x89] sm:$0xff]
        %v2181 = vld [vmem:[#allocation2 + $0x91] sm:$0xff]
        %v2182 = vld [vmem:[#allocation2 + $0x99] sm:$0xff]
        %v2183 = vld [vmem:[#allocation2 + $0xa1] sm:$0xff]
        %v2184 = vld [vmem:[#allocation2 + $0xa9] sm:$0xff]
        %v2185 = vld [vmem:[#allocation2 + $0xb1] sm:$0xff]
        %v2186 = vld [vmem:[#allocation2 + $0xb9] sm:$0xff]
        %v2187 = vld [vmem:[#allocation2 + $0xc1] sm:$0xff]
        %v2188 = vld [vmem:[#allocation2 + $0xc9] sm:$0xff]
        %v2189 = vld [vmem:[#allocation2 + $0xd1] sm:$0xff]
        %v2190 = vld [vmem:[#allocation2 + $0xd9] sm:$0xff]
        %v2191 = vld [vmem:[#allocation2 + $0xe1] sm:$0xff]
        %v2192 = vld [vmem:[#allocation2 + $0xe9] sm:$0xff]
        %v2193 = vld [vmem:[#allocation2 + $0xf1] sm:$0xff]
        %v2194 = vld [vmem:[#allocation2 + $0xf9] sm:$0xff]
        %v2195 = vld [vmem:[#allocation2 + $0x101] sm:$0xff]
        %v2196 = vld [vmem:[#allocation2 + $0x109] sm:$0xff]
        %v2197 = vld [vmem:[#allocation2 + $0x111] sm:$0xff]
        %v2198 = vsel %vm1520, %v2166, 0.0
        %v2199 = vsel %vm1521, %v2167, 0.0
        %v2200 = vsel %vm1522, %v2168, 0.0
        %v2201 = vsel %vm1523, %v2169, 0.0
        %v2202 = vsel %vm1524, %v2170, 0.0
        %v2203 = vsel %vm1525, %v2171, 0.0
        %v2204 = vsel %vm1526, %v2172, 0.0
        %v2205 = vsel %vm1527, %v2173, 0.0
        %v2206 = vsel %vm1528, %v2174, 0.0
        %v2207 = vsel %vm1529, %v2175, 0.0
        %v2208 = vsel %vm1530, %v2176, 0.0
        %v2209 = vsel %vm1531, %v2177, 0.0
        %v2210 = vsel %vm1532, %v2178, 0.0
        %v2211 = vsel %vm1533, %v2179, 0.0
        %v2212 = vsel %vm1534, %v2180, 0.0
        %v2213 = vsel %vm1535, %v2181, 0.0
        %v2214 = vsel %vm1536, %v2182, 0.0
        %v2215 = vsel %vm1537, %v2183, 0.0
        %v2216 = vsel %vm1538, %v2184, 0.0
        %v2217 = vsel %vm1539, %v2185, 0.0
        %v2218 = vsel %vm1540, %v2186, 0.0
        %v2219 = vsel %vm1541, %v2187, 0.0
        %v2220 = vsel %vm1542, %v2188, 0.0
        %v2221 = vsel %vm1543, %v2189, 0.0
        %v2222 = vsel %vm1544, %v2190, 0.0
        %v2223 = vsel %vm1545, %v2191, 0.0
        %v2224 = vsel %vm1546, %v2192, 0.0
        %v2225 = vsel %vm1547, %v2193, 0.0
        %v2226 = vsel %vm1548, %v2194, 0.0
        %v2227 = vsel %vm1549, %v2195, 0.0
        %v2228 = vsel %vm1550, %v2196, 0.0
        %v2229 = vsel %vm1551, %v2197, 0.0
        %s2230 = scalar_lea.vmem [#allocation7], 640
        %v2231 = vld [vmem:[%s2230] sm:$0xff]
        %v2232 = vld [vmem:[%s2230 + $0x8] sm:$0xff]
        %v2233 = vld [vmem:[%s2230 + $0x10] sm:$0xff]
        %v2234 = vld [vmem:[%s2230 + $0x18] sm:$0xff]
        %v2235 = vld [vmem:[%s2230 + $0x20] sm:$0xff]
        %v2236 = vld [vmem:[%s2230 + $0x28] sm:$0xff]
        %v2237 = vld [vmem:[%s2230 + $0x30] sm:$0xff]
        %v2238 = vld [vmem:[%s2230 + $0x38] sm:$0xff]
        %v2239 = vld [vmem:[%s2230 + $0x40] sm:$0xff]
        %v2240 = vld [vmem:[%s2230 + $0x48] sm:$0xff]
        %v2241 = vld [vmem:[%s2230 + $0x50] sm:$0xff]
        %v2242 = vld [vmem:[%s2230 + $0x58] sm:$0xff]
        %v2243 = vld [vmem:[%s2230 + $0x60] sm:$0xff]
        %v2244 = vld [vmem:[%s2230 + $0x68] sm:$0xff]
        %v2245 = vld [vmem:[%s2230 + $0x70] sm:$0xff]
        %v2246 = vld [vmem:[%s2230 + $0x78] sm:$0xff]
        %2247 = vmatpush.msra.mxu0 %v2246
        %2248 = vmatpush.msra.mxu0 %v2245
        %2249 = vmatpush.msra.mxu0 %v2244
        %2250 = vmatpush.msra.mxu0 %v2243
        %2251 = vmatpush.msra.mxu0 %v2242
        %2252 = vmatpush.msra.mxu0 %v2241
        %2253 = vmatpush.msra.mxu0 %v2240
        %2254 = vmatpush.msra.mxu0 %v2239
        %2255 = vmatpush.msra.mxu0 %v2238
        %2256 = vmatpush.msra.mxu0 %v2237
        %2257 = vmatpush.msra.mxu0 %v2236
        %2258 = vmatpush.msra.mxu0 %v2235
        %2259 = vmatpush.msra.mxu0 %v2234
        %2260 = vmatpush.msra.mxu0 %v2233
        %2261 = vmatpush.msra.mxu0 %v2232
        %2262 = vmatpush.msra.mxu0 %v2231
        %2263 = vmatmul.f32.gmra.mxu0 %v2198
        %v2264 = vpop.f32.mrf.mxu0
        %v2265 = vadd.f32 0.0, %v2264
        %2266 = vmatmul.f32.gmra.mxu0 %v2199
        %v2267 = vpop.f32.mrf.mxu0
        %v2268 = vadd.f32 0.0, %v2267
        %2269 = vmatmul.f32.gmra.mxu0 %v2200
        %v2270 = vpop.f32.mrf.mxu0
        %v2271 = vadd.f32 0.0, %v2270
        %2272 = vmatmul.f32.gmra.mxu0 %v2201
        %v2273 = vpop.f32.mrf.mxu0
        %v2274 = vadd.f32 0.0, %v2273
        %2275 = vmatmul.f32.gmra.mxu0 %v2202
        %v2276 = vpop.f32.mrf.mxu0
        %v2277 = vadd.f32 0.0, %v2276
        %2278 = vmatmul.f32.gmra.mxu0 %v2203
        %v2279 = vpop.f32.mrf.mxu0
        %v2280 = vadd.f32 0.0, %v2279
        %2281 = vmatmul.f32.gmra.mxu0 %v2204
        %v2282 = vpop.f32.mrf.mxu0
        %v2283 = vadd.f32 0.0, %v2282
        %2284 = vmatmul.f32.gmra.mxu0 %v2205
        %v2285 = vpop.f32.mrf.mxu0
        %v2286 = vadd.f32 0.0, %v2285
        %2287 = vmatmul.f32.gmra.mxu0 %v2206
        %v2288 = vpop.f32.mrf.mxu0
        %v2289 = vadd.f32 0.0, %v2288
        %2290 = vmatmul.f32.gmra.mxu0 %v2207
        %v2291 = vpop.f32.mrf.mxu0
        %v2292 = vadd.f32 0.0, %v2291
        %2293 = vmatmul.f32.gmra.mxu0 %v2208
        %v2294 = vpop.f32.mrf.mxu0
        %v2295 = vadd.f32 0.0, %v2294
        %2296 = vmatmul.f32.gmra.mxu0 %v2209
        %v2297 = vpop.f32.mrf.mxu0
        %v2298 = vadd.f32 0.0, %v2297
        %2299 = vmatmul.f32.gmra.mxu0 %v2210
        %v2300 = vpop.f32.mrf.mxu0
        %v2301 = vadd.f32 0.0, %v2300
        %2302 = vmatmul.f32.gmra.mxu0 %v2211
        %v2303 = vpop.f32.mrf.mxu0
        %v2304 = vadd.f32 0.0, %v2303
        %2305 = vmatmul.f32.gmra.mxu0 %v2212
        %v2306 = vpop.f32.mrf.mxu0
        %v2307 = vadd.f32 0.0, %v2306
        %2308 = vmatmul.f32.gmra.mxu0 %v2213
        %v2309 = vpop.f32.mrf.mxu0
        %v2310 = vadd.f32 0.0, %v2309
        %2311 = vmatmul.f32.gmra.mxu0 %v2214
        %v2312 = vpop.f32.mrf.mxu0
        %v2313 = vadd.f32 0.0, %v2312
        %2314 = vmatmul.f32.gmra.mxu0 %v2215
        %v2315 = vpop.f32.mrf.mxu0
        %v2316 = vadd.f32 0.0, %v2315
        %2317 = vmatmul.f32.gmra.mxu0 %v2216
        %v2318 = vpop.f32.mrf.mxu0
        %v2319 = vadd.f32 0.0, %v2318
        %2320 = vmatmul.f32.gmra.mxu0 %v2217
        %v2321 = vpop.f32.mrf.mxu0
        %v2322 = vadd.f32 0.0, %v2321
        %2323 = vmatmul.f32.gmra.mxu0 %v2218
        %v2324 = vpop.f32.mrf.mxu0
        %v2325 = vadd.f32 0.0, %v2324
        %2326 = vmatmul.f32.gmra.mxu0 %v2219
        %v2327 = vpop.f32.mrf.mxu0
        %v2328 = vadd.f32 0.0, %v2327
        %2329 = vmatmul.f32.gmra.mxu0 %v2220
        %v2330 = vpop.f32.mrf.mxu0
        %v2331 = vadd.f32 0.0, %v2330
        %2332 = vmatmul.f32.gmra.mxu0 %v2221
        %v2333 = vpop.f32.mrf.mxu0
        %v2334 = vadd.f32 0.0, %v2333
        %2335 = vmatmul.f32.gmra.mxu0 %v2222
        %v2336 = vpop.f32.mrf.mxu0
        %v2337 = vadd.f32 0.0, %v2336
        %2338 = vmatmul.f32.gmra.mxu0 %v2223
        %v2339 = vpop.f32.mrf.mxu0
        %v2340 = vadd.f32 0.0, %v2339
        %2341 = vmatmul.f32.gmra.mxu0 %v2224
        %v2342 = vpop.f32.mrf.mxu0
        %v2343 = vadd.f32 0.0, %v2342
        %2344 = vmatmul.f32.gmra.mxu0 %v2225
        %v2345 = vpop.f32.mrf.mxu0
        %v2346 = vadd.f32 0.0, %v2345
        %2347 = vmatmul.f32.gmra.mxu0 %v2226
        %v2348 = vpop.f32.mrf.mxu0
        %v2349 = vadd.f32 0.0, %v2348
        %2350 = vmatmul.f32.gmra.mxu0 %v2227
        %v2351 = vpop.f32.mrf.mxu0
        %v2352 = vadd.f32 0.0, %v2351
        %2353 = vmatmul.f32.gmra.mxu0 %v2228
        %v2354 = vpop.f32.mrf.mxu0
        %v2355 = vadd.f32 0.0, %v2354
        %2356 = vmatmul.f32.gmra.mxu0 %v2229
        %v2357 = vpop.f32.mrf.mxu0
        %v2358 = vadd.f32 0.0, %v2357
        %2359 = vdwg.mxu0
        %v2360 = vadd.f32 %v2134, %v2265
        %v2361 = vadd.f32 %v2135, %v2268
        %v2362 = vadd.f32 %v2136, %v2271
        %v2363 = vadd.f32 %v2137, %v2274
        %v2364 = vadd.f32 %v2138, %v2277
        %v2365 = vadd.f32 %v2139, %v2280
        %v2366 = vadd.f32 %v2140, %v2283
        %v2367 = vadd.f32 %v2141, %v2286
        %v2368 = vadd.f32 %v2142, %v2289
        %v2369 = vadd.f32 %v2143, %v2292
        %v2370 = vadd.f32 %v2144, %v2295
        %v2371 = vadd.f32 %v2145, %v2298
        %v2372 = vadd.f32 %v2146, %v2301
        %v2373 = vadd.f32 %v2147, %v2304
        %v2374 = vadd.f32 %v2148, %v2307
        %v2375 = vadd.f32 %v2149, %v2310
        %v2376 = vadd.f32 %v2150, %v2313
        %v2377 = vadd.f32 %v2151, %v2316
        %v2378 = vadd.f32 %v2152, %v2319
        %v2379 = vadd.f32 %v2153, %v2322
        %v2380 = vadd.f32 %v2154, %v2325
        %v2381 = vadd.f32 %v2155, %v2328
        %v2382 = vadd.f32 %v2156, %v2331
        %v2383 = vadd.f32 %v2157, %v2334
        %v2384 = vadd.f32 %v2158, %v2337
        %v2385 = vadd.f32 %v2159, %v2340
        %v2386 = vadd.f32 %v2160, %v2343
        %v2387 = vadd.f32 %v2161, %v2346
        %v2388 = vadd.f32 %v2162, %v2349
        %v2389 = vadd.f32 %v2163, %v2352
        %v2390 = vadd.f32 %v2164, %v2355
        %v2391 = vadd.f32 %v2165, %v2358
        %v2392 = vld [vmem:[#allocation2 + $0x27] sm:$0xff]
        %v2393 = vld [vmem:[#allocation2 + $0x2f] sm:$0xff]
        %v2394 = vld [vmem:[#allocation2 + $0x37] sm:$0xff]
        %v2395 = vld [vmem:[#allocation2 + $0x3f] sm:$0xff]
        %v2396 = vld [vmem:[#allocation2 + $0x47] sm:$0xff]
        %v2397 = vld [vmem:[#allocation2 + $0x4f] sm:$0xff]
        %v2398 = vld [vmem:[#allocation2 + $0x57] sm:$0xff]
        %v2399 = vld [vmem:[#allocation2 + $0x5f] sm:$0xff]
        %v2400 = vld [vmem:[#allocation2 + $0x67] sm:$0xff]
        %v2401 = vld [vmem:[#allocation2 + $0x6f] sm:$0xff]
        %v2402 = vld [vmem:[#allocation2 + $0x77] sm:$0xff]
        %v2403 = vld [vmem:[#allocation2 + $0x7f] sm:$0xff]
        %v2404 = vld [vmem:[#allocation2 + $0x87] sm:$0xff]
        %v2405 = vld [vmem:[#allocation2 + $0x8f] sm:$0xff]
        %v2406 = vld [vmem:[#allocation2 + $0x97] sm:$0xff]
        %v2407 = vld [vmem:[#allocation2 + $0x9f] sm:$0xff]
        %v2408 = vld [vmem:[#allocation2 + $0xa7] sm:$0xff]
        %v2409 = vld [vmem:[#allocation2 + $0xaf] sm:$0xff]
        %v2410 = vld [vmem:[#allocation2 + $0xb7] sm:$0xff]
        %v2411 = vld [vmem:[#allocation2 + $0xbf] sm:$0xff]
        %v2412 = vld [vmem:[#allocation2 + $0xc7] sm:$0xff]
        %v2413 = vld [vmem:[#allocation2 + $0xcf] sm:$0xff]
        %v2414 = vld [vmem:[#allocation2 + $0xd7] sm:$0xff]
        %v2415 = vld [vmem:[#allocation2 + $0xdf] sm:$0xff]
        %v2416 = vld [vmem:[#allocation2 + $0xe7] sm:$0xff]
        %v2417 = vld [vmem:[#allocation2 + $0xef] sm:$0xff]
        %v2418 = vld [vmem:[#allocation2 + $0xf7] sm:$0xff]
        %v2419 = vld [vmem:[#allocation2 + $0xff] sm:$0xff]
        %v2420 = vld [vmem:[#allocation2 + $0x107] sm:$0xff]
        %v2421 = vld [vmem:[#allocation2 + $0x10f] sm:$0xff]
        %v2422 = vld [vmem:[#allocation2 + $0x117] sm:$0xff]
        %v2423 = vld [vmem:[#allocation2 + $0x11f] sm:$0xff]
        %v2424 = vsel %vm1037, %v2392, 0.0
        %v2425 = vsel %vm1038, %v2393, 0.0
        %v2426 = vsel %vm1039, %v2394, 0.0
        %v2427 = vsel %vm1040, %v2395, 0.0
        %v2428 = vsel %vm1041, %v2396, 0.0
        %v2429 = vsel %vm1042, %v2397, 0.0
        %v2430 = vsel %vm1043, %v2398, 0.0
        %v2431 = vsel %vm1044, %v2399, 0.0
        %v2432 = vsel %vm1045, %v2400, 0.0
        %v2433 = vsel %vm1046, %v2401, 0.0
        %v2434 = vsel %vm1047, %v2402, 0.0
        %v2435 = vsel %vm1048, %v2403, 0.0
        %v2436 = vsel %vm1049, %v2404, 0.0
        %v2437 = vsel %vm1050, %v2405, 0.0
        %v2438 = vsel %vm1051, %v2406, 0.0
        %v2439 = vsel %vm1052, %v2407, 0.0
        %v2440 = vsel %vm1053, %v2408, 0.0
        %v2441 = vsel %vm1054, %v2409, 0.0
        %v2442 = vsel %vm1055, %v2410, 0.0
        %v2443 = vsel %vm1056, %v2411, 0.0
        %v2444 = vsel %vm1057, %v2412, 0.0
        %v2445 = vsel %vm1058, %v2413, 0.0
        %v2446 = vsel %vm1059, %v2414, 0.0
        %v2447 = vsel %vm1060, %v2415, 0.0
        %v2448 = vsel %vm1061, %v2416, 0.0
        %v2449 = vsel %vm1062, %v2417, 0.0
        %v2450 = vsel %vm1063, %v2418, 0.0
        %v2451 = vsel %vm1064, %v2419, 0.0
        %v2452 = vsel %vm1065, %v2420, 0.0
        %v2453 = vsel %vm1066, %v2421, 0.0
        %v2454 = vsel %vm1067, %v2422, 0.0
        %v2455 = vsel %vm1068, %v2423, 0.0
        %s2456 = scalar_lea.vmem [#allocation7], 768
        %v2457 = vld [vmem:[%s2456] sm:$0xff]
        %v2458 = vld [vmem:[%s2456 + $0x8] sm:$0xff]
        %v2459 = vld [vmem:[%s2456 + $0x10] sm:$0xff]
        %v2460 = vld [vmem:[%s2456 + $0x18] sm:$0xff]
        %v2461 = vld [vmem:[%s2456 + $0x20] sm:$0xff]
        %v2462 = vld [vmem:[%s2456 + $0x28] sm:$0xff]
        %v2463 = vld [vmem:[%s2456 + $0x30] sm:$0xff]
        %v2464 = vld [vmem:[%s2456 + $0x38] sm:$0xff]
        %v2465 = vld [vmem:[%s2456 + $0x40] sm:$0xff]
        %v2466 = vld [vmem:[%s2456 + $0x48] sm:$0xff]
        %v2467 = vld [vmem:[%s2456 + $0x50] sm:$0xff]
        %v2468 = vld [vmem:[%s2456 + $0x58] sm:$0xff]
        %v2469 = vld [vmem:[%s2456 + $0x60] sm:$0xff]
        %v2470 = vld [vmem:[%s2456 + $0x68] sm:$0xff]
        %v2471 = vld [vmem:[%s2456 + $0x70] sm:$0xff]
        %v2472 = vld [vmem:[%s2456 + $0x78] sm:$0xff]
        %2473 = vmatpush.msra.mxu0 %v2472
        %2474 = vmatpush.msra.mxu0 %v2471
        %2475 = vmatpush.msra.mxu0 %v2470
        %2476 = vmatpush.msra.mxu0 %v2469
        %2477 = vmatpush.msra.mxu0 %v2468
        %2478 = vmatpush.msra.mxu0 %v2467
        %2479 = vmatpush.msra.mxu0 %v2466
        %2480 = vmatpush.msra.mxu0 %v2465
        %2481 = vmatpush.msra.mxu0 %v2464
        %2482 = vmatpush.msra.mxu0 %v2463
        %2483 = vmatpush.msra.mxu0 %v2462
        %2484 = vmatpush.msra.mxu0 %v2461
        %2485 = vmatpush.msra.mxu0 %v2460
        %2486 = vmatpush.msra.mxu0 %v2459
        %2487 = vmatpush.msra.mxu0 %v2458
        %2488 = vmatpush.msra.mxu0 %v2457
        %2489 = vmatmul.f32.gmra.mxu0 %v2424
        %v2490 = vpop.f32.mrf.mxu0
        %v2491 = vadd.f32 0.0, %v2490
        %2492 = vmatmul.f32.gmra.mxu0 %v2425
        %v2493 = vpop.f32.mrf.mxu0
        %v2494 = vadd.f32 0.0, %v2493
        %2495 = vmatmul.f32.gmra.mxu0 %v2426
        %v2496 = vpop.f32.mrf.mxu0
        %v2497 = vadd.f32 0.0, %v2496
        %2498 = vmatmul.f32.gmra.mxu0 %v2427
        %v2499 = vpop.f32.mrf.mxu0
        %v2500 = vadd.f32 0.0, %v2499
        %2501 = vmatmul.f32.gmra.mxu0 %v2428
        %v2502 = vpop.f32.mrf.mxu0
        %v2503 = vadd.f32 0.0, %v2502
        %2504 = vmatmul.f32.gmra.mxu0 %v2429
        %v2505 = vpop.f32.mrf.mxu0
        %v2506 = vadd.f32 0.0, %v2505
        %2507 = vmatmul.f32.gmra.mxu0 %v2430
        %v2508 = vpop.f32.mrf.mxu0
        %v2509 = vadd.f32 0.0, %v2508
        %2510 = vmatmul.f32.gmra.mxu0 %v2431
        %v2511 = vpop.f32.mrf.mxu0
        %v2512 = vadd.f32 0.0, %v2511
        %2513 = vmatmul.f32.gmra.mxu0 %v2432
        %v2514 = vpop.f32.mrf.mxu0
        %v2515 = vadd.f32 0.0, %v2514
        %2516 = vmatmul.f32.gmra.mxu0 %v2433
        %v2517 = vpop.f32.mrf.mxu0
        %v2518 = vadd.f32 0.0, %v2517
        %2519 = vmatmul.f32.gmra.mxu0 %v2434
        %v2520 = vpop.f32.mrf.mxu0
        %v2521 = vadd.f32 0.0, %v2520
        %2522 = vmatmul.f32.gmra.mxu0 %v2435
        %v2523 = vpop.f32.mrf.mxu0
        %v2524 = vadd.f32 0.0, %v2523
        %2525 = vmatmul.f32.gmra.mxu0 %v2436
        %v2526 = vpop.f32.mrf.mxu0
        %v2527 = vadd.f32 0.0, %v2526
        %2528 = vmatmul.f32.gmra.mxu0 %v2437
        %v2529 = vpop.f32.mrf.mxu0
        %v2530 = vadd.f32 0.0, %v2529
        %2531 = vmatmul.f32.gmra.mxu0 %v2438
        %v2532 = vpop.f32.mrf.mxu0
        %v2533 = vadd.f32 0.0, %v2532
        %2534 = vmatmul.f32.gmra.mxu0 %v2439
        %v2535 = vpop.f32.mrf.mxu0
        %v2536 = vadd.f32 0.0, %v2535
        %2537 = vmatmul.f32.gmra.mxu0 %v2440
        %v2538 = vpop.f32.mrf.mxu0
        %v2539 = vadd.f32 0.0, %v2538
        %2540 = vmatmul.f32.gmra.mxu0 %v2441
        %v2541 = vpop.f32.mrf.mxu0
        %v2542 = vadd.f32 0.0, %v2541
        %2543 = vmatmul.f32.gmra.mxu0 %v2442
        %v2544 = vpop.f32.mrf.mxu0
        %v2545 = vadd.f32 0.0, %v2544
        %2546 = vmatmul.f32.gmra.mxu0 %v2443
        %v2547 = vpop.f32.mrf.mxu0
        %v2548 = vadd.f32 0.0, %v2547
        %2549 = vmatmul.f32.gmra.mxu0 %v2444
        %v2550 = vpop.f32.mrf.mxu0
        %v2551 = vadd.f32 0.0, %v2550
        %2552 = vmatmul.f32.gmra.mxu0 %v2445
        %v2553 = vpop.f32.mrf.mxu0
        %v2554 = vadd.f32 0.0, %v2553
        %2555 = vmatmul.f32.gmra.mxu0 %v2446
        %v2556 = vpop.f32.mrf.mxu0
        %v2557 = vadd.f32 0.0, %v2556
        %2558 = vmatmul.f32.gmra.mxu0 %v2447
        %v2559 = vpop.f32.mrf.mxu0
        %v2560 = vadd.f32 0.0, %v2559
        %2561 = vmatmul.f32.gmra.mxu0 %v2448
        %v2562 = vpop.f32.mrf.mxu0
        %v2563 = vadd.f32 0.0, %v2562
        %2564 = vmatmul.f32.gmra.mxu0 %v2449
        %v2565 = vpop.f32.mrf.mxu0
        %v2566 = vadd.f32 0.0, %v2565
        %2567 = vmatmul.f32.gmra.mxu0 %v2450
        %v2568 = vpop.f32.mrf.mxu0
        %v2569 = vadd.f32 0.0, %v2568
        %2570 = vmatmul.f32.gmra.mxu0 %v2451
        %v2571 = vpop.f32.mrf.mxu0
        %v2572 = vadd.f32 0.0, %v2571
        %2573 = vmatmul.f32.gmra.mxu0 %v2452
        %v2574 = vpop.f32.mrf.mxu0
        %v2575 = vadd.f32 0.0, %v2574
        %2576 = vmatmul.f32.gmra.mxu0 %v2453
        %v2577 = vpop.f32.mrf.mxu0
        %v2578 = vadd.f32 0.0, %v2577
        %2579 = vmatmul.f32.gmra.mxu0 %v2454
        %v2580 = vpop.f32.mrf.mxu0
        %v2581 = vadd.f32 0.0, %v2580
        %2582 = vmatmul.f32.gmra.mxu0 %v2455
        %v2583 = vpop.f32.mrf.mxu0
        %v2584 = vadd.f32 0.0, %v2583
        %2585 = vdwg.mxu0
        %v2586 = vadd.f32 %v2360, %v2491
        %v2587 = vadd.f32 %v2361, %v2494
        %v2588 = vadd.f32 %v2362, %v2497
        %v2589 = vadd.f32 %v2363, %v2500
        %v2590 = vadd.f32 %v2364, %v2503
        %v2591 = vadd.f32 %v2365, %v2506
        %v2592 = vadd.f32 %v2366, %v2509
        %v2593 = vadd.f32 %v2367, %v2512
        %v2594 = vadd.f32 %v2368, %v2515
        %v2595 = vadd.f32 %v2369, %v2518
        %v2596 = vadd.f32 %v2370, %v2521
        %v2597 = vadd.f32 %v2371, %v2524
        %v2598 = vadd.f32 %v2372, %v2527
        %v2599 = vadd.f32 %v2373, %v2530
        %v2600 = vadd.f32 %v2374, %v2533
        %v2601 = vadd.f32 %v2375, %v2536
        %v2602 = vadd.f32 %v2376, %v2539
        %v2603 = vadd.f32 %v2377, %v2542
        %v2604 = vadd.f32 %v2378, %v2545
        %v2605 = vadd.f32 %v2379, %v2548
        %v2606 = vadd.f32 %v2380, %v2551
        %v2607 = vadd.f32 %v2381, %v2554
        %v2608 = vadd.f32 %v2382, %v2557
        %v2609 = vadd.f32 %v2383, %v2560
        %v2610 = vadd.f32 %v2384, %v2563
        %v2611 = vadd.f32 %v2385, %v2566
        %v2612 = vadd.f32 %v2386, %v2569
        %v2613 = vadd.f32 %v2387, %v2572
        %v2614 = vadd.f32 %v2388, %v2575
        %v2615 = vadd.f32 %v2389, %v2578
        %v2616 = vadd.f32 %v2390, %v2581
        %v2617 = vadd.f32 %v2391, %v2584
        %v2618 = vld [vmem:[#allocation2 + $0x28] sm:$0xff]
        %v2619 = vld [vmem:[#allocation2 + $0x30] sm:$0xff]
        %v2620 = vld [vmem:[#allocation2 + $0x38] sm:$0xff]
        %v2621 = vld [vmem:[#allocation2 + $0x40] sm:$0xff]
        %v2622 = vld [vmem:[#allocation2 + $0x48] sm:$0xff]
        %v2623 = vld [vmem:[#allocation2 + $0x50] sm:$0xff]
        %v2624 = vld [vmem:[#allocation2 + $0x58] sm:$0xff]
        %v2625 = vld [vmem:[#allocation2 + $0x60] sm:$0xff]
        %v2626 = vld [vmem:[#allocation2 + $0x68] sm:$0xff]
        %v2627 = vld [vmem:[#allocation2 + $0x70] sm:$0xff]
        %v2628 = vld [vmem:[#allocation2 + $0x78] sm:$0xff]
        %v2629 = vld [vmem:[#allocation2 + $0x80] sm:$0xff]
        %v2630 = vld [vmem:[#allocation2 + $0x88] sm:$0xff]
        %v2631 = vld [vmem:[#allocation2 + $0x90] sm:$0xff]
        %v2632 = vld [vmem:[#allocation2 + $0x98] sm:$0xff]
        %v2633 = vld [vmem:[#allocation2 + $0xa0] sm:$0xff]
        %v2634 = vld [vmem:[#allocation2 + $0xa8] sm:$0xff]
        %v2635 = vld [vmem:[#allocation2 + $0xb0] sm:$0xff]
        %v2636 = vld [vmem:[#allocation2 + $0xb8] sm:$0xff]
        %v2637 = vld [vmem:[#allocation2 + $0xc0] sm:$0xff]
        %v2638 = vld [vmem:[#allocation2 + $0xc8] sm:$0xff]
        %v2639 = vld [vmem:[#allocation2 + $0xd0] sm:$0xff]
        %v2640 = vld [vmem:[#allocation2 + $0xd8] sm:$0xff]
        %v2641 = vld [vmem:[#allocation2 + $0xe0] sm:$0xff]
        %v2642 = vld [vmem:[#allocation2 + $0xe8] sm:$0xff]
        %v2643 = vld [vmem:[#allocation2 + $0xf0] sm:$0xff]
        %v2644 = vld [vmem:[#allocation2 + $0xf8] sm:$0xff]
        %v2645 = vld [vmem:[#allocation2 + $0x100] sm:$0xff]
        %v2646 = vld [vmem:[#allocation2 + $0x108] sm:$0xff]
        %v2647 = vld [vmem:[#allocation2 + $0x110] sm:$0xff]
        %v2648 = vld [vmem:[#allocation2 + $0x118] sm:$0xff]
        %v2649 = vld [vmem:[#allocation2 + $0x120] sm:$0xff]
        %s2650 = scalar_lea.vmem [#allocation7], 896
        %v2651 = vld [vmem:[%s2650] sm:$0xff]
        %v2652 = vld [vmem:[%s2650 + $0x8] sm:$0xff]
        %v2653 = vld [vmem:[%s2650 + $0x10] sm:$0xff]
        %v2654 = vld [vmem:[%s2650 + $0x18] sm:$0xff]
        %v2655 = vld [vmem:[%s2650 + $0x20] sm:$0xff]
        %v2656 = vld [vmem:[%s2650 + $0x28] sm:$0xff]
        %v2657 = vld [vmem:[%s2650 + $0x30] sm:$0xff]
        %v2658 = vld [vmem:[%s2650 + $0x38] sm:$0xff]
        %v2659 = vld [vmem:[%s2650 + $0x40] sm:$0xff]
        %v2660 = vld [vmem:[%s2650 + $0x48] sm:$0xff]
        %v2661 = vld [vmem:[%s2650 + $0x50] sm:$0xff]
        %v2662 = vld [vmem:[%s2650 + $0x58] sm:$0xff]
        %v2663 = vld [vmem:[%s2650 + $0x60] sm:$0xff]
        %v2664 = vld [vmem:[%s2650 + $0x68] sm:$0xff]
        %v2665 = vld [vmem:[%s2650 + $0x70] sm:$0xff]
        %v2666 = vld [vmem:[%s2650 + $0x78] sm:$0xff]
        %2667 = vmatpush.msra.mxu0 %v2666
        %2668 = vmatpush.msra.mxu0 %v2665
        %2669 = vmatpush.msra.mxu0 %v2664
        %2670 = vmatpush.msra.mxu0 %v2663
        %2671 = vmatpush.msra.mxu0 %v2662
        %2672 = vmatpush.msra.mxu0 %v2661
        %2673 = vmatpush.msra.mxu0 %v2660
        %2674 = vmatpush.msra.mxu0 %v2659
        %2675 = vmatpush.msra.mxu0 %v2658
        %2676 = vmatpush.msra.mxu0 %v2657
        %2677 = vmatpush.msra.mxu0 %v2656
        %2678 = vmatpush.msra.mxu0 %v2655
        %2679 = vmatpush.msra.mxu0 %v2654
        %2680 = vmatpush.msra.mxu0 %v2653
        %2681 = vmatpush.msra.mxu0 %v2652
        %2682 = vmatpush.msra.mxu0 %v2651
        %2683 = vmatmul.f32.gmra.mxu0 %v2618
        %v2684 = vpop.f32.mrf.mxu0
        %v2685 = vadd.f32 0.0, %v2684
        %2686 = vmatmul.f32.gmra.mxu0 %v2619
        %v2687 = vpop.f32.mrf.mxu0
        %v2688 = vadd.f32 0.0, %v2687
        %2689 = vmatmul.f32.gmra.mxu0 %v2620
        %v2690 = vpop.f32.mrf.mxu0
        %v2691 = vadd.f32 0.0, %v2690
        %2692 = vmatmul.f32.gmra.mxu0 %v2621
        %v2693 = vpop.f32.mrf.mxu0
        %v2694 = vadd.f32 0.0, %v2693
        %2695 = vmatmul.f32.gmra.mxu0 %v2622
        %v2696 = vpop.f32.mrf.mxu0
        %v2697 = vadd.f32 0.0, %v2696
        %2698 = vmatmul.f32.gmra.mxu0 %v2623
        %v2699 = vpop.f32.mrf.mxu0
        %v2700 = vadd.f32 0.0, %v2699
        %2701 = vmatmul.f32.gmra.mxu0 %v2624
        %v2702 = vpop.f32.mrf.mxu0
        %v2703 = vadd.f32 0.0, %v2702
        %2704 = vmatmul.f32.gmra.mxu0 %v2625
        %v2705 = vpop.f32.mrf.mxu0
        %v2706 = vadd.f32 0.0, %v2705
        %2707 = vmatmul.f32.gmra.mxu0 %v2626
        %v2708 = vpop.f32.mrf.mxu0
        %v2709 = vadd.f32 0.0, %v2708
        %2710 = vmatmul.f32.gmra.mxu0 %v2627
        %v2711 = vpop.f32.mrf.mxu0
        %v2712 = vadd.f32 0.0, %v2711
        %2713 = vmatmul.f32.gmra.mxu0 %v2628
        %v2714 = vpop.f32.mrf.mxu0
        %v2715 = vadd.f32 0.0, %v2714
        %2716 = vmatmul.f32.gmra.mxu0 %v2629
        %v2717 = vpop.f32.mrf.mxu0
        %v2718 = vadd.f32 0.0, %v2717
        %2719 = vmatmul.f32.gmra.mxu0 %v2630
        %v2720 = vpop.f32.mrf.mxu0
        %v2721 = vadd.f32 0.0, %v2720
        %2722 = vmatmul.f32.gmra.mxu0 %v2631
        %v2723 = vpop.f32.mrf.mxu0
        %v2724 = vadd.f32 0.0, %v2723
        %2725 = vmatmul.f32.gmra.mxu0 %v2632
        %v2726 = vpop.f32.mrf.mxu0
        %v2727 = vadd.f32 0.0, %v2726
        %2728 = vmatmul.f32.gmra.mxu0 %v2633
        %v2729 = vpop.f32.mrf.mxu0
        %v2730 = vadd.f32 0.0, %v2729
        %2731 = vmatmul.f32.gmra.mxu0 %v2634
        %v2732 = vpop.f32.mrf.mxu0
        %v2733 = vadd.f32 0.0, %v2732
        %2734 = vmatmul.f32.gmra.mxu0 %v2635
        %v2735 = vpop.f32.mrf.mxu0
        %v2736 = vadd.f32 0.0, %v2735
        %2737 = vmatmul.f32.gmra.mxu0 %v2636
        %v2738 = vpop.f32.mrf.mxu0
        %v2739 = vadd.f32 0.0, %v2738
        %2740 = vmatmul.f32.gmra.mxu0 %v2637
        %v2741 = vpop.f32.mrf.mxu0
        %v2742 = vadd.f32 0.0, %v2741
        %2743 = vmatmul.f32.gmra.mxu0 %v2638
        %v2744 = vpop.f32.mrf.mxu0
        %v2745 = vadd.f32 0.0, %v2744
        %2746 = vmatmul.f32.gmra.mxu0 %v2639
        %v2747 = vpop.f32.mrf.mxu0
        %v2748 = vadd.f32 0.0, %v2747
        %2749 = vmatmul.f32.gmra.mxu0 %v2640
        %v2750 = vpop.f32.mrf.mxu0
        %v2751 = vadd.f32 0.0, %v2750
        %2752 = vmatmul.f32.gmra.mxu0 %v2641
        %v2753 = vpop.f32.mrf.mxu0
        %v2754 = vadd.f32 0.0, %v2753
        %2755 = vmatmul.f32.gmra.mxu0 %v2642
        %v2756 = vpop.f32.mrf.mxu0
        %v2757 = vadd.f32 0.0, %v2756
        %2758 = vmatmul.f32.gmra.mxu0 %v2643
        %v2759 = vpop.f32.mrf.mxu0
        %v2760 = vadd.f32 0.0, %v2759
        %2761 = vmatmul.f32.gmra.mxu0 %v2644
        %v2762 = vpop.f32.mrf.mxu0
        %v2763 = vadd.f32 0.0, %v2762
        %2764 = vmatmul.f32.gmra.mxu0 %v2645
        %v2765 = vpop.f32.mrf.mxu0
        %v2766 = vadd.f32 0.0, %v2765
        %2767 = vmatmul.f32.gmra.mxu0 %v2646
        %v2768 = vpop.f32.mrf.mxu0
        %v2769 = vadd.f32 0.0, %v2768
        %2770 = vmatmul.f32.gmra.mxu0 %v2647
        %v2771 = vpop.f32.mrf.mxu0
        %v2772 = vadd.f32 0.0, %v2771
        %2773 = vmatmul.f32.gmra.mxu0 %v2648
        %v2774 = vpop.f32.mrf.mxu0
        %v2775 = vadd.f32 0.0, %v2774
        %2776 = vmatmul.f32.gmra.mxu0 %v2649
        %v2777 = vpop.f32.mrf.mxu0
        %v2778 = vadd.f32 0.0, %v2777
        %2779 = vdwg.mxu0
        %v2780 = vadd.f32 %v2586, %v2685
        %v2781 = vadd.f32 %v2587, %v2688
        %v2782 = vadd.f32 %v2588, %v2691
        %v2783 = vadd.f32 %v2589, %v2694
        %v2784 = vadd.f32 %v2590, %v2697
        %v2785 = vadd.f32 %v2591, %v2700
        %v2786 = vadd.f32 %v2592, %v2703
        %v2787 = vadd.f32 %v2593, %v2706
        %v2788 = vadd.f32 %v2594, %v2709
        %v2789 = vadd.f32 %v2595, %v2712
        %v2790 = vadd.f32 %v2596, %v2715
        %v2791 = vadd.f32 %v2597, %v2718
        %v2792 = vadd.f32 %v2598, %v2721
        %v2793 = vadd.f32 %v2599, %v2724
        %v2794 = vadd.f32 %v2600, %v2727
        %v2795 = vadd.f32 %v2601, %v2730
        %v2796 = vadd.f32 %v2602, %v2733
        %v2797 = vadd.f32 %v2603, %v2736
        %v2798 = vadd.f32 %v2604, %v2739
        %v2799 = vadd.f32 %v2605, %v2742
        %v2800 = vadd.f32 %v2606, %v2745
        %v2801 = vadd.f32 %v2607, %v2748
        %v2802 = vadd.f32 %v2608, %v2751
        %v2803 = vadd.f32 %v2609, %v2754
        %v2804 = vadd.f32 %v2610, %v2757
        %v2805 = vadd.f32 %v2611, %v2760
        %v2806 = vadd.f32 %v2612, %v2763
        %v2807 = vadd.f32 %v2613, %v2766
        %v2808 = vadd.f32 %v2614, %v2769
        %v2809 = vadd.f32 %v2615, %v2772
        %v2810 = vadd.f32 %v2616, %v2775
        %v2811 = vadd.f32 %v2617, %v2778
        %v2812 = vld [vmem:[#allocation2 + $0x29] sm:$0xff]
        %v2813 = vld [vmem:[#allocation2 + $0x31] sm:$0xff]
        %v2814 = vld [vmem:[#allocation2 + $0x39] sm:$0xff]
        %v2815 = vld [vmem:[#allocation2 + $0x41] sm:$0xff]
        %v2816 = vld [vmem:[#allocation2 + $0x49] sm:$0xff]
        %v2817 = vld [vmem:[#allocation2 + $0x51] sm:$0xff]
        %v2818 = vld [vmem:[#allocation2 + $0x59] sm:$0xff]
        %v2819 = vld [vmem:[#allocation2 + $0x61] sm:$0xff]
        %v2820 = vld [vmem:[#allocation2 + $0x69] sm:$0xff]
        %v2821 = vld [vmem:[#allocation2 + $0x71] sm:$0xff]
        %v2822 = vld [vmem:[#allocation2 + $0x79] sm:$0xff]
        %v2823 = vld [vmem:[#allocation2 + $0x81] sm:$0xff]
        %v2824 = vld [vmem:[#allocation2 + $0x89] sm:$0xff]
        %v2825 = vld [vmem:[#allocation2 + $0x91] sm:$0xff]
        %v2826 = vld [vmem:[#allocation2 + $0x99] sm:$0xff]
        %v2827 = vld [vmem:[#allocation2 + $0xa1] sm:$0xff]
        %v2828 = vld [vmem:[#allocation2 + $0xa9] sm:$0xff]
        %v2829 = vld [vmem:[#allocation2 + $0xb1] sm:$0xff]
        %v2830 = vld [vmem:[#allocation2 + $0xb9] sm:$0xff]
        %v2831 = vld [vmem:[#allocation2 + $0xc1] sm:$0xff]
        %v2832 = vld [vmem:[#allocation2 + $0xc9] sm:$0xff]
        %v2833 = vld [vmem:[#allocation2 + $0xd1] sm:$0xff]
        %v2834 = vld [vmem:[#allocation2 + $0xd9] sm:$0xff]
        %v2835 = vld [vmem:[#allocation2 + $0xe1] sm:$0xff]
        %v2836 = vld [vmem:[#allocation2 + $0xe9] sm:$0xff]
        %v2837 = vld [vmem:[#allocation2 + $0xf1] sm:$0xff]
        %v2838 = vld [vmem:[#allocation2 + $0xf9] sm:$0xff]
        %v2839 = vld [vmem:[#allocation2 + $0x101] sm:$0xff]
        %v2840 = vld [vmem:[#allocation2 + $0x109] sm:$0xff]
        %v2841 = vld [vmem:[#allocation2 + $0x111] sm:$0xff]
        %v2842 = vld [vmem:[#allocation2 + $0x119] sm:$0xff]
        %v2843 = vld [vmem:[#allocation2 + $0x121] sm:$0xff]
        %v2844 = vsel %vm1520, %v2812, 0.0
        %v2845 = vsel %vm1521, %v2813, 0.0
        %v2846 = vsel %vm1522, %v2814, 0.0
        %v2847 = vsel %vm1523, %v2815, 0.0
        %v2848 = vsel %vm1524, %v2816, 0.0
        %v2849 = vsel %vm1525, %v2817, 0.0
        %v2850 = vsel %vm1526, %v2818, 0.0
        %v2851 = vsel %vm1527, %v2819, 0.0
        %v2852 = vsel %vm1528, %v2820, 0.0
        %v2853 = vsel %vm1529, %v2821, 0.0
        %v2854 = vsel %vm1530, %v2822, 0.0
        %v2855 = vsel %vm1531, %v2823, 0.0
        %v2856 = vsel %vm1532, %v2824, 0.0
        %v2857 = vsel %vm1533, %v2825, 0.0
        %v2858 = vsel %vm1534, %v2826, 0.0
        %v2859 = vsel %vm1535, %v2827, 0.0
        %v2860 = vsel %vm1536, %v2828, 0.0
        %v2861 = vsel %vm1537, %v2829, 0.0
        %v2862 = vsel %vm1538, %v2830, 0.0
        %v2863 = vsel %vm1539, %v2831, 0.0
        %v2864 = vsel %vm1540, %v2832, 0.0
        %v2865 = vsel %vm1541, %v2833, 0.0
        %v2866 = vsel %vm1542, %v2834, 0.0
        %v2867 = vsel %vm1543, %v2835, 0.0
        %v2868 = vsel %vm1544, %v2836, 0.0
        %v2869 = vsel %vm1545, %v2837, 0.0
        %v2870 = vsel %vm1546, %v2838, 0.0
        %v2871 = vsel %vm1547, %v2839, 0.0
        %v2872 = vsel %vm1548, %v2840, 0.0
        %v2873 = vsel %vm1549, %v2841, 0.0
        %v2874 = vsel %vm1550, %v2842, 0.0
        %v2875 = vsel %vm1551, %v2843, 0.0
        %s2876 = scalar_lea.vmem [#allocation7], 1024
        %v2877 = vld [vmem:[%s2876] sm:$0xff]
        %v2878 = vld [vmem:[%s2876 + $0x8] sm:$0xff]
        %v2879 = vld [vmem:[%s2876 + $0x10] sm:$0xff]
        %v2880 = vld [vmem:[%s2876 + $0x18] sm:$0xff]
        %v2881 = vld [vmem:[%s2876 + $0x20] sm:$0xff]
        %v2882 = vld [vmem:[%s2876 + $0x28] sm:$0xff]
        %v2883 = vld [vmem:[%s2876 + $0x30] sm:$0xff]
        %v2884 = vld [vmem:[%s2876 + $0x38] sm:$0xff]
        %v2885 = vld [vmem:[%s2876 + $0x40] sm:$0xff]
        %v2886 = vld [vmem:[%s2876 + $0x48] sm:$0xff]
        %v2887 = vld [vmem:[%s2876 + $0x50] sm:$0xff]
        %v2888 = vld [vmem:[%s2876 + $0x58] sm:$0xff]
        %v2889 = vld [vmem:[%s2876 + $0x60] sm:$0xff]
        %v2890 = vld [vmem:[%s2876 + $0x68] sm:$0xff]
        %v2891 = vld [vmem:[%s2876 + $0x70] sm:$0xff]
        %v2892 = vld [vmem:[%s2876 + $0x78] sm:$0xff]
        %2893 = vmatpush.msra.mxu0 %v2892
        %2894 = vmatpush.msra.mxu0 %v2891
        %2895 = vmatpush.msra.mxu0 %v2890
        %2896 = vmatpush.msra.mxu0 %v2889
        %2897 = vmatpush.msra.mxu0 %v2888
        %2898 = vmatpush.msra.mxu0 %v2887
        %2899 = vmatpush.msra.mxu0 %v2886
        %2900 = vmatpush.msra.mxu0 %v2885
        %2901 = vmatpush.msra.mxu0 %v2884
        %2902 = vmatpush.msra.mxu0 %v2883
        %2903 = vmatpush.msra.mxu0 %v2882
        %2904 = vmatpush.msra.mxu0 %v2881
        %2905 = vmatpush.msra.mxu0 %v2880
        %2906 = vmatpush.msra.mxu0 %v2879
        %2907 = vmatpush.msra.mxu0 %v2878
        %2908 = vmatpush.msra.mxu0 %v2877
        %2909 = vmatmul.f32.gmra.mxu0 %v2844
        %v2910 = vpop.f32.mrf.mxu0
        %v2911 = vadd.f32 0.0, %v2910
        %2912 = vmatmul.f32.gmra.mxu0 %v2845
        %v2913 = vpop.f32.mrf.mxu0
        %v2914 = vadd.f32 0.0, %v2913
        %2915 = vmatmul.f32.gmra.mxu0 %v2846
        %v2916 = vpop.f32.mrf.mxu0
        %v2917 = vadd.f32 0.0, %v2916
        %2918 = vmatmul.f32.gmra.mxu0 %v2847
        %v2919 = vpop.f32.mrf.mxu0
        %v2920 = vadd.f32 0.0, %v2919
        %2921 = vmatmul.f32.gmra.mxu0 %v2848
        %v2922 = vpop.f32.mrf.mxu0
        %v2923 = vadd.f32 0.0, %v2922
        %2924 = vmatmul.f32.gmra.mxu0 %v2849
        %v2925 = vpop.f32.mrf.mxu0
        %v2926 = vadd.f32 0.0, %v2925
        %2927 = vmatmul.f32.gmra.mxu0 %v2850
        %v2928 = vpop.f32.mrf.mxu0
        %v2929 = vadd.f32 0.0, %v2928
        %2930 = vmatmul.f32.gmra.mxu0 %v2851
        %v2931 = vpop.f32.mrf.mxu0
        %v2932 = vadd.f32 0.0, %v2931
        %2933 = vmatmul.f32.gmra.mxu0 %v2852
        %v2934 = vpop.f32.mrf.mxu0
        %v2935 = vadd.f32 0.0, %v2934
        %2936 = vmatmul.f32.gmra.mxu0 %v2853
        %v2937 = vpop.f32.mrf.mxu0
        %v2938 = vadd.f32 0.0, %v2937
        %2939 = vmatmul.f32.gmra.mxu0 %v2854
        %v2940 = vpop.f32.mrf.mxu0
        %v2941 = vadd.f32 0.0, %v2940
        %2942 = vmatmul.f32.gmra.mxu0 %v2855
        %v2943 = vpop.f32.mrf.mxu0
        %v2944 = vadd.f32 0.0, %v2943
        %2945 = vmatmul.f32.gmra.mxu0 %v2856
        %v2946 = vpop.f32.mrf.mxu0
        %v2947 = vadd.f32 0.0, %v2946
        %2948 = vmatmul.f32.gmra.mxu0 %v2857
        %v2949 = vpop.f32.mrf.mxu0
        %v2950 = vadd.f32 0.0, %v2949
        %2951 = vmatmul.f32.gmra.mxu0 %v2858
        %v2952 = vpop.f32.mrf.mxu0
        %v2953 = vadd.f32 0.0, %v2952
        %2954 = vmatmul.f32.gmra.mxu0 %v2859
        %v2955 = vpop.f32.mrf.mxu0
        %v2956 = vadd.f32 0.0, %v2955
        %2957 = vmatmul.f32.gmra.mxu0 %v2860
        %v2958 = vpop.f32.mrf.mxu0
        %v2959 = vadd.f32 0.0, %v2958
        %2960 = vmatmul.f32.gmra.mxu0 %v2861
        %v2961 = vpop.f32.mrf.mxu0
        %v2962 = vadd.f32 0.0, %v2961
        %2963 = vmatmul.f32.gmra.mxu0 %v2862
        %v2964 = vpop.f32.mrf.mxu0
        %v2965 = vadd.f32 0.0, %v2964
        %2966 = vmatmul.f32.gmra.mxu0 %v2863
        %v2967 = vpop.f32.mrf.mxu0
        %v2968 = vadd.f32 0.0, %v2967
        %2969 = vmatmul.f32.gmra.mxu0 %v2864
        %v2970 = vpop.f32.mrf.mxu0
        %v2971 = vadd.f32 0.0, %v2970
        %2972 = vmatmul.f32.gmra.mxu0 %v2865
        %v2973 = vpop.f32.mrf.mxu0
        %v2974 = vadd.f32 0.0, %v2973
        %2975 = vmatmul.f32.gmra.mxu0 %v2866
        %v2976 = vpop.f32.mrf.mxu0
        %v2977 = vadd.f32 0.0, %v2976
        %2978 = vmatmul.f32.gmra.mxu0 %v2867
        %v2979 = vpop.f32.mrf.mxu0
        %v2980 = vadd.f32 0.0, %v2979
        %2981 = vmatmul.f32.gmra.mxu0 %v2868
        %v2982 = vpop.f32.mrf.mxu0
        %v2983 = vadd.f32 0.0, %v2982
        %2984 = vmatmul.f32.gmra.mxu0 %v2869
        %v2985 = vpop.f32.mrf.mxu0
        %v2986 = vadd.f32 0.0, %v2985
        %2987 = vmatmul.f32.gmra.mxu0 %v2870
        %v2988 = vpop.f32.mrf.mxu0
        %v2989 = vadd.f32 0.0, %v2988
        %2990 = vmatmul.f32.gmra.mxu0 %v2871
        %v2991 = vpop.f32.mrf.mxu0
        %v2992 = vadd.f32 0.0, %v2991
        %2993 = vmatmul.f32.gmra.mxu0 %v2872
        %v2994 = vpop.f32.mrf.mxu0
        %v2995 = vadd.f32 0.0, %v2994
        %2996 = vmatmul.f32.gmra.mxu0 %v2873
        %v2997 = vpop.f32.mrf.mxu0
        %v2998 = vadd.f32 0.0, %v2997
        %2999 = vmatmul.f32.gmra.mxu0 %v2874
        %v3000 = vpop.f32.mrf.mxu0
        %v3001 = vadd.f32 0.0, %v3000
        %3002 = vmatmul.f32.gmra.mxu0 %v2875
        %v3003 = vpop.f32.mrf.mxu0
        %v3004 = vadd.f32 0.0, %v3003
        %3005 = vdwg.mxu0
        %v3006 = vadd.f32 %v2780, %v2911
        %v3007 = vadd.f32 %v2781, %v2914
        %v3008 = vadd.f32 %v2782, %v2917
        %v3009 = vadd.f32 %v2783, %v2920
        %v3010 = vadd.f32 %v2784, %v2923
        %v3011 = vadd.f32 %v2785, %v2926
        %v3012 = vadd.f32 %v2786, %v2929
        %v3013 = vadd.f32 %v2787, %v2932
        %v3014 = vadd.f32 %v2788, %v2935
        %v3015 = vadd.f32 %v2789, %v2938
        %v3016 = vadd.f32 %v2790, %v2941
        %v3017 = vadd.f32 %v2791, %v2944
        %v3018 = vadd.f32 %v2792, %v2947
        %v3019 = vadd.f32 %v2793, %v2950
        %v3020 = vadd.f32 %v2794, %v2953
        %v3021 = vadd.f32 %v2795, %v2956
        %v3022 = vadd.f32 %v2796, %v2959
        %v3023 = vadd.f32 %v2797, %v2962
        %v3024 = vadd.f32 %v2798, %v2965
        %v3025 = vadd.f32 %v2799, %v2968
        %v3026 = vadd.f32 %v2800, %v2971
        %v3027 = vadd.f32 %v2801, %v2974
        %v3028 = vadd.f32 %v2802, %v2977
        %v3029 = vadd.f32 %v2803, %v2980
        %v3030 = vadd.f32 %v2804, %v2983
        %v3031 = vadd.f32 %v2805, %v2986
        %v3032 = vadd.f32 %v2806, %v2989
        %v3033 = vadd.f32 %v2807, %v2992
        %v3034 = vadd.f32 %v2808, %v2995
        %v3035 = vadd.f32 %v2809, %v2998
        %v3036 = vadd.f32 %v2810, %v3001
        %v3037 = vadd.f32 %v2811, %v3004
        %v3038 = vmax.f32 %v3006, 0.0
        %v3039 = vmax.f32 %v3007, 0.0
        %v3040 = vmax.f32 %v3008, 0.0
        %v3041 = vmax.f32 %v3009, 0.0
        %v3042 = vmax.f32 %v3010, 0.0
        %v3043 = vmax.f32 %v3011, 0.0
        %v3044 = vmax.f32 %v3012, 0.0
        %v3045 = vmax.f32 %v3013, 0.0
        %v3046 = vmax.f32 %v3014, 0.0
        %v3047 = vmax.f32 %v3015, 0.0
        %v3048 = vmax.f32 %v3016, 0.0
        %v3049 = vmax.f32 %v3017, 0.0
        %v3050 = vmax.f32 %v3018, 0.0
        %v3051 = vmax.f32 %v3019, 0.0
        %v3052 = vmax.f32 %v3020, 0.0
        %v3053 = vmax.f32 %v3021, 0.0
        %v3054 = vmax.f32 %v3022, 0.0
        %v3055 = vmax.f32 %v3023, 0.0
        %v3056 = vmax.f32 %v3024, 0.0
        %v3057 = vmax.f32 %v3025, 0.0
        %v3058 = vmax.f32 %v3026, 0.0
        %v3059 = vmax.f32 %v3027, 0.0
        %v3060 = vmax.f32 %v3028, 0.0
        %v3061 = vmax.f32 %v3029, 0.0
        %v3062 = vmax.f32 %v3030, 0.0
        %v3063 = vmax.f32 %v3031, 0.0
        %v3064 = vmax.f32 %v3032, 0.0
        %v3065 = vmax.f32 %v3033, 0.0
        %v3066 = vmax.f32 %v3034, 0.0
        %v3067 = vmax.f32 %v3035, 0.0
        %v3068 = vmax.f32 %v3036, 0.0
        %v3069 = vmax.f32 %v3037, 0.0
        %3070 = vst [vmem:[#allocation3] sm:$0xff] 0.0
        %3071 = vst [vmem:[#allocation3 + $0x8] sm:$0xff] 0.0
        %3072 = vst [vmem:[#allocation3 + $0x10] sm:$0xff] 0.0
        %3073 = vst [vmem:[#allocation3 + $0x18] sm:$0xff] 0.0
        %3074 = vst [vmem:[#allocation3 + $0x20] sm:$0xff] 0.0
        %3075 = vst [vmem:[#allocation3 + $0x28] sm:$0xff] 0.0
        %3076 = vst [vmem:[#allocation3 + $0x30] sm:$0xff] 0.0
        %3077 = vst [vmem:[#allocation3 + $0x38] sm:$0xff] 0.0
        %3078 = vst [vmem:[#allocation3 + $0x40] sm:$0xff] 0.0
        %3079 = vst [vmem:[#allocation3 + $0x48] sm:$0xff] 0.0
        %3080 = vst [vmem:[#allocation3 + $0x50] sm:$0xff] 0.0
        %3081 = vst [vmem:[#allocation3 + $0x58] sm:$0xff] 0.0
        %3082 = vst [vmem:[#allocation3 + $0x60] sm:$0xff] 0.0
        %3083 = vst [vmem:[#allocation3 + $0x68] sm:$0xff] 0.0
        %3084 = vst [vmem:[#allocation3 + $0x70] sm:$0xff] 0.0
        %3085 = vst [vmem:[#allocation3 + $0x78] sm:$0xff] 0.0
        %3086 = vst [vmem:[#allocation3 + $0x80] sm:$0xff] 0.0
        %3087 = vst [vmem:[#allocation3 + $0x88] sm:$0xff] 0.0
        %3088 = vst [vmem:[#allocation3 + $0x90] sm:$0xff] 0.0
        %3089 = vst [vmem:[#allocation3 + $0x98] sm:$0xff] 0.0
        %3090 = vst [vmem:[#allocation3 + $0xa0] sm:$0xff] 0.0
        %3091 = vst [vmem:[#allocation3 + $0xa8] sm:$0xff] 0.0
        %3092 = vst [vmem:[#allocation3 + $0xb0] sm:$0xff] 0.0
        %3093 = vst [vmem:[#allocation3 + $0xb8] sm:$0xff] 0.0
        %3094 = vst [vmem:[#allocation3 + $0xc0] sm:$0xff] 0.0
        %3095 = vst [vmem:[#allocation3 + $0xc8] sm:$0xff] 0.0
        %3096 = vst [vmem:[#allocation3 + $0xd0] sm:$0xff] 0.0
        %3097 = vst [vmem:[#allocation3 + $0xd8] sm:$0xff] 0.0
        %3098 = vst [vmem:[#allocation3 + $0xe0] sm:$0xff] 0.0
        %3099 = vst [vmem:[#allocation3 + $0xe8] sm:$0xff] 0.0
        %3100 = vst [vmem:[#allocation3 + $0xf0] sm:$0xff] 0.0
        %3101 = vst [vmem:[#allocation3 + $0xf8] sm:$0xff] 0.0
        %3102 = vst [vmem:[#allocation3 + $0x100] sm:$0xff] 0.0
        %3103 = vst [vmem:[#allocation3 + $0x108] sm:$0xff] 0.0
        %3104 = vst [vmem:[#allocation3 + $0x110] sm:$0xff] 0.0
        %3105 = vst [vmem:[#allocation3 + $0x118] sm:$0xff] 0.0
        %3106 = vst [vmem:[#allocation3 + $0x120] sm:$0xff] 0.0
        %3107 = vst [vmem:[#allocation3 + $0x128] sm:$0xff] 0.0
        %3108 = vst [vmem:[#allocation3 + $0x18] sm:$0xff] %v3038
        %3109 = vst [vmem:[#allocation3 + $0x20] sm:$0xff] %v3039
        %3110 = vst [vmem:[#allocation3 + $0x28] sm:$0xff] %v3040
        %3111 = vst [vmem:[#allocation3 + $0x30] sm:$0xff] %v3041
        %3112 = vst [vmem:[#allocation3 + $0x38] sm:$0xff] %v3042
        %3113 = vst [vmem:[#allocation3 + $0x40] sm:$0xff] %v3043
        %3114 = vst [vmem:[#allocation3 + $0x48] sm:$0xff] %v3044
        %3115 = vst [vmem:[#allocation3 + $0x50] sm:$0xff] %v3045
        %3116 = vst [vmem:[#allocation3 + $0x58] sm:$0xff] %v3046
        %3117 = vst [vmem:[#allocation3 + $0x60] sm:$0xff] %v3047
        %3118 = vst [vmem:[#allocation3 + $0x68] sm:$0xff] %v3048
        %3119 = vst [vmem:[#allocation3 + $0x70] sm:$0xff] %v3049
        %3120 = vst [vmem:[#allocation3 + $0x78] sm:$0xff] %v3050
        %3121 = vst [vmem:[#allocation3 + $0x80] sm:$0xff] %v3051
        %3122 = vst [vmem:[#allocation3 + $0x88] sm:$0xff] %v3052
        %3123 = vst [vmem:[#allocation3 + $0x90] sm:$0xff] %v3053
        %3124 = vst [vmem:[#allocation3 + $0x98] sm:$0xff] %v3054
        %3125 = vst [vmem:[#allocation3 + $0xa0] sm:$0xff] %v3055
        %3126 = vst [vmem:[#allocation3 + $0xa8] sm:$0xff] %v3056
        %3127 = vst [vmem:[#allocation3 + $0xb0] sm:$0xff] %v3057
        %3128 = vst [vmem:[#allocation3 + $0xb8] sm:$0xff] %v3058
        %3129 = vst [vmem:[#allocation3 + $0xc0] sm:$0xff] %v3059
        %3130 = vst [vmem:[#allocation3 + $0xc8] sm:$0xff] %v3060
        %3131 = vst [vmem:[#allocation3 + $0xd0] sm:$0xff] %v3061
        %3132 = vst [vmem:[#allocation3 + $0xd8] sm:$0xff] %v3062
        %3133 = vst [vmem:[#allocation3 + $0xe0] sm:$0xff] %v3063
        %3134 = vst [vmem:[#allocation3 + $0xe8] sm:$0xff] %v3064
        %3135 = vst [vmem:[#allocation3 + $0xf0] sm:$0xff] %v3065
        %3136 = vst [vmem:[#allocation3 + $0xf8] sm:$0xff] %v3066
        %3137 = vst [vmem:[#allocation3 + $0x100] sm:$0xff] %v3067
        %3138 = vst [vmem:[#allocation3 + $0x108] sm:$0xff] %v3068
        %3139 = vst [vmem:[#allocation3 + $0x110] sm:$0xff] %v3069
        %v3140 = vld [vmem:[%s4] sm:$0x1]
        %v3142 = vperm.slane %v3140, 0
        %v3144 = vld [vmem:[#allocation3 + $0x7] sm:$0xff]
        %v3145 = vld [vmem:[#allocation3 + $0xf] sm:$0xff]
        %v3146 = vld [vmem:[#allocation3 + $0x17] sm:$0xff]
        %v3147 = vld [vmem:[#allocation3 + $0x1f] sm:$0xff]
        %v3148 = vld [vmem:[#allocation3 + $0x27] sm:$0xff]
        %v3149 = vld [vmem:[#allocation3 + $0x2f] sm:$0xff]
        %v3150 = vld [vmem:[#allocation3 + $0x37] sm:$0xff]
        %v3151 = vld [vmem:[#allocation3 + $0x3f] sm:$0xff]
        %v3152 = vld [vmem:[#allocation3 + $0x47] sm:$0xff]
        %v3153 = vld [vmem:[#allocation3 + $0x4f] sm:$0xff]
        %v3154 = vld [vmem:[#allocation3 + $0x57] sm:$0xff]
        %v3155 = vld [vmem:[#allocation3 + $0x5f] sm:$0xff]
        %v3156 = vld [vmem:[#allocation3 + $0x67] sm:$0xff]
        %v3157 = vld [vmem:[#allocation3 + $0x6f] sm:$0xff]
        %v3158 = vld [vmem:[#allocation3 + $0x77] sm:$0xff]
        %v3159 = vld [vmem:[#allocation3 + $0x7f] sm:$0xff]
        %v3160 = vld [vmem:[#allocation3 + $0x87] sm:$0xff]
        %v3161 = vld [vmem:[#allocation3 + $0x8f] sm:$0xff]
        %v3162 = vld [vmem:[#allocation3 + $0x97] sm:$0xff]
        %v3163 = vld [vmem:[#allocation3 + $0x9f] sm:$0xff]
        %v3164 = vld [vmem:[#allocation3 + $0xa7] sm:$0xff]
        %v3165 = vld [vmem:[#allocation3 + $0xaf] sm:$0xff]
        %v3166 = vld [vmem:[#allocation3 + $0xb7] sm:$0xff]
        %v3167 = vld [vmem:[#allocation3 + $0xbf] sm:$0xff]
        %v3168 = vld [vmem:[#allocation3 + $0xc7] sm:$0xff]
        %v3169 = vld [vmem:[#allocation3 + $0xcf] sm:$0xff]
        %v3170 = vld [vmem:[#allocation3 + $0xd7] sm:$0xff]
        %v3171 = vld [vmem:[#allocation3 + $0xdf] sm:$0xff]
        %v3172 = vld [vmem:[#allocation3 + $0xe7] sm:$0xff]
        %v3173 = vld [vmem:[#allocation3 + $0xef] sm:$0xff]
        %v3174 = vld [vmem:[#allocation3 + $0xf7] sm:$0xff]
        %v3175 = vld [vmem:[#allocation3 + $0xff] sm:$0xff]
        %v3176 = vsel %vm1037, %v3144, 0.0
        %v3177 = vsel %vm1038, %v3145, 0.0
        %v3178 = vsel %vm1039, %v3146, 0.0
        %v3179 = vsel %vm1040, %v3147, 0.0
        %v3180 = vsel %vm1041, %v3148, 0.0
        %v3181 = vsel %vm1042, %v3149, 0.0
        %v3182 = vsel %vm1043, %v3150, 0.0
        %v3183 = vsel %vm1044, %v3151, 0.0
        %v3184 = vsel %vm1045, %v3152, 0.0
        %v3185 = vsel %vm1046, %v3153, 0.0
        %v3186 = vsel %vm1047, %v3154, 0.0
        %v3187 = vsel %vm1048, %v3155, 0.0
        %v3188 = vsel %vm1049, %v3156, 0.0
        %v3189 = vsel %vm1050, %v3157, 0.0
        %v3190 = vsel %vm1051, %v3158, 0.0
        %v3191 = vsel %vm1052, %v3159, 0.0
        %v3192 = vsel %vm1053, %v3160, 0.0
        %v3193 = vsel %vm1054, %v3161, 0.0
        %v3194 = vsel %vm1055, %v3162, 0.0
        %v3195 = vsel %vm1056, %v3163, 0.0
        %v3196 = vsel %vm1057, %v3164, 0.0
        %v3197 = vsel %vm1058, %v3165, 0.0
        %v3198 = vsel %vm1059, %v3166, 0.0
        %v3199 = vsel %vm1060, %v3167, 0.0
        %v3200 = vsel %vm1061, %v3168, 0.0
        %v3201 = vsel %vm1062, %v3169, 0.0
        %v3202 = vsel %vm1063, %v3170, 0.0
        %v3203 = vsel %vm1064, %v3171, 0.0
        %v3204 = vsel %vm1065, %v3172, 0.0
        %v3205 = vsel %vm1066, %v3173, 0.0
        %v3206 = vsel %vm1067, %v3174, 0.0
        %v3207 = vsel %vm1068, %v3175, 0.0
        %v3208 = vld [vmem:[#allocation9] sm:$0xff]
        %v3209 = vld [vmem:[#allocation9 + $0x8] sm:$0xff]
        %v3210 = vld [vmem:[#allocation9 + $0x10] sm:$0xff]
        %v3211 = vld [vmem:[#allocation9 + $0x18] sm:$0xff]
        %v3212 = vld [vmem:[#allocation9 + $0x20] sm:$0xff]
        %v3213 = vld [vmem:[#allocation9 + $0x28] sm:$0xff]
        %v3214 = vld [vmem:[#allocation9 + $0x30] sm:$0xff]
        %v3215 = vld [vmem:[#allocation9 + $0x38] sm:$0xff]
        %v3216 = vld [vmem:[#allocation9 + $0x40] sm:$0xff]
        %v3217 = vld [vmem:[#allocation9 + $0x48] sm:$0xff]
        %v3218 = vld [vmem:[#allocation9 + $0x50] sm:$0xff]
        %v3219 = vld [vmem:[#allocation9 + $0x58] sm:$0xff]
        %v3220 = vld [vmem:[#allocation9 + $0x60] sm:$0xff]
        %v3221 = vld [vmem:[#allocation9 + $0x68] sm:$0xff]
        %v3222 = vld [vmem:[#allocation9 + $0x70] sm:$0xff]
        %v3223 = vld [vmem:[#allocation9 + $0x78] sm:$0xff]
        %3224 = vmatpush.msra.mxu0 %v3223
        %3225 = vmatpush.msra.mxu0 %v3222
        %3226 = vmatpush.msra.mxu0 %v3221
        %3227 = vmatpush.msra.mxu0 %v3220
        %3228 = vmatpush.msra.mxu0 %v3219
        %3229 = vmatpush.msra.mxu0 %v3218
        %3230 = vmatpush.msra.mxu0 %v3217
        %3231 = vmatpush.msra.mxu0 %v3216
        %3232 = vmatpush.msra.mxu0 %v3215
        %3233 = vmatpush.msra.mxu0 %v3214
        %3234 = vmatpush.msra.mxu0 %v3213
        %3235 = vmatpush.msra.mxu0 %v3212
        %3236 = vmatpush.msra.mxu0 %v3211
        %3237 = vmatpush.msra.mxu0 %v3210
        %3238 = vmatpush.msra.mxu0 %v3209
        %3239 = vmatpush.msra.mxu0 %v3208
        %3240 = vmatmul.f32.gmra.mxu0 %v3176
        %v3241 = vpop.f32.mrf.mxu0
        %v3242 = vadd.f32 0.0, %v3241
        %3243 = vmatmul.f32.gmra.mxu0 %v3177
        %v3244 = vpop.f32.mrf.mxu0
        %v3245 = vadd.f32 0.0, %v3244
        %3246 = vmatmul.f32.gmra.mxu0 %v3178
        %v3247 = vpop.f32.mrf.mxu0
        %v3248 = vadd.f32 0.0, %v3247
        %3249 = vmatmul.f32.gmra.mxu0 %v3179
        %v3250 = vpop.f32.mrf.mxu0
        %v3251 = vadd.f32 0.0, %v3250
        %3252 = vmatmul.f32.gmra.mxu0 %v3180
        %v3253 = vpop.f32.mrf.mxu0
        %v3254 = vadd.f32 0.0, %v3253
        %3255 = vmatmul.f32.gmra.mxu0 %v3181
        %v3256 = vpop.f32.mrf.mxu0
        %v3257 = vadd.f32 0.0, %v3256
        %3258 = vmatmul.f32.gmra.mxu0 %v3182
        %v3259 = vpop.f32.mrf.mxu0
        %v3260 = vadd.f32 0.0, %v3259
        %3261 = vmatmul.f32.gmra.mxu0 %v3183
        %v3262 = vpop.f32.mrf.mxu0
        %v3263 = vadd.f32 0.0, %v3262
        %3264 = vmatmul.f32.gmra.mxu0 %v3184
        %v3265 = vpop.f32.mrf.mxu0
        %v3266 = vadd.f32 0.0, %v3265
        %3267 = vmatmul.f32.gmra.mxu0 %v3185
        %v3268 = vpop.f32.mrf.mxu0
        %v3269 = vadd.f32 0.0, %v3268
        %3270 = vmatmul.f32.gmra.mxu0 %v3186
        %v3271 = vpop.f32.mrf.mxu0
        %v3272 = vadd.f32 0.0, %v3271
        %3273 = vmatmul.f32.gmra.mxu0 %v3187
        %v3274 = vpop.f32.mrf.mxu0
        %v3275 = vadd.f32 0.0, %v3274
        %3276 = vmatmul.f32.gmra.mxu0 %v3188
        %v3277 = vpop.f32.mrf.mxu0
        %v3278 = vadd.f32 0.0, %v3277
        %3279 = vmatmul.f32.gmra.mxu0 %v3189
        %v3280 = vpop.f32.mrf.mxu0
        %v3281 = vadd.f32 0.0, %v3280
        %3282 = vmatmul.f32.gmra.mxu0 %v3190
        %v3283 = vpop.f32.mrf.mxu0
        %v3284 = vadd.f32 0.0, %v3283
        %3285 = vmatmul.f32.gmra.mxu0 %v3191
        %v3286 = vpop.f32.mrf.mxu0
        %v3287 = vadd.f32 0.0, %v3286
        %3288 = vmatmul.f32.gmra.mxu0 %v3192
        %v3289 = vpop.f32.mrf.mxu0
        %v3290 = vadd.f32 0.0, %v3289
        %3291 = vmatmul.f32.gmra.mxu0 %v3193
        %v3292 = vpop.f32.mrf.mxu0
        %v3293 = vadd.f32 0.0, %v3292
        %3294 = vmatmul.f32.gmra.mxu0 %v3194
        %v3295 = vpop.f32.mrf.mxu0
        %v3296 = vadd.f32 0.0, %v3295
        %3297 = vmatmul.f32.gmra.mxu0 %v3195
        %v3298 = vpop.f32.mrf.mxu0
        %v3299 = vadd.f32 0.0, %v3298
        %3300 = vmatmul.f32.gmra.mxu0 %v3196
        %v3301 = vpop.f32.mrf.mxu0
        %v3302 = vadd.f32 0.0, %v3301
        %3303 = vmatmul.f32.gmra.mxu0 %v3197
        %v3304 = vpop.f32.mrf.mxu0
        %v3305 = vadd.f32 0.0, %v3304
        %3306 = vmatmul.f32.gmra.mxu0 %v3198
        %v3307 = vpop.f32.mrf.mxu0
        %v3308 = vadd.f32 0.0, %v3307
        %3309 = vmatmul.f32.gmra.mxu0 %v3199
        %v3310 = vpop.f32.mrf.mxu0
        %v3311 = vadd.f32 0.0, %v3310
        %3312 = vmatmul.f32.gmra.mxu0 %v3200
        %v3313 = vpop.f32.mrf.mxu0
        %v3314 = vadd.f32 0.0, %v3313
        %3315 = vmatmul.f32.gmra.mxu0 %v3201
        %v3316 = vpop.f32.mrf.mxu0
        %v3317 = vadd.f32 0.0, %v3316
        %3318 = vmatmul.f32.gmra.mxu0 %v3202
        %v3319 = vpop.f32.mrf.mxu0
        %v3320 = vadd.f32 0.0, %v3319
        %3321 = vmatmul.f32.gmra.mxu0 %v3203
        %v3322 = vpop.f32.mrf.mxu0
        %v3323 = vadd.f32 0.0, %v3322
        %3324 = vmatmul.f32.gmra.mxu0 %v3204
        %v3325 = vpop.f32.mrf.mxu0
        %v3326 = vadd.f32 0.0, %v3325
        %3327 = vmatmul.f32.gmra.mxu0 %v3205
        %v3328 = vpop.f32.mrf.mxu0
        %v3329 = vadd.f32 0.0, %v3328
        %3330 = vmatmul.f32.gmra.mxu0 %v3206
        %v3331 = vpop.f32.mrf.mxu0
        %v3332 = vadd.f32 0.0, %v3331
        %3333 = vmatmul.f32.gmra.mxu0 %v3207
        %v3334 = vpop.f32.mrf.mxu0
        %v3335 = vadd.f32 0.0, %v3334
        %3336 = vdwg.mxu0
        %v3337 = vadd.f32 %v3142, %v3242
        %v3338 = vadd.f32 %v3142, %v3245
        %v3339 = vadd.f32 %v3142, %v3248
        %v3340 = vadd.f32 %v3142, %v3251
        %v3341 = vadd.f32 %v3142, %v3254
        %v3342 = vadd.f32 %v3142, %v3257
        %v3343 = vadd.f32 %v3142, %v3260
        %v3344 = vadd.f32 %v3142, %v3263
        %v3345 = vadd.f32 %v3142, %v3266
        %v3346 = vadd.f32 %v3142, %v3269
        %v3347 = vadd.f32 %v3142, %v3272
        %v3348 = vadd.f32 %v3142, %v3275
        %v3349 = vadd.f32 %v3142, %v3278
        %v3350 = vadd.f32 %v3142, %v3281
        %v3351 = vadd.f32 %v3142, %v3284
        %v3352 = vadd.f32 %v3142, %v3287
        %v3353 = vadd.f32 %v3142, %v3290
        %v3354 = vadd.f32 %v3142, %v3293
        %v3355 = vadd.f32 %v3142, %v3296
        %v3356 = vadd.f32 %v3142, %v3299
        %v3357 = vadd.f32 %v3142, %v3302
        %v3358 = vadd.f32 %v3142, %v3305
        %v3359 = vadd.f32 %v3142, %v3308
        %v3360 = vadd.f32 %v3142, %v3311
        %v3361 = vadd.f32 %v3142, %v3314
        %v3362 = vadd.f32 %v3142, %v3317
        %v3363 = vadd.f32 %v3142, %v3320
        %v3364 = vadd.f32 %v3142, %v3323
        %v3365 = vadd.f32 %v3142, %v3326
        %v3366 = vadd.f32 %v3142, %v3329
        %v3367 = vadd.f32 %v3142, %v3332
        %v3368 = vadd.f32 %v3142, %v3335
        %v3369 = vld [vmem:[#allocation3 + $0x8] sm:$0xff]
        %v3370 = vld [vmem:[#allocation3 + $0x10] sm:$0xff]
        %v3371 = vld [vmem:[#allocation3 + $0x18] sm:$0xff]
        %v3372 = vld [vmem:[#allocation3 + $0x20] sm:$0xff]
        %v3373 = vld [vmem:[#allocation3 + $0x28] sm:$0xff]
        %v3374 = vld [vmem:[#allocation3 + $0x30] sm:$0xff]
        %v3375 = vld [vmem:[#allocation3 + $0x38] sm:$0xff]
        %v3376 = vld [vmem:[#allocation3 + $0x40] sm:$0xff]
        %v3377 = vld [vmem:[#allocation3 + $0x48] sm:$0xff]
        %v3378 = vld [vmem:[#allocation3 + $0x50] sm:$0xff]
        %v3379 = vld [vmem:[#allocation3 + $0x58] sm:$0xff]
        %v3380 = vld [vmem:[#allocation3 + $0x60] sm:$0xff]
        %v3381 = vld [vmem:[#allocation3 + $0x68] sm:$0xff]
        %v3382 = vld [vmem:[#allocation3 + $0x70] sm:$0xff]
        %v3383 = vld [vmem:[#allocation3 + $0x78] sm:$0xff]
        %v3384 = vld [vmem:[#allocation3 + $0x80] sm:$0xff]
        %v3385 = vld [vmem:[#allocation3 + $0x88] sm:$0xff]
        %v3386 = vld [vmem:[#allocation3 + $0x90] sm:$0xff]
        %v3387 = vld [vmem:[#allocation3 + $0x98] sm:$0xff]
        %v3388 = vld [vmem:[#allocation3 + $0xa0] sm:$0xff]
        %v3389 = vld [vmem:[#allocation3 + $0xa8] sm:$0xff]
        %v3390 = vld [vmem:[#allocation3 + $0xb0] sm:$0xff]
        %v3391 = vld [vmem:[#allocation3 + $0xb8] sm:$0xff]
        %v3392 = vld [vmem:[#allocation3 + $0xc0] sm:$0xff]
        %v3393 = vld [vmem:[#allocation3 + $0xc8] sm:$0xff]
        %v3394 = vld [vmem:[#allocation3 + $0xd0] sm:$0xff]
        %v3395 = vld [vmem:[#allocation3 + $0xd8] sm:$0xff]
        %v3396 = vld [vmem:[#allocation3 + $0xe0] sm:$0xff]
        %v3397 = vld [vmem:[#allocation3 + $0xe8] sm:$0xff]
        %v3398 = vld [vmem:[#allocation3 + $0xf0] sm:$0xff]
        %v3399 = vld [vmem:[#allocation3 + $0xf8] sm:$0xff]
        %v3400 = vld [vmem:[#allocation3 + $0x100] sm:$0xff]
        %s3401 = scalar_lea.vmem [#allocation9], 128
        %v3402 = vld [vmem:[%s3401] sm:$0xff]
        %v3403 = vld [vmem:[%s3401 + $0x8] sm:$0xff]
        %v3404 = vld [vmem:[%s3401 + $0x10] sm:$0xff]
        %v3405 = vld [vmem:[%s3401 + $0x18] sm:$0xff]
        %v3406 = vld [vmem:[%s3401 + $0x20] sm:$0xff]
        %v3407 = vld [vmem:[%s3401 + $0x28] sm:$0xff]
        %v3408 = vld [vmem:[%s3401 + $0x30] sm:$0xff]
        %v3409 = vld [vmem:[%s3401 + $0x38] sm:$0xff]
        %v3410 = vld [vmem:[%s3401 + $0x40] sm:$0xff]
        %v3411 = vld [vmem:[%s3401 + $0x48] sm:$0xff]
        %v3412 = vld [vmem:[%s3401 + $0x50] sm:$0xff]
        %v3413 = vld [vmem:[%s3401 + $0x58] sm:$0xff]
        %v3414 = vld [vmem:[%s3401 + $0x60] sm:$0xff]
        %v3415 = vld [vmem:[%s3401 + $0x68] sm:$0xff]
        %v3416 = vld [vmem:[%s3401 + $0x70] sm:$0xff]
        %v3417 = vld [vmem:[%s3401 + $0x78] sm:$0xff]
        %3418 = vmatpush.msra.mxu0 %v3417
        %3419 = vmatpush.msra.mxu0 %v3416
        %3420 = vmatpush.msra.mxu0 %v3415
        %3421 = vmatpush.msra.mxu0 %v3414
        %3422 = vmatpush.msra.mxu0 %v3413
        %3423 = vmatpush.msra.mxu0 %v3412
        %3424 = vmatpush.msra.mxu0 %v3411
        %3425 = vmatpush.msra.mxu0 %v3410
        %3426 = vmatpush.msra.mxu0 %v3409
        %3427 = vmatpush.msra.mxu0 %v3408
        %3428 = vmatpush.msra.mxu0 %v3407
        %3429 = vmatpush.msra.mxu0 %v3406
        %3430 = vmatpush.msra.mxu0 %v3405
        %3431 = vmatpush.msra.mxu0 %v3404
        %3432 = vmatpush.msra.mxu0 %v3403
        %3433 = vmatpush.msra.mxu0 %v3402
        %3434 = vmatmul.f32.gmra.mxu0 %v3369
        %v3435 = vpop.f32.mrf.mxu0
        %v3436 = vadd.f32 0.0, %v3435
        %3437 = vmatmul.f32.gmra.mxu0 %v3370
        %v3438 = vpop.f32.mrf.mxu0
        %v3439 = vadd.f32 0.0, %v3438
        %3440 = vmatmul.f32.gmra.mxu0 %v3371
        %v3441 = vpop.f32.mrf.mxu0
        %v3442 = vadd.f32 0.0, %v3441
        %3443 = vmatmul.f32.gmra.mxu0 %v3372
        %v3444 = vpop.f32.mrf.mxu0
        %v3445 = vadd.f32 0.0, %v3444
        %3446 = vmatmul.f32.gmra.mxu0 %v3373
        %v3447 = vpop.f32.mrf.mxu0
        %v3448 = vadd.f32 0.0, %v3447
        %3449 = vmatmul.f32.gmra.mxu0 %v3374
        %v3450 = vpop.f32.mrf.mxu0
        %v3451 = vadd.f32 0.0, %v3450
        %3452 = vmatmul.f32.gmra.mxu0 %v3375
        %v3453 = vpop.f32.mrf.mxu0
        %v3454 = vadd.f32 0.0, %v3453
        %3455 = vmatmul.f32.gmra.mxu0 %v3376
        %v3456 = vpop.f32.mrf.mxu0
        %v3457 = vadd.f32 0.0, %v3456
        %3458 = vmatmul.f32.gmra.mxu0 %v3377
        %v3459 = vpop.f32.mrf.mxu0
        %v3460 = vadd.f32 0.0, %v3459
        %3461 = vmatmul.f32.gmra.mxu0 %v3378
        %v3462 = vpop.f32.mrf.mxu0
        %v3463 = vadd.f32 0.0, %v3462
        %3464 = vmatmul.f32.gmra.mxu0 %v3379
        %v3465 = vpop.f32.mrf.mxu0
        %v3466 = vadd.f32 0.0, %v3465
        %3467 = vmatmul.f32.gmra.mxu0 %v3380
        %v3468 = vpop.f32.mrf.mxu0
        %v3469 = vadd.f32 0.0, %v3468
        %3470 = vmatmul.f32.gmra.mxu0 %v3381
        %v3471 = vpop.f32.mrf.mxu0
        %v3472 = vadd.f32 0.0, %v3471
        %3473 = vmatmul.f32.gmra.mxu0 %v3382
        %v3474 = vpop.f32.mrf.mxu0
        %v3475 = vadd.f32 0.0, %v3474
        %3476 = vmatmul.f32.gmra.mxu0 %v3383
        %v3477 = vpop.f32.mrf.mxu0
        %v3478 = vadd.f32 0.0, %v3477
        %3479 = vmatmul.f32.gmra.mxu0 %v3384
        %v3480 = vpop.f32.mrf.mxu0
        %v3481 = vadd.f32 0.0, %v3480
        %3482 = vmatmul.f32.gmra.mxu0 %v3385
        %v3483 = vpop.f32.mrf.mxu0
        %v3484 = vadd.f32 0.0, %v3483
        %3485 = vmatmul.f32.gmra.mxu0 %v3386
        %v3486 = vpop.f32.mrf.mxu0
        %v3487 = vadd.f32 0.0, %v3486
        %3488 = vmatmul.f32.gmra.mxu0 %v3387
        %v3489 = vpop.f32.mrf.mxu0
        %v3490 = vadd.f32 0.0, %v3489
        %3491 = vmatmul.f32.gmra.mxu0 %v3388
        %v3492 = vpop.f32.mrf.mxu0
        %v3493 = vadd.f32 0.0, %v3492
        %3494 = vmatmul.f32.gmra.mxu0 %v3389
        %v3495 = vpop.f32.mrf.mxu0
        %v3496 = vadd.f32 0.0, %v3495
        %3497 = vmatmul.f32.gmra.mxu0 %v3390
        %v3498 = vpop.f32.mrf.mxu0
        %v3499 = vadd.f32 0.0, %v3498
        %3500 = vmatmul.f32.gmra.mxu0 %v3391
        %v3501 = vpop.f32.mrf.mxu0
        %v3502 = vadd.f32 0.0, %v3501
        %3503 = vmatmul.f32.gmra.mxu0 %v3392
        %v3504 = vpop.f32.mrf.mxu0
        %v3505 = vadd.f32 0.0, %v3504
        %3506 = vmatmul.f32.gmra.mxu0 %v3393
        %v3507 = vpop.f32.mrf.mxu0
        %v3508 = vadd.f32 0.0, %v3507
        %3509 = vmatmul.f32.gmra.mxu0 %v3394
        %v3510 = vpop.f32.mrf.mxu0
        %v3511 = vadd.f32 0.0, %v3510
        %3512 = vmatmul.f32.gmra.mxu0 %v3395
        %v3513 = vpop.f32.mrf.mxu0
        %v3514 = vadd.f32 0.0, %v3513
        %3515 = vmatmul.f32.gmra.mxu0 %v3396
        %v3516 = vpop.f32.mrf.mxu0
        %v3517 = vadd.f32 0.0, %v3516
        %3518 = vmatmul.f32.gmra.mxu0 %v3397
        %v3519 = vpop.f32.mrf.mxu0
        %v3520 = vadd.f32 0.0, %v3519
        %3521 = vmatmul.f32.gmra.mxu0 %v3398
        %v3522 = vpop.f32.mrf.mxu0
        %v3523 = vadd.f32 0.0, %v3522
        %3524 = vmatmul.f32.gmra.mxu0 %v3399
        %v3525 = vpop.f32.mrf.mxu0
        %v3526 = vadd.f32 0.0, %v3525
        %3527 = vmatmul.f32.gmra.mxu0 %v3400
        %v3528 = vpop.f32.mrf.mxu0
        %v3529 = vadd.f32 0.0, %v3528
        %3530 = vdwg.mxu0
        %v3531 = vadd.f32 %v3337, %v3436
        %v3532 = vadd.f32 %v3338, %v3439
        %v3533 = vadd.f32 %v3339, %v3442
        %v3534 = vadd.f32 %v3340, %v3445
        %v3535 = vadd.f32 %v3341, %v3448
        %v3536 = vadd.f32 %v3342, %v3451
        %v3537 = vadd.f32 %v3343, %v3454
        %v3538 = vadd.f32 %v3344, %v3457
        %v3539 = vadd.f32 %v3345, %v3460
        %v3540 = vadd.f32 %v3346, %v3463
        %v3541 = vadd.f32 %v3347, %v3466
        %v3542 = vadd.f32 %v3348, %v3469
        %v3543 = vadd.f32 %v3349, %v3472
        %v3544 = vadd.f32 %v3350, %v3475
        %v3545 = vadd.f32 %v3351, %v3478
        %v3546 = vadd.f32 %v3352, %v3481
        %v3547 = vadd.f32 %v3353, %v3484
        %v3548 = vadd.f32 %v3354, %v3487
        %v3549 = vadd.f32 %v3355, %v3490
        %v3550 = vadd.f32 %v3356, %v3493
        %v3551 = vadd.f32 %v3357, %v3496
        %v3552 = vadd.f32 %v3358, %v3499
        %v3553 = vadd.f32 %v3359, %v3502
        %v3554 = vadd.f32 %v3360, %v3505
        %v3555 = vadd.f32 %v3361, %v3508
        %v3556 = vadd.f32 %v3362, %v3511
        %v3557 = vadd.f32 %v3363, %v3514
        %v3558 = vadd.f32 %v3364, %v3517
        %v3559 = vadd.f32 %v3365, %v3520
        %v3560 = vadd.f32 %v3366, %v3523
        %v3561 = vadd.f32 %v3367, %v3526
        %v3562 = vadd.f32 %v3368, %v3529
        %v3563 = vld [vmem:[#allocation3 + $0x9] sm:$0xff]
        %v3564 = vld [vmem:[#allocation3 + $0x11] sm:$0xff]
        %v3565 = vld [vmem:[#allocation3 + $0x19] sm:$0xff]
        %v3566 = vld [vmem:[#allocation3 + $0x21] sm:$0xff]
        %v3567 = vld [vmem:[#allocation3 + $0x29] sm:$0xff]
        %v3568 = vld [vmem:[#allocation3 + $0x31] sm:$0xff]
        %v3569 = vld [vmem:[#allocation3 + $0x39] sm:$0xff]
        %v3570 = vld [vmem:[#allocation3 + $0x41] sm:$0xff]
        %v3571 = vld [vmem:[#allocation3 + $0x49] sm:$0xff]
        %v3572 = vld [vmem:[#allocation3 + $0x51] sm:$0xff]
        %v3573 = vld [vmem:[#allocation3 + $0x59] sm:$0xff]
        %v3574 = vld [vmem:[#allocation3 + $0x61] sm:$0xff]
        %v3575 = vld [vmem:[#allocation3 + $0x69] sm:$0xff]
        %v3576 = vld [vmem:[#allocation3 + $0x71] sm:$0xff]
        %v3577 = vld [vmem:[#allocation3 + $0x79] sm:$0xff]
        %v3578 = vld [vmem:[#allocation3 + $0x81] sm:$0xff]
        %v3579 = vld [vmem:[#allocation3 + $0x89] sm:$0xff]
        %v3580 = vld [vmem:[#allocation3 + $0x91] sm:$0xff]
        %v3581 = vld [vmem:[#allocation3 + $0x99] sm:$0xff]
        %v3582 = vld [vmem:[#allocation3 + $0xa1] sm:$0xff]
        %v3583 = vld [vmem:[#allocation3 + $0xa9] sm:$0xff]
        %v3584 = vld [vmem:[#allocation3 + $0xb1] sm:$0xff]
        %v3585 = vld [vmem:[#allocation3 + $0xb9] sm:$0xff]
        %v3586 = vld [vmem:[#allocation3 + $0xc1] sm:$0xff]
        %v3587 = vld [vmem:[#allocation3 + $0xc9] sm:$0xff]
        %v3588 = vld [vmem:[#allocation3 + $0xd1] sm:$0xff]
        %v3589 = vld [vmem:[#allocation3 + $0xd9] sm:$0xff]
        %v3590 = vld [vmem:[#allocation3 + $0xe1] sm:$0xff]
        %v3591 = vld [vmem:[#allocation3 + $0xe9] sm:$0xff]
        %v3592 = vld [vmem:[#allocation3 + $0xf1] sm:$0xff]
        %v3593 = vld [vmem:[#allocation3 + $0xf9] sm:$0xff]
        %v3594 = vld [vmem:[#allocation3 + $0x101] sm:$0xff]
        %v3595 = vsel %vm1520, %v3563, 0.0
        %v3596 = vsel %vm1521, %v3564, 0.0
        %v3597 = vsel %vm1522, %v3565, 0.0
        %v3598 = vsel %vm1523, %v3566, 0.0
        %v3599 = vsel %vm1524, %v3567, 0.0
        %v3600 = vsel %vm1525, %v3568, 0.0
        %v3601 = vsel %vm1526, %v3569, 0.0
        %v3602 = vsel %vm1527, %v3570, 0.0
        %v3603 = vsel %vm1528, %v3571, 0.0
        %v3604 = vsel %vm1529, %v3572, 0.0
        %v3605 = vsel %vm1530, %v3573, 0.0
        %v3606 = vsel %vm1531, %v3574, 0.0
        %v3607 = vsel %vm1532, %v3575, 0.0
        %v3608 = vsel %vm1533, %v3576, 0.0
        %v3609 = vsel %vm1534, %v3577, 0.0
        %v3610 = vsel %vm1535, %v3578, 0.0
        %v3611 = vsel %vm1536, %v3579, 0.0
        %v3612 = vsel %vm1537, %v3580, 0.0
        %v3613 = vsel %vm1538, %v3581, 0.0
        %v3614 = vsel %vm1539, %v3582, 0.0
        %v3615 = vsel %vm1540, %v3583, 0.0
        %v3616 = vsel %vm1541, %v3584, 0.0
        %v3617 = vsel %vm1542, %v3585, 0.0
        %v3618 = vsel %vm1543, %v3586, 0.0
        %v3619 = vsel %vm1544, %v3587, 0.0
        %v3620 = vsel %vm1545, %v3588, 0.0
        %v3621 = vsel %vm1546, %v3589, 0.0
        %v3622 = vsel %vm1547, %v3590, 0.0
        %v3623 = vsel %vm1548, %v3591, 0.0
        %v3624 = vsel %vm1549, %v3592, 0.0
        %v3625 = vsel %vm1550, %v3593, 0.0
        %v3626 = vsel %vm1551, %v3594, 0.0
        %s3627 = scalar_lea.vmem [#allocation9], 256
        %v3628 = vld [vmem:[%s3627] sm:$0xff]
        %v3629 = vld [vmem:[%s3627 + $0x8] sm:$0xff]
        %v3630 = vld [vmem:[%s3627 + $0x10] sm:$0xff]
        %v3631 = vld [vmem:[%s3627 + $0x18] sm:$0xff]
        %v3632 = vld [vmem:[%s3627 + $0x20] sm:$0xff]
        %v3633 = vld [vmem:[%s3627 + $0x28] sm:$0xff]
        %v3634 = vld [vmem:[%s3627 + $0x30] sm:$0xff]
        %v3635 = vld [vmem:[%s3627 + $0x38] sm:$0xff]
        %v3636 = vld [vmem:[%s3627 + $0x40] sm:$0xff]
        %v3637 = vld [vmem:[%s3627 + $0x48] sm:$0xff]
        %v3638 = vld [vmem:[%s3627 + $0x50] sm:$0xff]
        %v3639 = vld [vmem:[%s3627 + $0x58] sm:$0xff]
        %v3640 = vld [vmem:[%s3627 + $0x60] sm:$0xff]
        %v3641 = vld [vmem:[%s3627 + $0x68] sm:$0xff]
        %v3642 = vld [vmem:[%s3627 + $0x70] sm:$0xff]
        %v3643 = vld [vmem:[%s3627 + $0x78] sm:$0xff]
        %3644 = vmatpush.msra.mxu0 %v3643
        %3645 = vmatpush.msra.mxu0 %v3642
        %3646 = vmatpush.msra.mxu0 %v3641
        %3647 = vmatpush.msra.mxu0 %v3640
        %3648 = vmatpush.msra.mxu0 %v3639
        %3649 = vmatpush.msra.mxu0 %v3638
        %3650 = vmatpush.msra.mxu0 %v3637
        %3651 = vmatpush.msra.mxu0 %v3636
        %3652 = vmatpush.msra.mxu0 %v3635
        %3653 = vmatpush.msra.mxu0 %v3634
        %3654 = vmatpush.msra.mxu0 %v3633
        %3655 = vmatpush.msra.mxu0 %v3632
        %3656 = vmatpush.msra.mxu0 %v3631
        %3657 = vmatpush.msra.mxu0 %v3630
        %3658 = vmatpush.msra.mxu0 %v3629
        %3659 = vmatpush.msra.mxu0 %v3628
        %3660 = vmatmul.f32.gmra.mxu0 %v3595
        %v3661 = vpop.f32.mrf.mxu0
        %v3662 = vadd.f32 0.0, %v3661
        %3663 = vmatmul.f32.gmra.mxu0 %v3596
        %v3664 = vpop.f32.mrf.mxu0
        %v3665 = vadd.f32 0.0, %v3664
        %3666 = vmatmul.f32.gmra.mxu0 %v3597
        %v3667 = vpop.f32.mrf.mxu0
        %v3668 = vadd.f32 0.0, %v3667
        %3669 = vmatmul.f32.gmra.mxu0 %v3598
        %v3670 = vpop.f32.mrf.mxu0
        %v3671 = vadd.f32 0.0, %v3670
        %3672 = vmatmul.f32.gmra.mxu0 %v3599
        %v3673 = vpop.f32.mrf.mxu0
        %v3674 = vadd.f32 0.0, %v3673
        %3675 = vmatmul.f32.gmra.mxu0 %v3600
        %v3676 = vpop.f32.mrf.mxu0
        %v3677 = vadd.f32 0.0, %v3676
        %3678 = vmatmul.f32.gmra.mxu0 %v3601
        %v3679 = vpop.f32.mrf.mxu0
        %v3680 = vadd.f32 0.0, %v3679
        %3681 = vmatmul.f32.gmra.mxu0 %v3602
        %v3682 = vpop.f32.mrf.mxu0
        %v3683 = vadd.f32 0.0, %v3682
        %3684 = vmatmul.f32.gmra.mxu0 %v3603
        %v3685 = vpop.f32.mrf.mxu0
        %v3686 = vadd.f32 0.0, %v3685
        %3687 = vmatmul.f32.gmra.mxu0 %v3604
        %v3688 = vpop.f32.mrf.mxu0
        %v3689 = vadd.f32 0.0, %v3688
        %3690 = vmatmul.f32.gmra.mxu0 %v3605
        %v3691 = vpop.f32.mrf.mxu0
        %v3692 = vadd.f32 0.0, %v3691
        %3693 = vmatmul.f32.gmra.mxu0 %v3606
        %v3694 = vpop.f32.mrf.mxu0
        %v3695 = vadd.f32 0.0, %v3694
        %3696 = vmatmul.f32.gmra.mxu0 %v3607
        %v3697 = vpop.f32.mrf.mxu0
        %v3698 = vadd.f32 0.0, %v3697
        %3699 = vmatmul.f32.gmra.mxu0 %v3608
        %v3700 = vpop.f32.mrf.mxu0
        %v3701 = vadd.f32 0.0, %v3700
        %3702 = vmatmul.f32.gmra.mxu0 %v3609
        %v3703 = vpop.f32.mrf.mxu0
        %v3704 = vadd.f32 0.0, %v3703
        %3705 = vmatmul.f32.gmra.mxu0 %v3610
        %v3706 = vpop.f32.mrf.mxu0
        %v3707 = vadd.f32 0.0, %v3706
        %3708 = vmatmul.f32.gmra.mxu0 %v3611
        %v3709 = vpop.f32.mrf.mxu0
        %v3710 = vadd.f32 0.0, %v3709
        %3711 = vmatmul.f32.gmra.mxu0 %v3612
        %v3712 = vpop.f32.mrf.mxu0
        %v3713 = vadd.f32 0.0, %v3712
        %3714 = vmatmul.f32.gmra.mxu0 %v3613
        %v3715 = vpop.f32.mrf.mxu0
        %v3716 = vadd.f32 0.0, %v3715
        %3717 = vmatmul.f32.gmra.mxu0 %v3614
        %v3718 = vpop.f32.mrf.mxu0
        %v3719 = vadd.f32 0.0, %v3718
        %3720 = vmatmul.f32.gmra.mxu0 %v3615
        %v3721 = vpop.f32.mrf.mxu0
        %v3722 = vadd.f32 0.0, %v3721
        %3723 = vmatmul.f32.gmra.mxu0 %v3616
        %v3724 = vpop.f32.mrf.mxu0
        %v3725 = vadd.f32 0.0, %v3724
        %3726 = vmatmul.f32.gmra.mxu0 %v3617
        %v3727 = vpop.f32.mrf.mxu0
        %v3728 = vadd.f32 0.0, %v3727
        %3729 = vmatmul.f32.gmra.mxu0 %v3618
        %v3730 = vpop.f32.mrf.mxu0
        %v3731 = vadd.f32 0.0, %v3730
        %3732 = vmatmul.f32.gmra.mxu0 %v3619
        %v3733 = vpop.f32.mrf.mxu0
        %v3734 = vadd.f32 0.0, %v3733
        %3735 = vmatmul.f32.gmra.mxu0 %v3620
        %v3736 = vpop.f32.mrf.mxu0
        %v3737 = vadd.f32 0.0, %v3736
        %3738 = vmatmul.f32.gmra.mxu0 %v3621
        %v3739 = vpop.f32.mrf.mxu0
        %v3740 = vadd.f32 0.0, %v3739
        %3741 = vmatmul.f32.gmra.mxu0 %v3622
        %v3742 = vpop.f32.mrf.mxu0
        %v3743 = vadd.f32 0.0, %v3742
        %3744 = vmatmul.f32.gmra.mxu0 %v3623
        %v3745 = vpop.f32.mrf.mxu0
        %v3746 = vadd.f32 0.0, %v3745
        %3747 = vmatmul.f32.gmra.mxu0 %v3624
        %v3748 = vpop.f32.mrf.mxu0
        %v3749 = vadd.f32 0.0, %v3748
        %3750 = vmatmul.f32.gmra.mxu0 %v3625
        %v3751 = vpop.f32.mrf.mxu0
        %v3752 = vadd.f32 0.0, %v3751
        %3753 = vmatmul.f32.gmra.mxu0 %v3626
        %v3754 = vpop.f32.mrf.mxu0
        %v3755 = vadd.f32 0.0, %v3754
        %3756 = vdwg.mxu0
        %v3757 = vadd.f32 %v3531, %v3662
        %v3758 = vadd.f32 %v3532, %v3665
        %v3759 = vadd.f32 %v3533, %v3668
        %v3760 = vadd.f32 %v3534, %v3671
        %v3761 = vadd.f32 %v3535, %v3674
        %v3762 = vadd.f32 %v3536, %v3677
        %v3763 = vadd.f32 %v3537, %v3680
        %v3764 = vadd.f32 %v3538, %v3683
        %v3765 = vadd.f32 %v3539, %v3686
        %v3766 = vadd.f32 %v3540, %v3689
        %v3767 = vadd.f32 %v3541, %v3692
        %v3768 = vadd.f32 %v3542, %v3695
        %v3769 = vadd.f32 %v3543, %v3698
        %v3770 = vadd.f32 %v3544, %v3701
        %v3771 = vadd.f32 %v3545, %v3704
        %v3772 = vadd.f32 %v3546, %v3707
        %v3773 = vadd.f32 %v3547, %v3710
        %v3774 = vadd.f32 %v3548, %v3713
        %v3775 = vadd.f32 %v3549, %v3716
        %v3776 = vadd.f32 %v3550, %v3719
        %v3777 = vadd.f32 %v3551, %v3722
        %v3778 = vadd.f32 %v3552, %v3725
        %v3779 = vadd.f32 %v3553, %v3728
        %v3780 = vadd.f32 %v3554, %v3731
        %v3781 = vadd.f32 %v3555, %v3734
        %v3782 = vadd.f32 %v3556, %v3737
        %v3783 = vadd.f32 %v3557, %v3740
        %v3784 = vadd.f32 %v3558, %v3743
        %v3785 = vadd.f32 %v3559, %v3746
        %v3786 = vadd.f32 %v3560, %v3749
        %v3787 = vadd.f32 %v3561, %v3752
        %v3788 = vadd.f32 %v3562, %v3755
        %v3789 = vld [vmem:[#allocation3 + $0x17] sm:$0xff]
        %v3790 = vld [vmem:[#allocation3 + $0x1f] sm:$0xff]
        %v3791 = vld [vmem:[#allocation3 + $0x27] sm:$0xff]
        %v3792 = vld [vmem:[#allocation3 + $0x2f] sm:$0xff]
        %v3793 = vld [vmem:[#allocation3 + $0x37] sm:$0xff]
        %v3794 = vld [vmem:[#allocation3 + $0x3f] sm:$0xff]
        %v3795 = vld [vmem:[#allocation3 + $0x47] sm:$0xff]
        %v3796 = vld [vmem:[#allocation3 + $0x4f] sm:$0xff]
        %v3797 = vld [vmem:[#allocation3 + $0x57] sm:$0xff]
        %v3798 = vld [vmem:[#allocation3 + $0x5f] sm:$0xff]
        %v3799 = vld [vmem:[#allocation3 + $0x67] sm:$0xff]
        %v3800 = vld [vmem:[#allocation3 + $0x6f] sm:$0xff]
        %v3801 = vld [vmem:[#allocation3 + $0x77] sm:$0xff]
        %v3802 = vld [vmem:[#allocation3 + $0x7f] sm:$0xff]
        %v3803 = vld [vmem:[#allocation3 + $0x87] sm:$0xff]
        %v3804 = vld [vmem:[#allocation3 + $0x8f] sm:$0xff]
        %v3805 = vld [vmem:[#allocation3 + $0x97] sm:$0xff]
        %v3806 = vld [vmem:[#allocation3 + $0x9f] sm:$0xff]
        %v3807 = vld [vmem:[#allocation3 + $0xa7] sm:$0xff]
        %v3808 = vld [vmem:[#allocation3 + $0xaf] sm:$0xff]
        %v3809 = vld [vmem:[#allocation3 + $0xb7] sm:$0xff]
        %v3810 = vld [vmem:[#allocation3 + $0xbf] sm:$0xff]
        %v3811 = vld [vmem:[#allocation3 + $0xc7] sm:$0xff]
        %v3812 = vld [vmem:[#allocation3 + $0xcf] sm:$0xff]
        %v3813 = vld [vmem:[#allocation3 + $0xd7] sm:$0xff]
        %v3814 = vld [vmem:[#allocation3 + $0xdf] sm:$0xff]
        %v3815 = vld [vmem:[#allocation3 + $0xe7] sm:$0xff]
        %v3816 = vld [vmem:[#allocation3 + $0xef] sm:$0xff]
        %v3817 = vld [vmem:[#allocation3 + $0xf7] sm:$0xff]
        %v3818 = vld [vmem:[#allocation3 + $0xff] sm:$0xff]
        %v3819 = vld [vmem:[#allocation3 + $0x107] sm:$0xff]
        %v3820 = vld [vmem:[#allocation3 + $0x10f] sm:$0xff]
        %v3821 = vsel %vm1037, %v3789, 0.0
        %v3822 = vsel %vm1038, %v3790, 0.0
        %v3823 = vsel %vm1039, %v3791, 0.0
        %v3824 = vsel %vm1040, %v3792, 0.0
        %v3825 = vsel %vm1041, %v3793, 0.0
        %v3826 = vsel %vm1042, %v3794, 0.0
        %v3827 = vsel %vm1043, %v3795, 0.0
        %v3828 = vsel %vm1044, %v3796, 0.0
        %v3829 = vsel %vm1045, %v3797, 0.0
        %v3830 = vsel %vm1046, %v3798, 0.0
        %v3831 = vsel %vm1047, %v3799, 0.0
        %v3832 = vsel %vm1048, %v3800, 0.0
        %v3833 = vsel %vm1049, %v3801, 0.0
        %v3834 = vsel %vm1050, %v3802, 0.0
        %v3835 = vsel %vm1051, %v3803, 0.0
        %v3836 = vsel %vm1052, %v3804, 0.0
        %v3837 = vsel %vm1053, %v3805, 0.0
        %v3838 = vsel %vm1054, %v3806, 0.0
        %v3839 = vsel %vm1055, %v3807, 0.0
        %v3840 = vsel %vm1056, %v3808, 0.0
        %v3841 = vsel %vm1057, %v3809, 0.0
        %v3842 = vsel %vm1058, %v3810, 0.0
        %v3843 = vsel %vm1059, %v3811, 0.0
        %v3844 = vsel %vm1060, %v3812, 0.0
        %v3845 = vsel %vm1061, %v3813, 0.0
        %v3846 = vsel %vm1062, %v3814, 0.0
        %v3847 = vsel %vm1063, %v3815, 0.0
        %v3848 = vsel %vm1064, %v3816, 0.0
        %v3849 = vsel %vm1065, %v3817, 0.0
        %v3850 = vsel %vm1066, %v3818, 0.0
        %v3851 = vsel %vm1067, %v3819, 0.0
        %v3852 = vsel %vm1068, %v3820, 0.0
        %s3853 = scalar_lea.vmem [#allocation9], 384
        %v3854 = vld [vmem:[%s3853] sm:$0xff]
        %v3855 = vld [vmem:[%s3853 + $0x8] sm:$0xff]
        %v3856 = vld [vmem:[%s3853 + $0x10] sm:$0xff]
        %v3857 = vld [vmem:[%s3853 + $0x18] sm:$0xff]
        %v3858 = vld [vmem:[%s3853 + $0x20] sm:$0xff]
        %v3859 = vld [vmem:[%s3853 + $0x28] sm:$0xff]
        %v3860 = vld [vmem:[%s3853 + $0x30] sm:$0xff]
        %v3861 = vld [vmem:[%s3853 + $0x38] sm:$0xff]
        %v3862 = vld [vmem:[%s3853 + $0x40] sm:$0xff]
        %v3863 = vld [vmem:[%s3853 + $0x48] sm:$0xff]
        %v3864 = vld [vmem:[%s3853 + $0x50] sm:$0xff]
        %v3865 = vld [vmem:[%s3853 + $0x58] sm:$0xff]
        %v3866 = vld [vmem:[%s3853 + $0x60] sm:$0xff]
        %v3867 = vld [vmem:[%s3853 + $0x68] sm:$0xff]
        %v3868 = vld [vmem:[%s3853 + $0x70] sm:$0xff]
        %v3869 = vld [vmem:[%s3853 + $0x78] sm:$0xff]
        %3870 = vmatpush.msra.mxu0 %v3869
        %3871 = vmatpush.msra.mxu0 %v3868
        %3872 = vmatpush.msra.mxu0 %v3867
        %3873 = vmatpush.msra.mxu0 %v3866
        %3874 = vmatpush.msra.mxu0 %v3865
        %3875 = vmatpush.msra.mxu0 %v3864
        %3876 = vmatpush.msra.mxu0 %v3863
        %3877 = vmatpush.msra.mxu0 %v3862
        %3878 = vmatpush.msra.mxu0 %v3861
        %3879 = vmatpush.msra.mxu0 %v3860
        %3880 = vmatpush.msra.mxu0 %v3859
        %3881 = vmatpush.msra.mxu0 %v3858
        %3882 = vmatpush.msra.mxu0 %v3857
        %3883 = vmatpush.msra.mxu0 %v3856
        %3884 = vmatpush.msra.mxu0 %v3855
        %3885 = vmatpush.msra.mxu0 %v3854
        %3886 = vmatmul.f32.gmra.mxu0 %v3821
        %v3887 = vpop.f32.mrf.mxu0
        %v3888 = vadd.f32 0.0, %v3887
        %3889 = vmatmul.f32.gmra.mxu0 %v3822
        %v3890 = vpop.f32.mrf.mxu0
        %v3891 = vadd.f32 0.0, %v3890
        %3892 = vmatmul.f32.gmra.mxu0 %v3823
        %v3893 = vpop.f32.mrf.mxu0
        %v3894 = vadd.f32 0.0, %v3893
        %3895 = vmatmul.f32.gmra.mxu0 %v3824
        %v3896 = vpop.f32.mrf.mxu0
        %v3897 = vadd.f32 0.0, %v3896
        %3898 = vmatmul.f32.gmra.mxu0 %v3825
        %v3899 = vpop.f32.mrf.mxu0
        %v3900 = vadd.f32 0.0, %v3899
        %3901 = vmatmul.f32.gmra.mxu0 %v3826
        %v3902 = vpop.f32.mrf.mxu0
        %v3903 = vadd.f32 0.0, %v3902
        %3904 = vmatmul.f32.gmra.mxu0 %v3827
        %v3905 = vpop.f32.mrf.mxu0
        %v3906 = vadd.f32 0.0, %v3905
        %3907 = vmatmul.f32.gmra.mxu0 %v3828
        %v3908 = vpop.f32.mrf.mxu0
        %v3909 = vadd.f32 0.0, %v3908
        %3910 = vmatmul.f32.gmra.mxu0 %v3829
        %v3911 = vpop.f32.mrf.mxu0
        %v3912 = vadd.f32 0.0, %v3911
        %3913 = vmatmul.f32.gmra.mxu0 %v3830
        %v3914 = vpop.f32.mrf.mxu0
        %v3915 = vadd.f32 0.0, %v3914
        %3916 = vmatmul.f32.gmra.mxu0 %v3831
        %v3917 = vpop.f32.mrf.mxu0
        %v3918 = vadd.f32 0.0, %v3917
        %3919 = vmatmul.f32.gmra.mxu0 %v3832
        %v3920 = vpop.f32.mrf.mxu0
        %v3921 = vadd.f32 0.0, %v3920
        %3922 = vmatmul.f32.gmra.mxu0 %v3833
        %v3923 = vpop.f32.mrf.mxu0
        %v3924 = vadd.f32 0.0, %v3923
        %3925 = vmatmul.f32.gmra.mxu0 %v3834
        %v3926 = vpop.f32.mrf.mxu0
        %v3927 = vadd.f32 0.0, %v3926
        %3928 = vmatmul.f32.gmra.mxu0 %v3835
        %v3929 = vpop.f32.mrf.mxu0
        %v3930 = vadd.f32 0.0, %v3929
        %3931 = vmatmul.f32.gmra.mxu0 %v3836
        %v3932 = vpop.f32.mrf.mxu0
        %v3933 = vadd.f32 0.0, %v3932
        %3934 = vmatmul.f32.gmra.mxu0 %v3837
        %v3935 = vpop.f32.mrf.mxu0
        %v3936 = vadd.f32 0.0, %v3935
        %3937 = vmatmul.f32.gmra.mxu0 %v3838
        %v3938 = vpop.f32.mrf.mxu0
        %v3939 = vadd.f32 0.0, %v3938
        %3940 = vmatmul.f32.gmra.mxu0 %v3839
        %v3941 = vpop.f32.mrf.mxu0
        %v3942 = vadd.f32 0.0, %v3941
        %3943 = vmatmul.f32.gmra.mxu0 %v3840
        %v3944 = vpop.f32.mrf.mxu0
        %v3945 = vadd.f32 0.0, %v3944
        %3946 = vmatmul.f32.gmra.mxu0 %v3841
        %v3947 = vpop.f32.mrf.mxu0
        %v3948 = vadd.f32 0.0, %v3947
        %3949 = vmatmul.f32.gmra.mxu0 %v3842
        %v3950 = vpop.f32.mrf.mxu0
        %v3951 = vadd.f32 0.0, %v3950
        %3952 = vmatmul.f32.gmra.mxu0 %v3843
        %v3953 = vpop.f32.mrf.mxu0
        %v3954 = vadd.f32 0.0, %v3953
        %3955 = vmatmul.f32.gmra.mxu0 %v3844
        %v3956 = vpop.f32.mrf.mxu0
        %v3957 = vadd.f32 0.0, %v3956
        %3958 = vmatmul.f32.gmra.mxu0 %v3845
        %v3959 = vpop.f32.mrf.mxu0
        %v3960 = vadd.f32 0.0, %v3959
        %3961 = vmatmul.f32.gmra.mxu0 %v3846
        %v3962 = vpop.f32.mrf.mxu0
        %v3963 = vadd.f32 0.0, %v3962
        %3964 = vmatmul.f32.gmra.mxu0 %v3847
        %v3965 = vpop.f32.mrf.mxu0
        %v3966 = vadd.f32 0.0, %v3965
        %3967 = vmatmul.f32.gmra.mxu0 %v3848
        %v3968 = vpop.f32.mrf.mxu0
        %v3969 = vadd.f32 0.0, %v3968
        %3970 = vmatmul.f32.gmra.mxu0 %v3849
        %v3971 = vpop.f32.mrf.mxu0
        %v3972 = vadd.f32 0.0, %v3971
        %3973 = vmatmul.f32.gmra.mxu0 %v3850
        %v3974 = vpop.f32.mrf.mxu0
        %v3975 = vadd.f32 0.0, %v3974
        %3976 = vmatmul.f32.gmra.mxu0 %v3851
        %v3977 = vpop.f32.mrf.mxu0
        %v3978 = vadd.f32 0.0, %v3977
        %3979 = vmatmul.f32.gmra.mxu0 %v3852
        %v3980 = vpop.f32.mrf.mxu0
        %v3981 = vadd.f32 0.0, %v3980
        %3982 = vdwg.mxu0
        %v3983 = vadd.f32 %v3757, %v3888
        %v3984 = vadd.f32 %v3758, %v3891
        %v3985 = vadd.f32 %v3759, %v3894
        %v3986 = vadd.f32 %v3760, %v3897
        %v3987 = vadd.f32 %v3761, %v3900
        %v3988 = vadd.f32 %v3762, %v3903
        %v3989 = vadd.f32 %v3763, %v3906
        %v3990 = vadd.f32 %v3764, %v3909
        %v3991 = vadd.f32 %v3765, %v3912
        %v3992 = vadd.f32 %v3766, %v3915
        %v3993 = vadd.f32 %v3767, %v3918
        %v3994 = vadd.f32 %v3768, %v3921
        %v3995 = vadd.f32 %v3769, %v3924
        %v3996 = vadd.f32 %v3770, %v3927
        %v3997 = vadd.f32 %v3771, %v3930
        %v3998 = vadd.f32 %v3772, %v3933
        %v3999 = vadd.f32 %v3773, %v3936
        %v4000 = vadd.f32 %v3774, %v3939
        %v4001 = vadd.f32 %v3775, %v3942
        %v4002 = vadd.f32 %v3776, %v3945
        %v4003 = vadd.f32 %v3777, %v3948
        %v4004 = vadd.f32 %v3778, %v3951
        %v4005 = vadd.f32 %v3779, %v3954
        %v4006 = vadd.f32 %v3780, %v3957
        %v4007 = vadd.f32 %v3781, %v3960
        %v4008 = vadd.f32 %v3782, %v3963
        %v4009 = vadd.f32 %v3783, %v3966
        %v4010 = vadd.f32 %v3784, %v3969
        %v4011 = vadd.f32 %v3785, %v3972
        %v4012 = vadd.f32 %v3786, %v3975
        %v4013 = vadd.f32 %v3787, %v3978
        %v4014 = vadd.f32 %v3788, %v3981
        %v4015 = vld [vmem:[#allocation3 + $0x18] sm:$0xff]
        %v4016 = vld [vmem:[#allocation3 + $0x20] sm:$0xff]
        %v4017 = vld [vmem:[#allocation3 + $0x28] sm:$0xff]
        %v4018 = vld [vmem:[#allocation3 + $0x30] sm:$0xff]
        %v4019 = vld [vmem:[#allocation3 + $0x38] sm:$0xff]
        %v4020 = vld [vmem:[#allocation3 + $0x40] sm:$0xff]
        %v4021 = vld [vmem:[#allocation3 + $0x48] sm:$0xff]
        %v4022 = vld [vmem:[#allocation3 + $0x50] sm:$0xff]
        %v4023 = vld [vmem:[#allocation3 + $0x58] sm:$0xff]
        %v4024 = vld [vmem:[#allocation3 + $0x60] sm:$0xff]
        %v4025 = vld [vmem:[#allocation3 + $0x68] sm:$0xff]
        %v4026 = vld [vmem:[#allocation3 + $0x70] sm:$0xff]
        %v4027 = vld [vmem:[#allocation3 + $0x78] sm:$0xff]
        %v4028 = vld [vmem:[#allocation3 + $0x80] sm:$0xff]
        %v4029 = vld [vmem:[#allocation3 + $0x88] sm:$0xff]
        %v4030 = vld [vmem:[#allocation3 + $0x90] sm:$0xff]
        %v4031 = vld [vmem:[#allocation3 + $0x98] sm:$0xff]
        %v4032 = vld [vmem:[#allocation3 + $0xa0] sm:$0xff]
        %v4033 = vld [vmem:[#allocation3 + $0xa8] sm:$0xff]
        %v4034 = vld [vmem:[#allocation3 + $0xb0] sm:$0xff]
        %v4035 = vld [vmem:[#allocation3 + $0xb8] sm:$0xff]
        %v4036 = vld [vmem:[#allocation3 + $0xc0] sm:$0xff]
        %v4037 = vld [vmem:[#allocation3 + $0xc8] sm:$0xff]
        %v4038 = vld [vmem:[#allocation3 + $0xd0] sm:$0xff]
        %v4039 = vld [vmem:[#allocation3 + $0xd8] sm:$0xff]
        %v4040 = vld [vmem:[#allocation3 + $0xe0] sm:$0xff]
        %v4041 = vld [vmem:[#allocation3 + $0xe8] sm:$0xff]
        %v4042 = vld [vmem:[#allocation3 + $0xf0] sm:$0xff]
        %v4043 = vld [vmem:[#allocation3 + $0xf8] sm:$0xff]
        %v4044 = vld [vmem:[#allocation3 + $0x100] sm:$0xff]
        %v4045 = vld [vmem:[#allocation3 + $0x108] sm:$0xff]
        %v4046 = vld [vmem:[#allocation3 + $0x110] sm:$0xff]
        %s4047 = scalar_lea.vmem [#allocation9], 512
        %v4048 = vld [vmem:[%s4047] sm:$0xff]
        %v4049 = vld [vmem:[%s4047 + $0x8] sm:$0xff]
        %v4050 = vld [vmem:[%s4047 + $0x10] sm:$0xff]
        %v4051 = vld [vmem:[%s4047 + $0x18] sm:$0xff]
        %v4052 = vld [vmem:[%s4047 + $0x20] sm:$0xff]
        %v4053 = vld [vmem:[%s4047 + $0x28] sm:$0xff]
        %v4054 = vld [vmem:[%s4047 + $0x30] sm:$0xff]
        %v4055 = vld [vmem:[%s4047 + $0x38] sm:$0xff]
        %v4056 = vld [vmem:[%s4047 + $0x40] sm:$0xff]
        %v4057 = vld [vmem:[%s4047 + $0x48] sm:$0xff]
        %v4058 = vld [vmem:[%s4047 + $0x50] sm:$0xff]
        %v4059 = vld [vmem:[%s4047 + $0x58] sm:$0xff]
        %v4060 = vld [vmem:[%s4047 + $0x60] sm:$0xff]
        %v4061 = vld [vmem:[%s4047 + $0x68] sm:$0xff]
        %v4062 = vld [vmem:[%s4047 + $0x70] sm:$0xff]
        %v4063 = vld [vmem:[%s4047 + $0x78] sm:$0xff]
        %4064 = vmatpush.msra.mxu0 %v4063
        %4065 = vmatpush.msra.mxu0 %v4062
        %4066 = vmatpush.msra.mxu0 %v4061
        %4067 = vmatpush.msra.mxu0 %v4060
        %4068 = vmatpush.msra.mxu0 %v4059
        %4069 = vmatpush.msra.mxu0 %v4058
        %4070 = vmatpush.msra.mxu0 %v4057
        %4071 = vmatpush.msra.mxu0 %v4056
        %4072 = vmatpush.msra.mxu0 %v4055
        %4073 = vmatpush.msra.mxu0 %v4054
        %4074 = vmatpush.msra.mxu0 %v4053
        %4075 = vmatpush.msra.mxu0 %v4052
        %4076 = vmatpush.msra.mxu0 %v4051
        %4077 = vmatpush.msra.mxu0 %v4050
        %4078 = vmatpush.msra.mxu0 %v4049
        %4079 = vmatpush.msra.mxu0 %v4048
        %4080 = vmatmul.f32.gmra.mxu0 %v4015
        %v4081 = vpop.f32.mrf.mxu0
        %v4082 = vadd.f32 0.0, %v4081
        %4083 = vmatmul.f32.gmra.mxu0 %v4016
        %v4084 = vpop.f32.mrf.mxu0
        %v4085 = vadd.f32 0.0, %v4084
        %4086 = vmatmul.f32.gmra.mxu0 %v4017
        %v4087 = vpop.f32.mrf.mxu0
        %v4088 = vadd.f32 0.0, %v4087
        %4089 = vmatmul.f32.gmra.mxu0 %v4018
        %v4090 = vpop.f32.mrf.mxu0
        %v4091 = vadd.f32 0.0, %v4090
        %4092 = vmatmul.f32.gmra.mxu0 %v4019
        %v4093 = vpop.f32.mrf.mxu0
        %v4094 = vadd.f32 0.0, %v4093
        %4095 = vmatmul.f32.gmra.mxu0 %v4020
        %v4096 = vpop.f32.mrf.mxu0
        %v4097 = vadd.f32 0.0, %v4096
        %4098 = vmatmul.f32.gmra.mxu0 %v4021
        %v4099 = vpop.f32.mrf.mxu0
        %v4100 = vadd.f32 0.0, %v4099
        %4101 = vmatmul.f32.gmra.mxu0 %v4022
        %v4102 = vpop.f32.mrf.mxu0
        %v4103 = vadd.f32 0.0, %v4102
        %4104 = vmatmul.f32.gmra.mxu0 %v4023
        %v4105 = vpop.f32.mrf.mxu0
        %v4106 = vadd.f32 0.0, %v4105
        %4107 = vmatmul.f32.gmra.mxu0 %v4024
        %v4108 = vpop.f32.mrf.mxu0
        %v4109 = vadd.f32 0.0, %v4108
        %4110 = vmatmul.f32.gmra.mxu0 %v4025
        %v4111 = vpop.f32.mrf.mxu0
        %v4112 = vadd.f32 0.0, %v4111
        %4113 = vmatmul.f32.gmra.mxu0 %v4026
        %v4114 = vpop.f32.mrf.mxu0
        %v4115 = vadd.f32 0.0, %v4114
        %4116 = vmatmul.f32.gmra.mxu0 %v4027
        %v4117 = vpop.f32.mrf.mxu0
        %v4118 = vadd.f32 0.0, %v4117
        %4119 = vmatmul.f32.gmra.mxu0 %v4028
        %v4120 = vpop.f32.mrf.mxu0
        %v4121 = vadd.f32 0.0, %v4120
        %4122 = vmatmul.f32.gmra.mxu0 %v4029
        %v4123 = vpop.f32.mrf.mxu0
        %v4124 = vadd.f32 0.0, %v4123
        %4125 = vmatmul.f32.gmra.mxu0 %v4030
        %v4126 = vpop.f32.mrf.mxu0
        %v4127 = vadd.f32 0.0, %v4126
        %4128 = vmatmul.f32.gmra.mxu0 %v4031
        %v4129 = vpop.f32.mrf.mxu0
        %v4130 = vadd.f32 0.0, %v4129
        %4131 = vmatmul.f32.gmra.mxu0 %v4032
        %v4132 = vpop.f32.mrf.mxu0
        %v4133 = vadd.f32 0.0, %v4132
        %4134 = vmatmul.f32.gmra.mxu0 %v4033
        %v4135 = vpop.f32.mrf.mxu0
        %v4136 = vadd.f32 0.0, %v4135
        %4137 = vmatmul.f32.gmra.mxu0 %v4034
        %v4138 = vpop.f32.mrf.mxu0
        %v4139 = vadd.f32 0.0, %v4138
        %4140 = vmatmul.f32.gmra.mxu0 %v4035
        %v4141 = vpop.f32.mrf.mxu0
        %v4142 = vadd.f32 0.0, %v4141
        %4143 = vmatmul.f32.gmra.mxu0 %v4036
        %v4144 = vpop.f32.mrf.mxu0
        %v4145 = vadd.f32 0.0, %v4144
        %4146 = vmatmul.f32.gmra.mxu0 %v4037
        %v4147 = vpop.f32.mrf.mxu0
        %v4148 = vadd.f32 0.0, %v4147
        %4149 = vmatmul.f32.gmra.mxu0 %v4038
        %v4150 = vpop.f32.mrf.mxu0
        %v4151 = vadd.f32 0.0, %v4150
        %4152 = vmatmul.f32.gmra.mxu0 %v4039
        %v4153 = vpop.f32.mrf.mxu0
        %v4154 = vadd.f32 0.0, %v4153
        %4155 = vmatmul.f32.gmra.mxu0 %v4040
        %v4156 = vpop.f32.mrf.mxu0
        %v4157 = vadd.f32 0.0, %v4156
        %4158 = vmatmul.f32.gmra.mxu0 %v4041
        %v4159 = vpop.f32.mrf.mxu0
        %v4160 = vadd.f32 0.0, %v4159
        %4161 = vmatmul.f32.gmra.mxu0 %v4042
        %v4162 = vpop.f32.mrf.mxu0
        %v4163 = vadd.f32 0.0, %v4162
        %4164 = vmatmul.f32.gmra.mxu0 %v4043
        %v4165 = vpop.f32.mrf.mxu0
        %v4166 = vadd.f32 0.0, %v4165
        %4167 = vmatmul.f32.gmra.mxu0 %v4044
        %v4168 = vpop.f32.mrf.mxu0
        %v4169 = vadd.f32 0.0, %v4168
        %4170 = vmatmul.f32.gmra.mxu0 %v4045
        %v4171 = vpop.f32.mrf.mxu0
        %v4172 = vadd.f32 0.0, %v4171
        %4173 = vmatmul.f32.gmra.mxu0 %v4046
        %v4174 = vpop.f32.mrf.mxu0
        %v4175 = vadd.f32 0.0, %v4174
        %4176 = vdwg.mxu0
        %v4177 = vadd.f32 %v3983, %v4082
        %v4178 = vadd.f32 %v3984, %v4085
        %v4179 = vadd.f32 %v3985, %v4088
        %v4180 = vadd.f32 %v3986, %v4091
        %v4181 = vadd.f32 %v3987, %v4094
        %v4182 = vadd.f32 %v3988, %v4097
        %v4183 = vadd.f32 %v3989, %v4100
        %v4184 = vadd.f32 %v3990, %v4103
        %v4185 = vadd.f32 %v3991, %v4106
        %v4186 = vadd.f32 %v3992, %v4109
        %v4187 = vadd.f32 %v3993, %v4112
        %v4188 = vadd.f32 %v3994, %v4115
        %v4189 = vadd.f32 %v3995, %v4118
        %v4190 = vadd.f32 %v3996, %v4121
        %v4191 = vadd.f32 %v3997, %v4124
        %v4192 = vadd.f32 %v3998, %v4127
        %v4193 = vadd.f32 %v3999, %v4130
        %v4194 = vadd.f32 %v4000, %v4133
        %v4195 = vadd.f32 %v4001, %v4136
        %v4196 = vadd.f32 %v4002, %v4139
        %v4197 = vadd.f32 %v4003, %v4142
        %v4198 = vadd.f32 %v4004, %v4145
        %v4199 = vadd.f32 %v4005, %v4148
        %v4200 = vadd.f32 %v4006, %v4151
        %v4201 = vadd.f32 %v4007, %v4154
        %v4202 = vadd.f32 %v4008, %v4157
        %v4203 = vadd.f32 %v4009, %v4160
        %v4204 = vadd.f32 %v4010, %v4163
        %v4205 = vadd.f32 %v4011, %v4166
        %v4206 = vadd.f32 %v4012, %v4169
        %v4207 = vadd.f32 %v4013, %v4172
        %v4208 = vadd.f32 %v4014, %v4175
        %v4209 = vld [vmem:[#allocation3 + $0x19] sm:$0xff]
        %v4210 = vld [vmem:[#allocation3 + $0x21] sm:$0xff]
        %v4211 = vld [vmem:[#allocation3 + $0x29] sm:$0xff]
        %v4212 = vld [vmem:[#allocation3 + $0x31] sm:$0xff]
        %v4213 = vld [vmem:[#allocation3 + $0x39] sm:$0xff]
        %v4214 = vld [vmem:[#allocation3 + $0x41] sm:$0xff]
        %v4215 = vld [vmem:[#allocation3 + $0x49] sm:$0xff]
        %v4216 = vld [vmem:[#allocation3 + $0x51] sm:$0xff]
        %v4217 = vld [vmem:[#allocation3 + $0x59] sm:$0xff]
        %v4218 = vld [vmem:[#allocation3 + $0x61] sm:$0xff]
        %v4219 = vld [vmem:[#allocation3 + $0x69] sm:$0xff]
        %v4220 = vld [vmem:[#allocation3 + $0x71] sm:$0xff]
        %v4221 = vld [vmem:[#allocation3 + $0x79] sm:$0xff]
        %v4222 = vld [vmem:[#allocation3 + $0x81] sm:$0xff]
        %v4223 = vld [vmem:[#allocation3 + $0x89] sm:$0xff]
        %v4224 = vld [vmem:[#allocation3 + $0x91] sm:$0xff]
        %v4225 = vld [vmem:[#allocation3 + $0x99] sm:$0xff]
        %v4226 = vld [vmem:[#allocation3 + $0xa1] sm:$0xff]
        %v4227 = vld [vmem:[#allocation3 + $0xa9] sm:$0xff]
        %v4228 = vld [vmem:[#allocation3 + $0xb1] sm:$0xff]
        %v4229 = vld [vmem:[#allocation3 + $0xb9] sm:$0xff]
        %v4230 = vld [vmem:[#allocation3 + $0xc1] sm:$0xff]
        %v4231 = vld [vmem:[#allocation3 + $0xc9] sm:$0xff]
        %v4232 = vld [vmem:[#allocation3 + $0xd1] sm:$0xff]
        %v4233 = vld [vmem:[#allocation3 + $0xd9] sm:$0xff]
        %v4234 = vld [vmem:[#allocation3 + $0xe1] sm:$0xff]
        %v4235 = vld [vmem:[#allocation3 + $0xe9] sm:$0xff]
        %v4236 = vld [vmem:[#allocation3 + $0xf1] sm:$0xff]
        %v4237 = vld [vmem:[#allocation3 + $0xf9] sm:$0xff]
        %v4238 = vld [vmem:[#allocation3 + $0x101] sm:$0xff]
        %v4239 = vld [vmem:[#allocation3 + $0x109] sm:$0xff]
        %v4240 = vld [vmem:[#allocation3 + $0x111] sm:$0xff]
        %v4241 = vsel %vm1520, %v4209, 0.0
        %v4242 = vsel %vm1521, %v4210, 0.0
        %v4243 = vsel %vm1522, %v4211, 0.0
        %v4244 = vsel %vm1523, %v4212, 0.0
        %v4245 = vsel %vm1524, %v4213, 0.0
        %v4246 = vsel %vm1525, %v4214, 0.0
        %v4247 = vsel %vm1526, %v4215, 0.0
        %v4248 = vsel %vm1527, %v4216, 0.0
        %v4249 = vsel %vm1528, %v4217, 0.0
        %v4250 = vsel %vm1529, %v4218, 0.0
        %v4251 = vsel %vm1530, %v4219, 0.0
        %v4252 = vsel %vm1531, %v4220, 0.0
        %v4253 = vsel %vm1532, %v4221, 0.0
        %v4254 = vsel %vm1533, %v4222, 0.0
        %v4255 = vsel %vm1534, %v4223, 0.0
        %v4256 = vsel %vm1535, %v4224, 0.0
        %v4257 = vsel %vm1536, %v4225, 0.0
        %v4258 = vsel %vm1537, %v4226, 0.0
        %v4259 = vsel %vm1538, %v4227, 0.0
        %v4260 = vsel %vm1539, %v4228, 0.0
        %v4261 = vsel %vm1540, %v4229, 0.0
        %v4262 = vsel %vm1541, %v4230, 0.0
        %v4263 = vsel %vm1542, %v4231, 0.0
        %v4264 = vsel %vm1543, %v4232, 0.0
        %v4265 = vsel %vm1544, %v4233, 0.0
        %v4266 = vsel %vm1545, %v4234, 0.0
        %v4267 = vsel %vm1546, %v4235, 0.0
        %v4268 = vsel %vm1547, %v4236, 0.0
        %v4269 = vsel %vm1548, %v4237, 0.0
        %v4270 = vsel %vm1549, %v4238, 0.0
        %v4271 = vsel %vm1550, %v4239, 0.0
        %v4272 = vsel %vm1551, %v4240, 0.0
        %s4273 = scalar_lea.vmem [#allocation9], 640
        %v4274 = vld [vmem:[%s4273] sm:$0xff]
        %v4275 = vld [vmem:[%s4273 + $0x8] sm:$0xff]
        %v4276 = vld [vmem:[%s4273 + $0x10] sm:$0xff]
        %v4277 = vld [vmem:[%s4273 + $0x18] sm:$0xff]
        %v4278 = vld [vmem:[%s4273 + $0x20] sm:$0xff]
        %v4279 = vld [vmem:[%s4273 + $0x28] sm:$0xff]
        %v4280 = vld [vmem:[%s4273 + $0x30] sm:$0xff]
        %v4281 = vld [vmem:[%s4273 + $0x38] sm:$0xff]
        %v4282 = vld [vmem:[%s4273 + $0x40] sm:$0xff]
        %v4283 = vld [vmem:[%s4273 + $0x48] sm:$0xff]
        %v4284 = vld [vmem:[%s4273 + $0x50] sm:$0xff]
        %v4285 = vld [vmem:[%s4273 + $0x58] sm:$0xff]
        %v4286 = vld [vmem:[%s4273 + $0x60] sm:$0xff]
        %v4287 = vld [vmem:[%s4273 + $0x68] sm:$0xff]
        %v4288 = vld [vmem:[%s4273 + $0x70] sm:$0xff]
        %v4289 = vld [vmem:[%s4273 + $0x78] sm:$0xff]
        %4290 = vmatpush.msra.mxu0 %v4289
        %4291 = vmatpush.msra.mxu0 %v4288
        %4292 = vmatpush.msra.mxu0 %v4287
        %4293 = vmatpush.msra.mxu0 %v4286
        %4294 = vmatpush.msra.mxu0 %v4285
        %4295 = vmatpush.msra.mxu0 %v4284
        %4296 = vmatpush.msra.mxu0 %v4283
        %4297 = vmatpush.msra.mxu0 %v4282
        %4298 = vmatpush.msra.mxu0 %v4281
        %4299 = vmatpush.msra.mxu0 %v4280
        %4300 = vmatpush.msra.mxu0 %v4279
        %4301 = vmatpush.msra.mxu0 %v4278
        %4302 = vmatpush.msra.mxu0 %v4277
        %4303 = vmatpush.msra.mxu0 %v4276
        %4304 = vmatpush.msra.mxu0 %v4275
        %4305 = vmatpush.msra.mxu0 %v4274
        %4306 = vmatmul.f32.gmra.mxu0 %v4241
        %v4307 = vpop.f32.mrf.mxu0
        %v4308 = vadd.f32 0.0, %v4307
        %4309 = vmatmul.f32.gmra.mxu0 %v4242
        %v4310 = vpop.f32.mrf.mxu0
        %v4311 = vadd.f32 0.0, %v4310
        %4312 = vmatmul.f32.gmra.mxu0 %v4243
        %v4313 = vpop.f32.mrf.mxu0
        %v4314 = vadd.f32 0.0, %v4313
        %4315 = vmatmul.f32.gmra.mxu0 %v4244
        %v4316 = vpop.f32.mrf.mxu0
        %v4317 = vadd.f32 0.0, %v4316
        %4318 = vmatmul.f32.gmra.mxu0 %v4245
        %v4319 = vpop.f32.mrf.mxu0
        %v4320 = vadd.f32 0.0, %v4319
        %4321 = vmatmul.f32.gmra.mxu0 %v4246
        %v4322 = vpop.f32.mrf.mxu0
        %v4323 = vadd.f32 0.0, %v4322
        %4324 = vmatmul.f32.gmra.mxu0 %v4247
        %v4325 = vpop.f32.mrf.mxu0
        %v4326 = vadd.f32 0.0, %v4325
        %4327 = vmatmul.f32.gmra.mxu0 %v4248
        %v4328 = vpop.f32.mrf.mxu0
        %v4329 = vadd.f32 0.0, %v4328
        %4330 = vmatmul.f32.gmra.mxu0 %v4249
        %v4331 = vpop.f32.mrf.mxu0
        %v4332 = vadd.f32 0.0, %v4331
        %4333 = vmatmul.f32.gmra.mxu0 %v4250
        %v4334 = vpop.f32.mrf.mxu0
        %v4335 = vadd.f32 0.0, %v4334
        %4336 = vmatmul.f32.gmra.mxu0 %v4251
        %v4337 = vpop.f32.mrf.mxu0
        %v4338 = vadd.f32 0.0, %v4337
        %4339 = vmatmul.f32.gmra.mxu0 %v4252
        %v4340 = vpop.f32.mrf.mxu0
        %v4341 = vadd.f32 0.0, %v4340
        %4342 = vmatmul.f32.gmra.mxu0 %v4253
        %v4343 = vpop.f32.mrf.mxu0
        %v4344 = vadd.f32 0.0, %v4343
        %4345 = vmatmul.f32.gmra.mxu0 %v4254
        %v4346 = vpop.f32.mrf.mxu0
        %v4347 = vadd.f32 0.0, %v4346
        %4348 = vmatmul.f32.gmra.mxu0 %v4255
        %v4349 = vpop.f32.mrf.mxu0
        %v4350 = vadd.f32 0.0, %v4349
        %4351 = vmatmul.f32.gmra.mxu0 %v4256
        %v4352 = vpop.f32.mrf.mxu0
        %v4353 = vadd.f32 0.0, %v4352
        %4354 = vmatmul.f32.gmra.mxu0 %v4257
        %v4355 = vpop.f32.mrf.mxu0
        %v4356 = vadd.f32 0.0, %v4355
        %4357 = vmatmul.f32.gmra.mxu0 %v4258
        %v4358 = vpop.f32.mrf.mxu0
        %v4359 = vadd.f32 0.0, %v4358
        %4360 = vmatmul.f32.gmra.mxu0 %v4259
        %v4361 = vpop.f32.mrf.mxu0
        %v4362 = vadd.f32 0.0, %v4361
        %4363 = vmatmul.f32.gmra.mxu0 %v4260
        %v4364 = vpop.f32.mrf.mxu0
        %v4365 = vadd.f32 0.0, %v4364
        %4366 = vmatmul.f32.gmra.mxu0 %v4261
        %v4367 = vpop.f32.mrf.mxu0
        %v4368 = vadd.f32 0.0, %v4367
        %4369 = vmatmul.f32.gmra.mxu0 %v4262
        %v4370 = vpop.f32.mrf.mxu0
        %v4371 = vadd.f32 0.0, %v4370
        %4372 = vmatmul.f32.gmra.mxu0 %v4263
        %v4373 = vpop.f32.mrf.mxu0
        %v4374 = vadd.f32 0.0, %v4373
        %4375 = vmatmul.f32.gmra.mxu0 %v4264
        %v4376 = vpop.f32.mrf.mxu0
        %v4377 = vadd.f32 0.0, %v4376
        %4378 = vmatmul.f32.gmra.mxu0 %v4265
        %v4379 = vpop.f32.mrf.mxu0
        %v4380 = vadd.f32 0.0, %v4379
        %4381 = vmatmul.f32.gmra.mxu0 %v4266
        %v4382 = vpop.f32.mrf.mxu0
        %v4383 = vadd.f32 0.0, %v4382
        %4384 = vmatmul.f32.gmra.mxu0 %v4267
        %v4385 = vpop.f32.mrf.mxu0
        %v4386 = vadd.f32 0.0, %v4385
        %4387 = vmatmul.f32.gmra.mxu0 %v4268
        %v4388 = vpop.f32.mrf.mxu0
        %v4389 = vadd.f32 0.0, %v4388
        %4390 = vmatmul.f32.gmra.mxu0 %v4269
        %v4391 = vpop.f32.mrf.mxu0
        %v4392 = vadd.f32 0.0, %v4391
        %4393 = vmatmul.f32.gmra.mxu0 %v4270
        %v4394 = vpop.f32.mrf.mxu0
        %v4395 = vadd.f32 0.0, %v4394
        %4396 = vmatmul.f32.gmra.mxu0 %v4271
        %v4397 = vpop.f32.mrf.mxu0
        %v4398 = vadd.f32 0.0, %v4397
        %4399 = vmatmul.f32.gmra.mxu0 %v4272
        %v4400 = vpop.f32.mrf.mxu0
        %v4401 = vadd.f32 0.0, %v4400
        %4402 = vdwg.mxu0
        %v4403 = vadd.f32 %v4177, %v4308
        %v4404 = vadd.f32 %v4178, %v4311
        %v4405 = vadd.f32 %v4179, %v4314
        %v4406 = vadd.f32 %v4180, %v4317
        %v4407 = vadd.f32 %v4181, %v4320
        %v4408 = vadd.f32 %v4182, %v4323
        %v4409 = vadd.f32 %v4183, %v4326
        %v4410 = vadd.f32 %v4184, %v4329
        %v4411 = vadd.f32 %v4185, %v4332
        %v4412 = vadd.f32 %v4186, %v4335
        %v4413 = vadd.f32 %v4187, %v4338
        %v4414 = vadd.f32 %v4188, %v4341
        %v4415 = vadd.f32 %v4189, %v4344
        %v4416 = vadd.f32 %v4190, %v4347
        %v4417 = vadd.f32 %v4191, %v4350
        %v4418 = vadd.f32 %v4192, %v4353
        %v4419 = vadd.f32 %v4193, %v4356
        %v4420 = vadd.f32 %v4194, %v4359
        %v4421 = vadd.f32 %v4195, %v4362
        %v4422 = vadd.f32 %v4196, %v4365
        %v4423 = vadd.f32 %v4197, %v4368
        %v4424 = vadd.f32 %v4198, %v4371
        %v4425 = vadd.f32 %v4199, %v4374
        %v4426 = vadd.f32 %v4200, %v4377
        %v4427 = vadd.f32 %v4201, %v4380
        %v4428 = vadd.f32 %v4202, %v4383
        %v4429 = vadd.f32 %v4203, %v4386
        %v4430 = vadd.f32 %v4204, %v4389
        %v4431 = vadd.f32 %v4205, %v4392
        %v4432 = vadd.f32 %v4206, %v4395
        %v4433 = vadd.f32 %v4207, %v4398
        %v4434 = vadd.f32 %v4208, %v4401
        %v4435 = vld [vmem:[#allocation3 + $0x27] sm:$0xff]
        %v4436 = vld [vmem:[#allocation3 + $0x2f] sm:$0xff]
        %v4437 = vld [vmem:[#allocation3 + $0x37] sm:$0xff]
        %v4438 = vld [vmem:[#allocation3 + $0x3f] sm:$0xff]
        %v4439 = vld [vmem:[#allocation3 + $0x47] sm:$0xff]
        %v4440 = vld [vmem:[#allocation3 + $0x4f] sm:$0xff]
        %v4441 = vld [vmem:[#allocation3 + $0x57] sm:$0xff]
        %v4442 = vld [vmem:[#allocation3 + $0x5f] sm:$0xff]
        %v4443 = vld [vmem:[#allocation3 + $0x67] sm:$0xff]
        %v4444 = vld [vmem:[#allocation3 + $0x6f] sm:$0xff]
        %v4445 = vld [vmem:[#allocation3 + $0x77] sm:$0xff]
        %v4446 = vld [vmem:[#allocation3 + $0x7f] sm:$0xff]
        %v4447 = vld [vmem:[#allocation3 + $0x87] sm:$0xff]
        %v4448 = vld [vmem:[#allocation3 + $0x8f] sm:$0xff]
        %v4449 = vld [vmem:[#allocation3 + $0x97] sm:$0xff]
        %v4450 = vld [vmem:[#allocation3 + $0x9f] sm:$0xff]
        %v4451 = vld [vmem:[#allocation3 + $0xa7] sm:$0xff]
        %v4452 = vld [vmem:[#allocation3 + $0xaf] sm:$0xff]
        %v4453 = vld [vmem:[#allocation3 + $0xb7] sm:$0xff]
        %v4454 = vld [vmem:[#allocation3 + $0xbf] sm:$0xff]
        %v4455 = vld [vmem:[#allocation3 + $0xc7] sm:$0xff]
        %v4456 = vld [vmem:[#allocation3 + $0xcf] sm:$0xff]
        %v4457 = vld [vmem:[#allocation3 + $0xd7] sm:$0xff]
        %v4458 = vld [vmem:[#allocation3 + $0xdf] sm:$0xff]
        %v4459 = vld [vmem:[#allocation3 + $0xe7] sm:$0xff]
        %v4460 = vld [vmem:[#allocation3 + $0xef] sm:$0xff]
        %v4461 = vld [vmem:[#allocation3 + $0xf7] sm:$0xff]
        %v4462 = vld [vmem:[#allocation3 + $0xff] sm:$0xff]
        %v4463 = vld [vmem:[#allocation3 + $0x107] sm:$0xff]
        %v4464 = vld [vmem:[#allocation3 + $0x10f] sm:$0xff]
        %v4465 = vld [vmem:[#allocation3 + $0x117] sm:$0xff]
        %v4466 = vld [vmem:[#allocation3 + $0x11f] sm:$0xff]
        %v4467 = vsel %vm1037, %v4435, 0.0
        %v4468 = vsel %vm1038, %v4436, 0.0
        %v4469 = vsel %vm1039, %v4437, 0.0
        %v4470 = vsel %vm1040, %v4438, 0.0
        %v4471 = vsel %vm1041, %v4439, 0.0
        %v4472 = vsel %vm1042, %v4440, 0.0
        %v4473 = vsel %vm1043, %v4441, 0.0
        %v4474 = vsel %vm1044, %v4442, 0.0
        %v4475 = vsel %vm1045, %v4443, 0.0
        %v4476 = vsel %vm1046, %v4444, 0.0
        %v4477 = vsel %vm1047, %v4445, 0.0
        %v4478 = vsel %vm1048, %v4446, 0.0
        %v4479 = vsel %vm1049, %v4447, 0.0
        %v4480 = vsel %vm1050, %v4448, 0.0
        %v4481 = vsel %vm1051, %v4449, 0.0
        %v4482 = vsel %vm1052, %v4450, 0.0
        %v4483 = vsel %vm1053, %v4451, 0.0
        %v4484 = vsel %vm1054, %v4452, 0.0
        %v4485 = vsel %vm1055, %v4453, 0.0
        %v4486 = vsel %vm1056, %v4454, 0.0
        %v4487 = vsel %vm1057, %v4455, 0.0
        %v4488 = vsel %vm1058, %v4456, 0.0
        %v4489 = vsel %vm1059, %v4457, 0.0
        %v4490 = vsel %vm1060, %v4458, 0.0
        %v4491 = vsel %vm1061, %v4459, 0.0
        %v4492 = vsel %vm1062, %v4460, 0.0
        %v4493 = vsel %vm1063, %v4461, 0.0
        %v4494 = vsel %vm1064, %v4462, 0.0
        %v4495 = vsel %vm1065, %v4463, 0.0
        %v4496 = vsel %vm1066, %v4464, 0.0
        %v4497 = vsel %vm1067, %v4465, 0.0
        %v4498 = vsel %vm1068, %v4466, 0.0
        %s4499 = scalar_lea.vmem [#allocation9], 768
        %v4500 = vld [vmem:[%s4499] sm:$0xff]
        %v4501 = vld [vmem:[%s4499 + $0x8] sm:$0xff]
        %v4502 = vld [vmem:[%s4499 + $0x10] sm:$0xff]
        %v4503 = vld [vmem:[%s4499 + $0x18] sm:$0xff]
        %v4504 = vld [vmem:[%s4499 + $0x20] sm:$0xff]
        %v4505 = vld [vmem:[%s4499 + $0x28] sm:$0xff]
        %v4506 = vld [vmem:[%s4499 + $0x30] sm:$0xff]
        %v4507 = vld [vmem:[%s4499 + $0x38] sm:$0xff]
        %v4508 = vld [vmem:[%s4499 + $0x40] sm:$0xff]
        %v4509 = vld [vmem:[%s4499 + $0x48] sm:$0xff]
        %v4510 = vld [vmem:[%s4499 + $0x50] sm:$0xff]
        %v4511 = vld [vmem:[%s4499 + $0x58] sm:$0xff]
        %v4512 = vld [vmem:[%s4499 + $0x60] sm:$0xff]
        %v4513 = vld [vmem:[%s4499 + $0x68] sm:$0xff]
        %v4514 = vld [vmem:[%s4499 + $0x70] sm:$0xff]
        %v4515 = vld [vmem:[%s4499 + $0x78] sm:$0xff]
        %4516 = vmatpush.msra.mxu0 %v4515
        %4517 = vmatpush.msra.mxu0 %v4514
        %4518 = vmatpush.msra.mxu0 %v4513
        %4519 = vmatpush.msra.mxu0 %v4512
        %4520 = vmatpush.msra.mxu0 %v4511
        %4521 = vmatpush.msra.mxu0 %v4510
        %4522 = vmatpush.msra.mxu0 %v4509
        %4523 = vmatpush.msra.mxu0 %v4508
        %4524 = vmatpush.msra.mxu0 %v4507
        %4525 = vmatpush.msra.mxu0 %v4506
        %4526 = vmatpush.msra.mxu0 %v4505
        %4527 = vmatpush.msra.mxu0 %v4504
        %4528 = vmatpush.msra.mxu0 %v4503
        %4529 = vmatpush.msra.mxu0 %v4502
        %4530 = vmatpush.msra.mxu0 %v4501
        %4531 = vmatpush.msra.mxu0 %v4500
        %4532 = vmatmul.f32.gmra.mxu0 %v4467
        %v4533 = vpop.f32.mrf.mxu0
        %v4534 = vadd.f32 0.0, %v4533
        %4535 = vmatmul.f32.gmra.mxu0 %v4468
        %v4536 = vpop.f32.mrf.mxu0
        %v4537 = vadd.f32 0.0, %v4536
        %4538 = vmatmul.f32.gmra.mxu0 %v4469
        %v4539 = vpop.f32.mrf.mxu0
        %v4540 = vadd.f32 0.0, %v4539
        %4541 = vmatmul.f32.gmra.mxu0 %v4470
        %v4542 = vpop.f32.mrf.mxu0
        %v4543 = vadd.f32 0.0, %v4542
        %4544 = vmatmul.f32.gmra.mxu0 %v4471
        %v4545 = vpop.f32.mrf.mxu0
        %v4546 = vadd.f32 0.0, %v4545
        %4547 = vmatmul.f32.gmra.mxu0 %v4472
        %v4548 = vpop.f32.mrf.mxu0
        %v4549 = vadd.f32 0.0, %v4548
        %4550 = vmatmul.f32.gmra.mxu0 %v4473
        %v4551 = vpop.f32.mrf.mxu0
        %v4552 = vadd.f32 0.0, %v4551
        %4553 = vmatmul.f32.gmra.mxu0 %v4474
        %v4554 = vpop.f32.mrf.mxu0
        %v4555 = vadd.f32 0.0, %v4554
        %4556 = vmatmul.f32.gmra.mxu0 %v4475
        %v4557 = vpop.f32.mrf.mxu0
        %v4558 = vadd.f32 0.0, %v4557
        %4559 = vmatmul.f32.gmra.mxu0 %v4476
        %v4560 = vpop.f32.mrf.mxu0
        %v4561 = vadd.f32 0.0, %v4560
        %4562 = vmatmul.f32.gmra.mxu0 %v4477
        %v4563 = vpop.f32.mrf.mxu0
        %v4564 = vadd.f32 0.0, %v4563
        %4565 = vmatmul.f32.gmra.mxu0 %v4478
        %v4566 = vpop.f32.mrf.mxu0
        %v4567 = vadd.f32 0.0, %v4566
        %4568 = vmatmul.f32.gmra.mxu0 %v4479
        %v4569 = vpop.f32.mrf.mxu0
        %v4570 = vadd.f32 0.0, %v4569
        %4571 = vmatmul.f32.gmra.mxu0 %v4480
        %v4572 = vpop.f32.mrf.mxu0
        %v4573 = vadd.f32 0.0, %v4572
        %4574 = vmatmul.f32.gmra.mxu0 %v4481
        %v4575 = vpop.f32.mrf.mxu0
        %v4576 = vadd.f32 0.0, %v4575
        %4577 = vmatmul.f32.gmra.mxu0 %v4482
        %v4578 = vpop.f32.mrf.mxu0
        %v4579 = vadd.f32 0.0, %v4578
        %4580 = vmatmul.f32.gmra.mxu0 %v4483
        %v4581 = vpop.f32.mrf.mxu0
        %v4582 = vadd.f32 0.0, %v4581
        %4583 = vmatmul.f32.gmra.mxu0 %v4484
        %v4584 = vpop.f32.mrf.mxu0
        %v4585 = vadd.f32 0.0, %v4584
        %4586 = vmatmul.f32.gmra.mxu0 %v4485
        %v4587 = vpop.f32.mrf.mxu0
        %v4588 = vadd.f32 0.0, %v4587
        %4589 = vmatmul.f32.gmra.mxu0 %v4486
        %v4590 = vpop.f32.mrf.mxu0
        %v4591 = vadd.f32 0.0, %v4590
        %4592 = vmatmul.f32.gmra.mxu0 %v4487
        %v4593 = vpop.f32.mrf.mxu0
        %v4594 = vadd.f32 0.0, %v4593
        %4595 = vmatmul.f32.gmra.mxu0 %v4488
        %v4596 = vpop.f32.mrf.mxu0
        %v4597 = vadd.f32 0.0, %v4596
        %4598 = vmatmul.f32.gmra.mxu0 %v4489
        %v4599 = vpop.f32.mrf.mxu0
        %v4600 = vadd.f32 0.0, %v4599
        %4601 = vmatmul.f32.gmra.mxu0 %v4490
        %v4602 = vpop.f32.mrf.mxu0
        %v4603 = vadd.f32 0.0, %v4602
        %4604 = vmatmul.f32.gmra.mxu0 %v4491
        %v4605 = vpop.f32.mrf.mxu0
        %v4606 = vadd.f32 0.0, %v4605
        %4607 = vmatmul.f32.gmra.mxu0 %v4492
        %v4608 = vpop.f32.mrf.mxu0
        %v4609 = vadd.f32 0.0, %v4608
        %4610 = vmatmul.f32.gmra.mxu0 %v4493
        %v4611 = vpop.f32.mrf.mxu0
        %v4612 = vadd.f32 0.0, %v4611
        %4613 = vmatmul.f32.gmra.mxu0 %v4494
        %v4614 = vpop.f32.mrf.mxu0
        %v4615 = vadd.f32 0.0, %v4614
        %4616 = vmatmul.f32.gmra.mxu0 %v4495
        %v4617 = vpop.f32.mrf.mxu0
        %v4618 = vadd.f32 0.0, %v4617
        %4619 = vmatmul.f32.gmra.mxu0 %v4496
        %v4620 = vpop.f32.mrf.mxu0
        %v4621 = vadd.f32 0.0, %v4620
        %4622 = vmatmul.f32.gmra.mxu0 %v4497
        %v4623 = vpop.f32.mrf.mxu0
        %v4624 = vadd.f32 0.0, %v4623
        %4625 = vmatmul.f32.gmra.mxu0 %v4498
        %v4626 = vpop.f32.mrf.mxu0
        %v4627 = vadd.f32 0.0, %v4626
        %4628 = vdwg.mxu0
        %v4629 = vadd.f32 %v4403, %v4534
        %v4630 = vadd.f32 %v4404, %v4537
        %v4631 = vadd.f32 %v4405, %v4540
        %v4632 = vadd.f32 %v4406, %v4543
        %v4633 = vadd.f32 %v4407, %v4546
        %v4634 = vadd.f32 %v4408, %v4549
        %v4635 = vadd.f32 %v4409, %v4552
        %v4636 = vadd.f32 %v4410, %v4555
        %v4637 = vadd.f32 %v4411, %v4558
        %v4638 = vadd.f32 %v4412, %v4561
        %v4639 = vadd.f32 %v4413, %v4564
        %v4640 = vadd.f32 %v4414, %v4567
        %v4641 = vadd.f32 %v4415, %v4570
        %v4642 = vadd.f32 %v4416, %v4573
        %v4643 = vadd.f32 %v4417, %v4576
        %v4644 = vadd.f32 %v4418, %v4579
        %v4645 = vadd.f32 %v4419, %v4582
        %v4646 = vadd.f32 %v4420, %v4585
        %v4647 = vadd.f32 %v4421, %v4588
        %v4648 = vadd.f32 %v4422, %v4591
        %v4649 = vadd.f32 %v4423, %v4594
        %v4650 = vadd.f32 %v4424, %v4597
        %v4651 = vadd.f32 %v4425, %v4600
        %v4652 = vadd.f32 %v4426, %v4603
        %v4653 = vadd.f32 %v4427, %v4606
        %v4654 = vadd.f32 %v4428, %v4609
        %v4655 = vadd.f32 %v4429, %v4612
        %v4656 = vadd.f32 %v4430, %v4615
        %v4657 = vadd.f32 %v4431, %v4618
        %v4658 = vadd.f32 %v4432, %v4621
        %v4659 = vadd.f32 %v4433, %v4624
        %v4660 = vadd.f32 %v4434, %v4627
        %v4661 = vld [vmem:[#allocation3 + $0x28] sm:$0xff]
        %v4662 = vld [vmem:[#allocation3 + $0x30] sm:$0xff]
        %v4663 = vld [vmem:[#allocation3 + $0x38] sm:$0xff]
        %v4664 = vld [vmem:[#allocation3 + $0x40] sm:$0xff]
        %v4665 = vld [vmem:[#allocation3 + $0x48] sm:$0xff]
        %v4666 = vld [vmem:[#allocation3 + $0x50] sm:$0xff]
        %v4667 = vld [vmem:[#allocation3 + $0x58] sm:$0xff]
        %v4668 = vld [vmem:[#allocation3 + $0x60] sm:$0xff]
        %v4669 = vld [vmem:[#allocation3 + $0x68] sm:$0xff]
        %v4670 = vld [vmem:[#allocation3 + $0x70] sm:$0xff]
        %v4671 = vld [vmem:[#allocation3 + $0x78] sm:$0xff]
        %v4672 = vld [vmem:[#allocation3 + $0x80] sm:$0xff]
        %v4673 = vld [vmem:[#allocation3 + $0x88] sm:$0xff]
        %v4674 = vld [vmem:[#allocation3 + $0x90] sm:$0xff]
        %v4675 = vld [vmem:[#allocation3 + $0x98] sm:$0xff]
        %v4676 = vld [vmem:[#allocation3 + $0xa0] sm:$0xff]
        %v4677 = vld [vmem:[#allocation3 + $0xa8] sm:$0xff]
        %v4678 = vld [vmem:[#allocation3 + $0xb0] sm:$0xff]
        %v4679 = vld [vmem:[#allocation3 + $0xb8] sm:$0xff]
        %v4680 = vld [vmem:[#allocation3 + $0xc0] sm:$0xff]
        %v4681 = vld [vmem:[#allocation3 + $0xc8] sm:$0xff]
        %v4682 = vld [vmem:[#allocation3 + $0xd0] sm:$0xff]
        %v4683 = vld [vmem:[#allocation3 + $0xd8] sm:$0xff]
        %v4684 = vld [vmem:[#allocation3 + $0xe0] sm:$0xff]
        %v4685 = vld [vmem:[#allocation3 + $0xe8] sm:$0xff]
        %v4686 = vld [vmem:[#allocation3 + $0xf0] sm:$0xff]
        %v4687 = vld [vmem:[#allocation3 + $0xf8] sm:$0xff]
        %v4688 = vld [vmem:[#allocation3 + $0x100] sm:$0xff]
        %v4689 = vld [vmem:[#allocation3 + $0x108] sm:$0xff]
        %v4690 = vld [vmem:[#allocation3 + $0x110] sm:$0xff]
        %v4691 = vld [vmem:[#allocation3 + $0x118] sm:$0xff]
        %v4692 = vld [vmem:[#allocation3 + $0x120] sm:$0xff]
        %s4693 = scalar_lea.vmem [#allocation9], 896
        %v4694 = vld [vmem:[%s4693] sm:$0xff]
        %v4695 = vld [vmem:[%s4693 + $0x8] sm:$0xff]
        %v4696 = vld [vmem:[%s4693 + $0x10] sm:$0xff]
        %v4697 = vld [vmem:[%s4693 + $0x18] sm:$0xff]
        %v4698 = vld [vmem:[%s4693 + $0x20] sm:$0xff]
        %v4699 = vld [vmem:[%s4693 + $0x28] sm:$0xff]
        %v4700 = vld [vmem:[%s4693 + $0x30] sm:$0xff]
        %v4701 = vld [vmem:[%s4693 + $0x38] sm:$0xff]
        %v4702 = vld [vmem:[%s4693 + $0x40] sm:$0xff]
        %v4703 = vld [vmem:[%s4693 + $0x48] sm:$0xff]
        %v4704 = vld [vmem:[%s4693 + $0x50] sm:$0xff]
        %v4705 = vld [vmem:[%s4693 + $0x58] sm:$0xff]
        %v4706 = vld [vmem:[%s4693 + $0x60] sm:$0xff]
        %v4707 = vld [vmem:[%s4693 + $0x68] sm:$0xff]
        %v4708 = vld [vmem:[%s4693 + $0x70] sm:$0xff]
        %v4709 = vld [vmem:[%s4693 + $0x78] sm:$0xff]
        %4710 = vmatpush.msra.mxu0 %v4709
        %4711 = vmatpush.msra.mxu0 %v4708
        %4712 = vmatpush.msra.mxu0 %v4707
        %4713 = vmatpush.msra.mxu0 %v4706
        %4714 = vmatpush.msra.mxu0 %v4705
        %4715 = vmatpush.msra.mxu0 %v4704
        %4716 = vmatpush.msra.mxu0 %v4703
        %4717 = vmatpush.msra.mxu0 %v4702
        %4718 = vmatpush.msra.mxu0 %v4701
        %4719 = vmatpush.msra.mxu0 %v4700
        %4720 = vmatpush.msra.mxu0 %v4699
        %4721 = vmatpush.msra.mxu0 %v4698
        %4722 = vmatpush.msra.mxu0 %v4697
        %4723 = vmatpush.msra.mxu0 %v4696
        %4724 = vmatpush.msra.mxu0 %v4695
        %4725 = vmatpush.msra.mxu0 %v4694
        %4726 = vmatmul.f32.gmra.mxu0 %v4661
        %v4727 = vpop.f32.mrf.mxu0
        %v4728 = vadd.f32 0.0, %v4727
        %4729 = vmatmul.f32.gmra.mxu0 %v4662
        %v4730 = vpop.f32.mrf.mxu0
        %v4731 = vadd.f32 0.0, %v4730
        %4732 = vmatmul.f32.gmra.mxu0 %v4663
        %v4733 = vpop.f32.mrf.mxu0
        %v4734 = vadd.f32 0.0, %v4733
        %4735 = vmatmul.f32.gmra.mxu0 %v4664
        %v4736 = vpop.f32.mrf.mxu0
        %v4737 = vadd.f32 0.0, %v4736
        %4738 = vmatmul.f32.gmra.mxu0 %v4665
        %v4739 = vpop.f32.mrf.mxu0
        %v4740 = vadd.f32 0.0, %v4739
        %4741 = vmatmul.f32.gmra.mxu0 %v4666
        %v4742 = vpop.f32.mrf.mxu0
        %v4743 = vadd.f32 0.0, %v4742
        %4744 = vmatmul.f32.gmra.mxu0 %v4667
        %v4745 = vpop.f32.mrf.mxu0
        %v4746 = vadd.f32 0.0, %v4745
        %4747 = vmatmul.f32.gmra.mxu0 %v4668
        %v4748 = vpop.f32.mrf.mxu0
        %v4749 = vadd.f32 0.0, %v4748
        %4750 = vmatmul.f32.gmra.mxu0 %v4669
        %v4751 = vpop.f32.mrf.mxu0
        %v4752 = vadd.f32 0.0, %v4751
        %4753 = vmatmul.f32.gmra.mxu0 %v4670
        %v4754 = vpop.f32.mrf.mxu0
        %v4755 = vadd.f32 0.0, %v4754
        %4756 = vmatmul.f32.gmra.mxu0 %v4671
        %v4757 = vpop.f32.mrf.mxu0
        %v4758 = vadd.f32 0.0, %v4757
        %4759 = vmatmul.f32.gmra.mxu0 %v4672
        %v4760 = vpop.f32.mrf.mxu0
        %v4761 = vadd.f32 0.0, %v4760
        %4762 = vmatmul.f32.gmra.mxu0 %v4673
        %v4763 = vpop.f32.mrf.mxu0
        %v4764 = vadd.f32 0.0, %v4763
        %4765 = vmatmul.f32.gmra.mxu0 %v4674
        %v4766 = vpop.f32.mrf.mxu0
        %v4767 = vadd.f32 0.0, %v4766
        %4768 = vmatmul.f32.gmra.mxu0 %v4675
        %v4769 = vpop.f32.mrf.mxu0
        %v4770 = vadd.f32 0.0, %v4769
        %4771 = vmatmul.f32.gmra.mxu0 %v4676
        %v4772 = vpop.f32.mrf.mxu0
        %v4773 = vadd.f32 0.0, %v4772
        %4774 = vmatmul.f32.gmra.mxu0 %v4677
        %v4775 = vpop.f32.mrf.mxu0
        %v4776 = vadd.f32 0.0, %v4775
        %4777 = vmatmul.f32.gmra.mxu0 %v4678
        %v4778 = vpop.f32.mrf.mxu0
        %v4779 = vadd.f32 0.0, %v4778
        %4780 = vmatmul.f32.gmra.mxu0 %v4679
        %v4781 = vpop.f32.mrf.mxu0
        %v4782 = vadd.f32 0.0, %v4781
        %4783 = vmatmul.f32.gmra.mxu0 %v4680
        %v4784 = vpop.f32.mrf.mxu0
        %v4785 = vadd.f32 0.0, %v4784
        %4786 = vmatmul.f32.gmra.mxu0 %v4681
        %v4787 = vpop.f32.mrf.mxu0
        %v4788 = vadd.f32 0.0, %v4787
        %4789 = vmatmul.f32.gmra.mxu0 %v4682
        %v4790 = vpop.f32.mrf.mxu0
        %v4791 = vadd.f32 0.0, %v4790
        %4792 = vmatmul.f32.gmra.mxu0 %v4683
        %v4793 = vpop.f32.mrf.mxu0
        %v4794 = vadd.f32 0.0, %v4793
        %4795 = vmatmul.f32.gmra.mxu0 %v4684
        %v4796 = vpop.f32.mrf.mxu0
        %v4797 = vadd.f32 0.0, %v4796
        %4798 = vmatmul.f32.gmra.mxu0 %v4685
        %v4799 = vpop.f32.mrf.mxu0
        %v4800 = vadd.f32 0.0, %v4799
        %4801 = vmatmul.f32.gmra.mxu0 %v4686
        %v4802 = vpop.f32.mrf.mxu0
        %v4803 = vadd.f32 0.0, %v4802
        %4804 = vmatmul.f32.gmra.mxu0 %v4687
        %v4805 = vpop.f32.mrf.mxu0
        %v4806 = vadd.f32 0.0, %v4805
        %4807 = vmatmul.f32.gmra.mxu0 %v4688
        %v4808 = vpop.f32.mrf.mxu0
        %v4809 = vadd.f32 0.0, %v4808
        %4810 = vmatmul.f32.gmra.mxu0 %v4689
        %v4811 = vpop.f32.mrf.mxu0
        %v4812 = vadd.f32 0.0, %v4811
        %4813 = vmatmul.f32.gmra.mxu0 %v4690
        %v4814 = vpop.f32.mrf.mxu0
        %v4815 = vadd.f32 0.0, %v4814
        %4816 = vmatmul.f32.gmra.mxu0 %v4691
        %v4817 = vpop.f32.mrf.mxu0
        %v4818 = vadd.f32 0.0, %v4817
        %4819 = vmatmul.f32.gmra.mxu0 %v4692
        %v4820 = vpop.f32.mrf.mxu0
        %v4821 = vadd.f32 0.0, %v4820
        %4822 = vdwg.mxu0
        %v4823 = vadd.f32 %v4629, %v4728
        %v4824 = vadd.f32 %v4630, %v4731
        %v4825 = vadd.f32 %v4631, %v4734
        %v4826 = vadd.f32 %v4632, %v4737
        %v4827 = vadd.f32 %v4633, %v4740
        %v4828 = vadd.f32 %v4634, %v4743
        %v4829 = vadd.f32 %v4635, %v4746
        %v4830 = vadd.f32 %v4636, %v4749
        %v4831 = vadd.f32 %v4637, %v4752
        %v4832 = vadd.f32 %v4638, %v4755
        %v4833 = vadd.f32 %v4639, %v4758
        %v4834 = vadd.f32 %v4640, %v4761
        %v4835 = vadd.f32 %v4641, %v4764
        %v4836 = vadd.f32 %v4642, %v4767
        %v4837 = vadd.f32 %v4643, %v4770
        %v4838 = vadd.f32 %v4644, %v4773
        %v4839 = vadd.f32 %v4645, %v4776
        %v4840 = vadd.f32 %v4646, %v4779
        %v4841 = vadd.f32 %v4647, %v4782
        %v4842 = vadd.f32 %v4648, %v4785
        %v4843 = vadd.f32 %v4649, %v4788
        %v4844 = vadd.f32 %v4650, %v4791
        %v4845 = vadd.f32 %v4651, %v4794
        %v4846 = vadd.f32 %v4652, %v4797
        %v4847 = vadd.f32 %v4653, %v4800
        %v4848 = vadd.f32 %v4654, %v4803
        %v4849 = vadd.f32 %v4655, %v4806
        %v4850 = vadd.f32 %v4656, %v4809
        %v4851 = vadd.f32 %v4657, %v4812
        %v4852 = vadd.f32 %v4658, %v4815
        %v4853 = vadd.f32 %v4659, %v4818
        %v4854 = vadd.f32 %v4660, %v4821
        %v4855 = vld [vmem:[#allocation3 + $0x29] sm:$0xff]
        %v4856 = vld [vmem:[#allocation3 + $0x31] sm:$0xff]
        %v4857 = vld [vmem:[#allocation3 + $0x39] sm:$0xff]
        %v4858 = vld [vmem:[#allocation3 + $0x41] sm:$0xff]
        %v4859 = vld [vmem:[#allocation3 + $0x49] sm:$0xff]
        %v4860 = vld [vmem:[#allocation3 + $0x51] sm:$0xff]
        %v4861 = vld [vmem:[#allocation3 + $0x59] sm:$0xff]
        %v4862 = vld [vmem:[#allocation3 + $0x61] sm:$0xff]
        %v4863 = vld [vmem:[#allocation3 + $0x69] sm:$0xff]
        %v4864 = vld [vmem:[#allocation3 + $0x71] sm:$0xff]
        %v4865 = vld [vmem:[#allocation3 + $0x79] sm:$0xff]
        %v4866 = vld [vmem:[#allocation3 + $0x81] sm:$0xff]
        %v4867 = vld [vmem:[#allocation3 + $0x89] sm:$0xff]
        %v4868 = vld [vmem:[#allocation3 + $0x91] sm:$0xff]
        %v4869 = vld [vmem:[#allocation3 + $0x99] sm:$0xff]
        %v4870 = vld [vmem:[#allocation3 + $0xa1] sm:$0xff]
        %v4871 = vld [vmem:[#allocation3 + $0xa9] sm:$0xff]
        %v4872 = vld [vmem:[#allocation3 + $0xb1] sm:$0xff]
        %v4873 = vld [vmem:[#allocation3 + $0xb9] sm:$0xff]
        %v4874 = vld [vmem:[#allocation3 + $0xc1] sm:$0xff]
        %v4875 = vld [vmem:[#allocation3 + $0xc9] sm:$0xff]
        %v4876 = vld [vmem:[#allocation3 + $0xd1] sm:$0xff]
        %v4877 = vld [vmem:[#allocation3 + $0xd9] sm:$0xff]
        %v4878 = vld [vmem:[#allocation3 + $0xe1] sm:$0xff]
        %v4879 = vld [vmem:[#allocation3 + $0xe9] sm:$0xff]
        %v4880 = vld [vmem:[#allocation3 + $0xf1] sm:$0xff]
        %v4881 = vld [vmem:[#allocation3 + $0xf9] sm:$0xff]
        %v4882 = vld [vmem:[#allocation3 + $0x101] sm:$0xff]
        %v4883 = vld [vmem:[#allocation3 + $0x109] sm:$0xff]
        %v4884 = vld [vmem:[#allocation3 + $0x111] sm:$0xff]
        %v4885 = vld [vmem:[#allocation3 + $0x119] sm:$0xff]
        %v4886 = vld [vmem:[#allocation3 + $0x121] sm:$0xff]
        %v4887 = vsel %vm1520, %v4855, 0.0
        %v4888 = vsel %vm1521, %v4856, 0.0
        %v4889 = vsel %vm1522, %v4857, 0.0
        %v4890 = vsel %vm1523, %v4858, 0.0
        %v4891 = vsel %vm1524, %v4859, 0.0
        %v4892 = vsel %vm1525, %v4860, 0.0
        %v4893 = vsel %vm1526, %v4861, 0.0
        %v4894 = vsel %vm1527, %v4862, 0.0
        %v4895 = vsel %vm1528, %v4863, 0.0
        %v4896 = vsel %vm1529, %v4864, 0.0
        %v4897 = vsel %vm1530, %v4865, 0.0
        %v4898 = vsel %vm1531, %v4866, 0.0
        %v4899 = vsel %vm1532, %v4867, 0.0
        %v4900 = vsel %vm1533, %v4868, 0.0
        %v4901 = vsel %vm1534, %v4869, 0.0
        %v4902 = vsel %vm1535, %v4870, 0.0
        %v4903 = vsel %vm1536, %v4871, 0.0
        %v4904 = vsel %vm1537, %v4872, 0.0
        %v4905 = vsel %vm1538, %v4873, 0.0
        %v4906 = vsel %vm1539, %v4874, 0.0
        %v4907 = vsel %vm1540, %v4875, 0.0
        %v4908 = vsel %vm1541, %v4876, 0.0
        %v4909 = vsel %vm1542, %v4877, 0.0
        %v4910 = vsel %vm1543, %v4878, 0.0
        %v4911 = vsel %vm1544, %v4879, 0.0
        %v4912 = vsel %vm1545, %v4880, 0.0
        %v4913 = vsel %vm1546, %v4881, 0.0
        %v4914 = vsel %vm1547, %v4882, 0.0
        %v4915 = vsel %vm1548, %v4883, 0.0
        %v4916 = vsel %vm1549, %v4884, 0.0
        %v4917 = vsel %vm1550, %v4885, 0.0
        %v4918 = vsel %vm1551, %v4886, 0.0
        %s4919 = scalar_lea.vmem [#allocation9], 1024
        %v4920 = vld [vmem:[%s4919] sm:$0xff]
        %v4921 = vld [vmem:[%s4919 + $0x8] sm:$0xff]
        %v4922 = vld [vmem:[%s4919 + $0x10] sm:$0xff]
        %v4923 = vld [vmem:[%s4919 + $0x18] sm:$0xff]
        %v4924 = vld [vmem:[%s4919 + $0x20] sm:$0xff]
        %v4925 = vld [vmem:[%s4919 + $0x28] sm:$0xff]
        %v4926 = vld [vmem:[%s4919 + $0x30] sm:$0xff]
        %v4927 = vld [vmem:[%s4919 + $0x38] sm:$0xff]
        %v4928 = vld [vmem:[%s4919 + $0x40] sm:$0xff]
        %v4929 = vld [vmem:[%s4919 + $0x48] sm:$0xff]
        %v4930 = vld [vmem:[%s4919 + $0x50] sm:$0xff]
        %v4931 = vld [vmem:[%s4919 + $0x58] sm:$0xff]
        %v4932 = vld [vmem:[%s4919 + $0x60] sm:$0xff]
        %v4933 = vld [vmem:[%s4919 + $0x68] sm:$0xff]
        %v4934 = vld [vmem:[%s4919 + $0x70] sm:$0xff]
        %v4935 = vld [vmem:[%s4919 + $0x78] sm:$0xff]
        %4936 = vmatpush.msra.mxu0 %v4935
        %4937 = vmatpush.msra.mxu0 %v4934
        %4938 = vmatpush.msra.mxu0 %v4933
        %4939 = vmatpush.msra.mxu0 %v4932
        %4940 = vmatpush.msra.mxu0 %v4931
        %4941 = vmatpush.msra.mxu0 %v4930
        %4942 = vmatpush.msra.mxu0 %v4929
        %4943 = vmatpush.msra.mxu0 %v4928
        %4944 = vmatpush.msra.mxu0 %v4927
        %4945 = vmatpush.msra.mxu0 %v4926
        %4946 = vmatpush.msra.mxu0 %v4925
        %4947 = vmatpush.msra.mxu0 %v4924
        %4948 = vmatpush.msra.mxu0 %v4923
        %4949 = vmatpush.msra.mxu0 %v4922
        %4950 = vmatpush.msra.mxu0 %v4921
        %4951 = vmatpush.msra.mxu0 %v4920
        %4952 = vmatmul.f32.gmra.mxu0 %v4887
        %v4953 = vpop.f32.mrf.mxu0
        %v4954 = vadd.f32 0.0, %v4953
        %4955 = vmatmul.f32.gmra.mxu0 %v4888
        %v4956 = vpop.f32.mrf.mxu0
        %v4957 = vadd.f32 0.0, %v4956
        %4958 = vmatmul.f32.gmra.mxu0 %v4889
        %v4959 = vpop.f32.mrf.mxu0
        %v4960 = vadd.f32 0.0, %v4959
        %4961 = vmatmul.f32.gmra.mxu0 %v4890
        %v4962 = vpop.f32.mrf.mxu0
        %v4963 = vadd.f32 0.0, %v4962
        %4964 = vmatmul.f32.gmra.mxu0 %v4891
        %v4965 = vpop.f32.mrf.mxu0
        %v4966 = vadd.f32 0.0, %v4965
        %4967 = vmatmul.f32.gmra.mxu0 %v4892
        %v4968 = vpop.f32.mrf.mxu0
        %v4969 = vadd.f32 0.0, %v4968
        %4970 = vmatmul.f32.gmra.mxu0 %v4893
        %v4971 = vpop.f32.mrf.mxu0
        %v4972 = vadd.f32 0.0, %v4971
        %4973 = vmatmul.f32.gmra.mxu0 %v4894
        %v4974 = vpop.f32.mrf.mxu0
        %v4975 = vadd.f32 0.0, %v4974
        %4976 = vmatmul.f32.gmra.mxu0 %v4895
        %v4977 = vpop.f32.mrf.mxu0
        %v4978 = vadd.f32 0.0, %v4977
        %4979 = vmatmul.f32.gmra.mxu0 %v4896
        %v4980 = vpop.f32.mrf.mxu0
        %v4981 = vadd.f32 0.0, %v4980
        %4982 = vmatmul.f32.gmra.mxu0 %v4897
        %v4983 = vpop.f32.mrf.mxu0
        %v4984 = vadd.f32 0.0, %v4983
        %4985 = vmatmul.f32.gmra.mxu0 %v4898
        %v4986 = vpop.f32.mrf.mxu0
        %v4987 = vadd.f32 0.0, %v4986
        %4988 = vmatmul.f32.gmra.mxu0 %v4899
        %v4989 = vpop.f32.mrf.mxu0
        %v4990 = vadd.f32 0.0, %v4989
        %4991 = vmatmul.f32.gmra.mxu0 %v4900
        %v4992 = vpop.f32.mrf.mxu0
        %v4993 = vadd.f32 0.0, %v4992
        %4994 = vmatmul.f32.gmra.mxu0 %v4901
        %v4995 = vpop.f32.mrf.mxu0
        %v4996 = vadd.f32 0.0, %v4995
        %4997 = vmatmul.f32.gmra.mxu0 %v4902
        %v4998 = vpop.f32.mrf.mxu0
        %v4999 = vadd.f32 0.0, %v4998
        %5000 = vmatmul.f32.gmra.mxu0 %v4903
        %v5001 = vpop.f32.mrf.mxu0
        %v5002 = vadd.f32 0.0, %v5001
        %5003 = vmatmul.f32.gmra.mxu0 %v4904
        %v5004 = vpop.f32.mrf.mxu0
        %v5005 = vadd.f32 0.0, %v5004
        %5006 = vmatmul.f32.gmra.mxu0 %v4905
        %v5007 = vpop.f32.mrf.mxu0
        %v5008 = vadd.f32 0.0, %v5007
        %5009 = vmatmul.f32.gmra.mxu0 %v4906
        %v5010 = vpop.f32.mrf.mxu0
        %v5011 = vadd.f32 0.0, %v5010
        %5012 = vmatmul.f32.gmra.mxu0 %v4907
        %v5013 = vpop.f32.mrf.mxu0
        %v5014 = vadd.f32 0.0, %v5013
        %5015 = vmatmul.f32.gmra.mxu0 %v4908
        %v5016 = vpop.f32.mrf.mxu0
        %v5017 = vadd.f32 0.0, %v5016
        %5018 = vmatmul.f32.gmra.mxu0 %v4909
        %v5019 = vpop.f32.mrf.mxu0
        %v5020 = vadd.f32 0.0, %v5019
        %5021 = vmatmul.f32.gmra.mxu0 %v4910
        %v5022 = vpop.f32.mrf.mxu0
        %v5023 = vadd.f32 0.0, %v5022
        %5024 = vmatmul.f32.gmra.mxu0 %v4911
        %v5025 = vpop.f32.mrf.mxu0
        %v5026 = vadd.f32 0.0, %v5025
        %5027 = vmatmul.f32.gmra.mxu0 %v4912
        %v5028 = vpop.f32.mrf.mxu0
        %v5029 = vadd.f32 0.0, %v5028
        %5030 = vmatmul.f32.gmra.mxu0 %v4913
        %v5031 = vpop.f32.mrf.mxu0
        %v5032 = vadd.f32 0.0, %v5031
        %5033 = vmatmul.f32.gmra.mxu0 %v4914
        %v5034 = vpop.f32.mrf.mxu0
        %v5035 = vadd.f32 0.0, %v5034
        %5036 = vmatmul.f32.gmra.mxu0 %v4915
        %v5037 = vpop.f32.mrf.mxu0
        %v5038 = vadd.f32 0.0, %v5037
        %5039 = vmatmul.f32.gmra.mxu0 %v4916
        %v5040 = vpop.f32.mrf.mxu0
        %v5041 = vadd.f32 0.0, %v5040
        %5042 = vmatmul.f32.gmra.mxu0 %v4917
        %v5043 = vpop.f32.mrf.mxu0
        %v5044 = vadd.f32 0.0, %v5043
        %5045 = vmatmul.f32.gmra.mxu0 %v4918
        %v5046 = vpop.f32.mrf.mxu0
        %v5047 = vadd.f32 0.0, %v5046
        %5048 = vdwg.mxu0
        %v5049 = vadd.f32 %v4823, %v4954
        %v5050 = vadd.f32 %v4824, %v4957
        %v5051 = vadd.f32 %v4825, %v4960
        %v5052 = vadd.f32 %v4826, %v4963
        %v5053 = vadd.f32 %v4827, %v4966
        %v5054 = vadd.f32 %v4828, %v4969
        %v5055 = vadd.f32 %v4829, %v4972
        %v5056 = vadd.f32 %v4830, %v4975
        %v5057 = vadd.f32 %v4831, %v4978
        %v5058 = vadd.f32 %v4832, %v4981
        %v5059 = vadd.f32 %v4833, %v4984
        %v5060 = vadd.f32 %v4834, %v4987
        %v5061 = vadd.f32 %v4835, %v4990
        %v5062 = vadd.f32 %v4836, %v4993
        %v5063 = vadd.f32 %v4837, %v4996
        %v5064 = vadd.f32 %v4838, %v4999
        %v5065 = vadd.f32 %v4839, %v5002
        %v5066 = vadd.f32 %v4840, %v5005
        %v5067 = vadd.f32 %v4841, %v5008
        %v5068 = vadd.f32 %v4842, %v5011
        %v5069 = vadd.f32 %v4843, %v5014
        %v5070 = vadd.f32 %v4844, %v5017
        %v5071 = vadd.f32 %v4845, %v5020
        %v5072 = vadd.f32 %v4846, %v5023
        %v5073 = vadd.f32 %v4847, %v5026
        %v5074 = vadd.f32 %v4848, %v5029
        %v5075 = vadd.f32 %v4849, %v5032
        %v5076 = vadd.f32 %v4850, %v5035
        %v5077 = vadd.f32 %v4851, %v5038
        %v5078 = vadd.f32 %v4852, %v5041
        %v5079 = vadd.f32 %v4853, %v5044
        %v5080 = vadd.f32 %v4854, %v5047
        %v5081 = vadd.f32 %v5049, %v5050
        %v5082 = vadd.f32 %v5081, %v5051
        %v5083 = vadd.f32 %v5082, %v5052
        %v5084 = vadd.f32 %v5083, %v5053
        %v5085 = vadd.f32 %v5084, %v5054
        %v5086 = vadd.f32 %v5085, %v5055
        %v5087 = vadd.f32 %v5086, %v5056
        %v5088 = vadd.f32 %v5087, %v5057
        %v5089 = vadd.f32 %v5088, %v5058
        %v5090 = vadd.f32 %v5089, %v5059
        %v5091 = vadd.f32 %v5090, %v5060
        %v5092 = vadd.f32 %v5091, %v5061
        %v5093 = vadd.f32 %v5092, %v5062
        %v5094 = vadd.f32 %v5093, %v5063
        %v5095 = vadd.f32 %v5094, %v5064
        %v5096 = vadd.f32 %v5095, %v5065
        %v5097 = vadd.f32 %v5096, %v5066
        %v5098 = vadd.f32 %v5097, %v5067
        %v5099 = vadd.f32 %v5098, %v5068
        %v5100 = vadd.f32 %v5099, %v5069
        %v5101 = vadd.f32 %v5100, %v5070
        %v5102 = vadd.f32 %v5101, %v5071
        %v5103 = vadd.f32 %v5102, %v5072
        %v5104 = vadd.f32 %v5103, %v5073
        %v5105 = vadd.f32 %v5104, %v5074
        %v5106 = vadd.f32 %v5105, %v5075
        %v5107 = vadd.f32 %v5106, %v5076
        %v5108 = vadd.f32 %v5107, %v5077
        %v5109 = vadd.f32 %v5108, %v5078
        %v5110 = vadd.f32 %v5109, %v5079
        %v5111 = vadd.f32 %v5110, %v5080
        %v5112 = vrot.slane %v5111, 4
        %v5113 = vadd.f32 %v5111, %v5112
        %v5114 = vrot.slane %v5113, 2
        %v5115 = vadd.f32 %v5113, %v5114
        %v5116 = vrot.slane %v5115, 1
        %v5117 = vadd.f32 %v5115, %v5116
        %v5118 = vrcp.pop 256.0
        %v5119 = vmul.f32 256.0, %v5118
        %v5120 = vsub.f32 1.0, %v5119
        %v5121 = vmul.f32 %v5118, %v5120
        %v5122 = vadd.f32 %v5118, %v5121
        %vm5123 = vweird.f32 %v5118
        %v5124 = vsel %vm5123, %v5118, %v5122
        %v5125 = vmul.f32 %v5117, %v5124
        %v5126 = vld [vmem:[%s5] sm:$0xff]
        %v5127 = vld [vmem:[%s5 + $0x8] sm:$0xff]
        %v5128 = vld [vmem:[%s5 + $0x10] sm:$0xff]
        %v5129 = vld [vmem:[%s5 + $0x18] sm:$0xff]
        %v5130 = vld [vmem:[%s5 + $0x20] sm:$0xff]
        %v5131 = vld [vmem:[%s5 + $0x28] sm:$0xff]
        %v5132 = vld [vmem:[%s5 + $0x30] sm:$0xff]
        %v5133 = vld [vmem:[%s5 + $0x38] sm:$0xff]
        %v5134 = vld [vmem:[%s5 + $0x40] sm:$0xff]
        %v5135 = vld [vmem:[%s5 + $0x48] sm:$0xff]
        %v5136 = vld [vmem:[%s5 + $0x50] sm:$0xff]
        %v5137 = vld [vmem:[%s5 + $0x58] sm:$0xff]
        %v5138 = vld [vmem:[%s5 + $0x60] sm:$0xff]
        %v5139 = vld [vmem:[%s5 + $0x68] sm:$0xff]
        %v5140 = vld [vmem:[%s5 + $0x70] sm:$0xff]
        %v5141 = vld [vmem:[%s5 + $0x78] sm:$0xff]
        %v5142 = vld [vmem:[%s6] sm:$0x1]
        %5143 = vmatpush.msra.mxu0 %v5141
        %5144 = vmatpush.msra.mxu0 %v5140
        %5145 = vmatpush.msra.mxu0 %v5139
        %5146 = vmatpush.msra.mxu0 %v5138
        %5147 = vmatpush.msra.mxu0 %v5137
        %5148 = vmatpush.msra.mxu0 %v5136
        %5149 = vmatpush.msra.mxu0 %v5135
        %5150 = vmatpush.msra.mxu0 %v5134
        %5151 = vmatpush.msra.mxu0 %v5133
        %5152 = vmatpush.msra.mxu0 %v5132
        %5153 = vmatpush.msra.mxu0 %v5131
        %5154 = vmatpush.msra.mxu0 %v5130
        %5155 = vmatpush.msra.mxu0 %v5129
        %5156 = vmatpush.msra.mxu0 %v5128
        %5157 = vmatpush.msra.mxu0 %v5127
        %5158 = vmatpush.msra.mxu0 %v5126
        %5159 = vmatmul.f32.gmra.mxu0 %v5125
        %v5160 = vpop.f32.mrf.mxu0
        %v5161 = vadd.f32 %v5142, %v5160
        %5162 = vdwg.mxu0
        %v5163 = vmax.f32 %v5161, 0.0
        %v5164 = vld [vmem:[%s7] sm:$0xff]
        %v5165 = vld [vmem:[%s8] sm:$0x1]
        %vm5166 = vcmask 64512
        %v5168 = vsel %vm5166, %v5163, 0
        %5170 = vmatpush.msra.mxu0 0.0
        %5171 = vmatpush.msra.mxu0 0.0
        %5172 = vmatpush.msra.mxu0 0.0
        %5173 = vmatpush.msra.mxu0 0.0
        %5174 = vmatpush.msra.mxu0 0.0
        %5175 = vmatpush.msra.mxu0 0.0
        %5176 = vmatpush.msra.mxu0 0.0
        %5177 = vmatpush.msra.mxu0 0.0
        %5178 = vmatpush.msra.mxu0 0.0
        %5179 = vmatpush.msra.mxu0 0.0
        %5180 = vmatpush.msra.mxu0 0.0
        %5181 = vmatpush.msra.mxu0 0.0
        %5182 = vmatpush.msra.mxu0 0.0
        %5183 = vmatpush.msra.mxu0 0.0
        %5184 = vmatpush.msra.mxu0 0.0
        %5185 = vmatpush.msra.mxu0 %v5164
        %5186 = vmatmul.f32.gmra.mxu0 %v5168
        %v5187 = vpop.f32.mrf.mxu0
        %v5188 = vadd.f32 %v5165, %v5187
        %5189 = vdwg.mxu0
        %v5190 = vsub.f32 0.0, %v5188
        %v5191 = vmul.f32 %v5190, 1.442695
        %v5192 = vpow.pop %v5191
        %v5193 = vadd.f32 %v5192, 1.0
        %v5194 = vrcp.pop %v5193
        %v5195 = vmul.f32 %v5193, %v5194
        %v5196 = vsub.f32 1.0, %v5195
        %v5197 = vmul.f32 %v5194, %v5196
        %v5198 = vadd.f32 %v5194, %v5197
        %vm5199 = vweird.f32 %v5193
        %vm5200 = vweird.f32 %v5194
        %vm5201 = vmor %vm5199, %vm5200
        %v5202 = vsel %vm5201, %v5194, %v5198
        %v5203 = vand.u32 2147483647, %v5193
        %vm5204 = vcmp.eq.f32.partialorder %v5203, 8.507059e+37
        %v5205 = vand.u32 %v5193, 2147483648
        %v5206 = vor.u32 1.1754944e-38, %v5205
        %v5207 = vsel %vm5204, %v5206, %v5202
        %v5208 = vmul.f32 1.0, %v5207
        %v5209 = vperm.slane %v5208, 0
        %v5210 = vmul.f32 %v5049, %v5209
        %v5211 = vmul.f32 %v5050, %v5209
        %v5212 = vmul.f32 %v5051, %v5209
        %v5213 = vmul.f32 %v5052, %v5209
        %v5214 = vmul.f32 %v5053, %v5209
        %v5215 = vmul.f32 %v5054, %v5209
        %v5216 = vmul.f32 %v5055, %v5209
        %v5217 = vmul.f32 %v5056, %v5209
        %v5218 = vmul.f32 %v5057, %v5209
        %v5219 = vmul.f32 %v5058, %v5209
        %v5220 = vmul.f32 %v5059, %v5209
        %v5221 = vmul.f32 %v5060, %v5209
        %v5222 = vmul.f32 %v5061, %v5209
        %v5223 = vmul.f32 %v5062, %v5209
        %v5224 = vmul.f32 %v5063, %v5209
        %v5225 = vmul.f32 %v5064, %v5209
        %v5226 = vmul.f32 %v5065, %v5209
        %v5227 = vmul.f32 %v5066, %v5209
        %v5228 = vmul.f32 %v5067, %v5209
        %v5229 = vmul.f32 %v5068, %v5209
        %v5230 = vmul.f32 %v5069, %v5209
        %v5231 = vmul.f32 %v5070, %v5209
        %v5232 = vmul.f32 %v5071, %v5209
        %v5233 = vmul.f32 %v5072, %v5209
        %v5234 = vmul.f32 %v5073, %v5209
        %v5235 = vmul.f32 %v5074, %v5209
        %v5236 = vmul.f32 %v5075, %v5209
        %v5237 = vmul.f32 %v5076, %v5209
        %v5238 = vmul.f32 %v5077, %v5209
        %v5239 = vmul.f32 %v5078, %v5209
        %v5240 = vmul.f32 %v5079, %v5209
        %v5241 = vmul.f32 %v5080, %v5209
        %v5242 = vld [vmem:[%s340] sm:$0xff]
        %v5243 = vld [vmem:[%s340 + $0x8] sm:$0xff]
        %v5244 = vld [vmem:[%s340 + $0x10] sm:$0xff]
        %v5245 = vld [vmem:[%s340 + $0x18] sm:$0xff]
        %v5246 = vld [vmem:[%s340 + $0x20] sm:$0xff]
        %v5247 = vld [vmem:[%s340 + $0x28] sm:$0xff]
        %v5248 = vld [vmem:[%s340 + $0x30] sm:$0xff]
        %v5249 = vld [vmem:[%s340 + $0x38] sm:$0xff]
        %v5250 = vld [vmem:[%s340 + $0x40] sm:$0xff]
        %v5251 = vld [vmem:[%s340 + $0x48] sm:$0xff]
        %v5252 = vld [vmem:[%s340 + $0x50] sm:$0xff]
        %v5253 = vld [vmem:[%s340 + $0x58] sm:$0xff]
        %v5254 = vld [vmem:[%s340 + $0x60] sm:$0xff]
        %v5255 = vld [vmem:[%s340 + $0x68] sm:$0xff]
        %v5256 = vld [vmem:[%s340 + $0x70] sm:$0xff]
        %v5257 = vld [vmem:[%s340 + $0x78] sm:$0xff]
        %v5258 = vld [vmem:[%s340 + $0x80] sm:$0xff]
        %v5259 = vld [vmem:[%s340 + $0x88] sm:$0xff]
        %v5260 = vld [vmem:[%s340 + $0x90] sm:$0xff]
        %v5261 = vld [vmem:[%s340 + $0x98] sm:$0xff]
        %v5262 = vld [vmem:[%s340 + $0xa0] sm:$0xff]
        %v5263 = vld [vmem:[%s340 + $0xa8] sm:$0xff]
        %v5264 = vld [vmem:[%s340 + $0xb0] sm:$0xff]
        %v5265 = vld [vmem:[%s340 + $0xb8] sm:$0xff]
        %v5266 = vld [vmem:[%s340 + $0xc0] sm:$0xff]
        %v5267 = vld [vmem:[%s340 + $0xc8] sm:$0xff]
        %v5268 = vld [vmem:[%s340 + $0xd0] sm:$0xff]
        %v5269 = vld [vmem:[%s340 + $0xd8] sm:$0xff]
        %v5270 = vld [vmem:[%s340 + $0xe0] sm:$0xff]
        %v5271 = vld [vmem:[%s340 + $0xe8] sm:$0xff]
        %v5272 = vld [vmem:[%s340 + $0xf0] sm:$0xff]
        %v5273 = vld [vmem:[%s340 + $0xf8] sm:$0xff]
        %v5274 = vadd.f32 %v5210, %v5242
        %v5275 = vadd.f32 %v5211, %v5243
        %v5276 = vadd.f32 %v5212, %v5244
        %v5277 = vadd.f32 %v5213, %v5245
        %v5278 = vadd.f32 %v5214, %v5246
        %v5279 = vadd.f32 %v5215, %v5247
        %v5280 = vadd.f32 %v5216, %v5248
        %v5281 = vadd.f32 %v5217, %v5249
        %v5282 = vadd.f32 %v5218, %v5250
        %v5283 = vadd.f32 %v5219, %v5251
        %v5284 = vadd.f32 %v5220, %v5252
        %v5285 = vadd.f32 %v5221, %v5253
        %v5286 = vadd.f32 %v5222, %v5254
        %v5287 = vadd.f32 %v5223, %v5255
        %v5288 = vadd.f32 %v5224, %v5256
        %v5289 = vadd.f32 %v5225, %v5257
        %v5290 = vadd.f32 %v5226, %v5258
        %v5291 = vadd.f32 %v5227, %v5259
        %v5292 = vadd.f32 %v5228, %v5260
        %v5293 = vadd.f32 %v5229, %v5261
        %v5294 = vadd.f32 %v5230, %v5262
        %v5295 = vadd.f32 %v5231, %v5263
        %v5296 = vadd.f32 %v5232, %v5264
        %v5297 = vadd.f32 %v5233, %v5265
        %v5298 = vadd.f32 %v5234, %v5266
        %v5299 = vadd.f32 %v5235, %v5267
        %v5300 = vadd.f32 %v5236, %v5268
        %v5301 = vadd.f32 %v5237, %v5269
        %v5302 = vadd.f32 %v5238, %v5270
        %v5303 = vadd.f32 %v5239, %v5271
        %v5304 = vadd.f32 %v5240, %v5272
        %v5305 = vadd.f32 %v5241, %v5273
        %5306 = vst [vmem:[%s385] sm:$0xff] %v5274
        %5307 = vst [vmem:[%s385 + $0x8] sm:$0xff] %v5275
        %5308 = vst [vmem:[%s385 + $0x10] sm:$0xff] %v5276
        %5309 = vst [vmem:[%s385 + $0x18] sm:$0xff] %v5277
        %5310 = vst [vmem:[%s385 + $0x20] sm:$0xff] %v5278
        %5311 = vst [vmem:[%s385 + $0x28] sm:$0xff] %v5279
        %5312 = vst [vmem:[%s385 + $0x30] sm:$0xff] %v5280
        %5313 = vst [vmem:[%s385 + $0x38] sm:$0xff] %v5281
        %5314 = vst [vmem:[%s385 + $0x40] sm:$0xff] %v5282
        %5315 = vst [vmem:[%s385 + $0x48] sm:$0xff] %v5283
        %5316 = vst [vmem:[%s385 + $0x50] sm:$0xff] %v5284
        %5317 = vst [vmem:[%s385 + $0x58] sm:$0xff] %v5285
        %5318 = vst [vmem:[%s385 + $0x60] sm:$0xff] %v5286
        %5319 = vst [vmem:[%s385 + $0x68] sm:$0xff] %v5287
        %5320 = vst [vmem:[%s385 + $0x70] sm:$0xff] %v5288
        %5321 = vst [vmem:[%s385 + $0x78] sm:$0xff] %v5289
        %5322 = vst [vmem:[%s385 + $0x80] sm:$0xff] %v5290
        %5323 = vst [vmem:[%s385 + $0x88] sm:$0xff] %v5291
        %5324 = vst [vmem:[%s385 + $0x90] sm:$0xff] %v5292
        %5325 = vst [vmem:[%s385 + $0x98] sm:$0xff] %v5293
        %5326 = vst [vmem:[%s385 + $0xa0] sm:$0xff] %v5294
        %5327 = vst [vmem:[%s385 + $0xa8] sm:$0xff] %v5295
        %5328 = vst [vmem:[%s385 + $0xb0] sm:$0xff] %v5296
        %5329 = vst [vmem:[%s385 + $0xb8] sm:$0xff] %v5297
        %5330 = vst [vmem:[%s385 + $0xc0] sm:$0xff] %v5298
        %5331 = vst [vmem:[%s385 + $0xc8] sm:$0xff] %v5299
        %5332 = vst [vmem:[%s385 + $0xd0] sm:$0xff] %v5300
        %5333 = vst [vmem:[%s385 + $0xd8] sm:$0xff] %v5301
        %5334 = vst [vmem:[%s385 + $0xe0] sm:$0xff] %v5302
        %5335 = vst [vmem:[%s385 + $0xe8] sm:$0xff] %v5303
        %5336 = vst [vmem:[%s385 + $0xf0] sm:$0xff] %v5304
        %5337 = vst [vmem:[%s385 + $0xf8] sm:$0xff] %v5305
        %s5338 = sand.u32 %s229, 1
        %s5339 = scalar_lea.sflag [#allocation6], %s5338
        %s5340 = sand.u32 %s229, 1
        %s5341 = smul.addr %s5340, 256
        %s5342 = scalar_lea.vmem [#allocation10], %s5341
        // Predicated region
        $region69: #{tpu_custom_call.1} parent=55 // pred_check
          %p5343 = pneg %p239
        $region70: #{tpu_custom_call.1} parent=55 // pred_check_branch
          %5345 = sbr.rel (%p5343) target = $region72
        $region71: #{tpu_custom_call.1} parent=55 // pred_region
          %5347 = vsyncadd %s5339, 0
          %s5348 = smul.addr %s27, 32
          %s5349 = smul.addr %s5348, 8
          %s5350 = scalar_lea.hbm %s9, %s5349
          %s5351 = sshll.u32 %s5342, 4
          %s5352 = int_to_ptr.vmem [resolvable:$true] %s5351
          %s5353 = sshll.u32 %s5350, 4
          %s5354 = int_to_ptr.hbm [resolvable:$true] %s5353
          %5359 = dma.vmem_to_hbm [thread:$0]  %s5352, 4096, %s5354, %s5339, 128, 128, 8
        $region72: #{tpu_custom_call.1} parent=55 // pred_fallthru
          _
      $region56: #{tpu_custom_call.1} parent=5 // pred_fallthru
        _
      %p5360 = scmp.le.s32.totalorder 2, %s22
      // Predicated region
      $region73: #{tpu_custom_call.1} parent=5 // pred_check
        %p5361 = pneg %p5360
      $region74: #{tpu_custom_call.1} parent=5 // pred_check_branch
        %5363 = sbr.rel (%p5361) target = $region76
      $region75: #{tpu_custom_call.1} parent=5 // pred_region
        %s5364 = ssub.s32 %s22, 2
        // Predicated region
        $region77: #{tpu_custom_call.1} parent=75 // pred_check
          %p5365 = pneg %p245
        $region78: #{tpu_custom_call.1} parent=75 // pred_check_branch
          %5367 = sbr.rel (%p5365) target = $region80
        $region79: #{tpu_custom_call.1} parent=75 // pred_region
          %s5368 = sand.u32 %s230, 1
          %s5369 = scalar_lea.sflag [#allocation6], %s5368
          %s5370 = sand.u32 %s230, 1
          %s5371 = smul.addr %s5370, 256
          %s5372 = scalar_lea.vmem [#allocation10], %s5371
          %5374 = dma.done %s5369, 4096
        $region80: #{tpu_custom_call.1} parent=75 // pred_fallthru
          _
      $region76: #{tpu_custom_call.1} parent=5 // pred_fallthru
        _
    $region6: #{tpu_custom_call.1} parent=1 // loop_footer
      %s26 = sadd.s32 1, %s22
    $region7: #{tpu_custom_call.1} parent=1 // loop_footer_branch
      %21 = sbr.rel target = $region3
    $region8: #{tpu_custom_call.1} parent=1 // loop_exit
      _
    %5375 = vsyncpa [#allocation5], 1
    %s5376 = scalar_lea.sflag [#allocation5], 1
    %5377 = vsyncpa %s5376, 1
    %5378 = vsyncpa [#allocation8], 1
    %5379 = vsyncpa [#allocation6], 1
    %s5380 = scalar_lea.sflag [#allocation6], 1
    %5381 = vsyncpa %s5380, 1

</llo_original>
